<compile_context>
chip_gen: v7x
topology: tpu7x:2x2x1
jax: 0.10.0
libtpu: 0.0.40
codegen_flags: <defaults>
</compile_context>

<pallas_src>
import math
import functools

import jax
import jax.numpy as jnp
from jax import lax
from jax.experimental import pallas as pl
from jax.experimental.pallas import tpu as pltpu

# ---------------- small synthetic Mistral config (lane-aligned) ----------------
VOCAB = 256
HIDDEN = 256
N_LAYERS = 2
N_HEADS = 2
HEAD_DIM = HIDDEN // N_HEADS            # 128 -> lane-dense heads
INTERMEDIATE = 512
RMS_EPS = 1e-6
ROPE_THETA = 10000.0
V_TILE = 256                            # full (tiny) vocab per tile; multiple of 128
BATCH_BLOCKS = 1                        # set to 2 on v7x to use both TensorCores

_VMEM_LIMIT = 16 * 1024 * 1024          # actual working set is ~3 MiB; ample headroom


def _rms(x, w):
    """RMSNorm in f32 (kept f32: v5e has no bf16 VALU)."""
    var = jnp.mean(x * x, axis=-1, keepdims=True)
    return x * lax.rsqrt(var + RMS_EPS) * w


# ---------------- fused backbone kernel: embedding + ALL decoder layers ----------------
def _backbone_kernel(ids_ref, embed_ref, ln1_ref, wqkv_ref, wo_ref, ln2_ref,
                     wgu_ref, wdn_ref, cos_ref, sin_ref, o_ref, ctx_s,
                     *, seq_len, n_batch):
    layer = pl.program_id(1)
    bs_blk = n_batch * seq_len

    @pl.when(layer == 0)
    def _():
        # Embedding gather fused as a one-hot bf16 MXU matmul (V is tiny here).
        col = lax.broadcasted_iota(jnp.int32, (bs_blk, VOCAB), 1)
        onehot = (col == ids_ref[...]).astype(jnp.bfloat16)
        o_ref[...] = jnp.dot(onehot, embed_ref[...],
                             preferred_element_type=jnp.float32)

    # Residual lives in the VMEM-resident output block across layer iterations.
    h = o_ref[...]                                       # (B*S, D) f32
    cos = cos_ref[...]                                   # (S, Dh)
    sin = sin_ref[...]                                   # (S, Dh)

    # ---- self-attention block ----
    xn = _rms(h, ln1_ref[0])
    qkv = jnp.dot(xn.astype(jnp.bfloat16), wqkv_ref[0],
                  preferred_element_type=jnp.float32)    # (B*S, 3*D), one matmul

    row = lax.broadcasted_iota(jnp.int32, (seq_len, seq_len), 0)
    col_ss = lax.broadcasted_iota(jnp.int32, (seq_len, seq_len), 1)
    causal = col_ss <= row
    scale = 1.0 / math.sqrt(HEAD_DIM)
    half = HEAD_DIM // 2

    def rope(x):
        # rotate_half(x) = concat(-x2, x1); static half-slices + concat.
        x1 = x[:, :half]
        x2 = x[:, half:]
        return x * cos + jnp.concatenate([-x2, x1], axis=-1) * sin

    # Per-(batch, head) causal attention; contexts written straight into a
    # (B*S, D) VMEM scratch at lane offset head*HEAD_DIM (no concat copy).
    for b in range(n_batch):
        r0 = b * seq_len
        for hd in range(N_HEADS):
            lo = hd * HEAD_DIM
            q = rope(qkv[r0:r0 + seq_len, lo:lo + HEAD_DIM])
            k = rope(qkv[r0:r0 + seq_len, HIDDEN + lo:HIDDEN + lo + HEAD_DIM])
            v = qkv[r0:r0 + seq_len, 2 * HIDDEN + lo:2 * HIDDEN + lo + HEAD_DIM]
            scores = lax.dot_general(
                q.astype(jnp.bfloat16), k.astype(jnp.bfloat16),
                (((1,), (1,)), ((), ())),
                preferred_element_type=jnp.float32) * scale       # (S, S)
            scores = jnp.where(causal, scores, -1e30)   # finite mask, no NaN risk
            m = jnp.max(scores, axis=-1, keepdims=True)
            p = jnp.exp(scores - m)
            p = p / jnp.sum(p, axis=-1, keepdims=True)  # exact divide (accuracy)
            ctx_s[r0:r0 + seq_len, lo:lo + HEAD_DIM] = jnp.dot(
                p.astype(jnp.bfloat16), v.astype(jnp.bfloat16),
                preferred_element_type=jnp.float32)

    h = h + jnp.dot(ctx_s[...].astype(jnp.bfloat16), wo_ref[0],
                    preferred_element_type=jnp.float32)

    # ---- SwiGLU MLP block ----
    xn2 = _rms(h, ln2_ref[0])
    gu = jnp.dot(xn2.astype(jnp.bfloat16), wgu_ref[0],
                 preferred_element_type=jnp.float32)     # (B*S, 2*F), one matmul
    g = gu[:, :INTERMEDIATE]
    u = gu[:, INTERMEDIATE:]
    act = (g * jax.nn.sigmoid(g)) * u
    h = h + jnp.dot(act.astype(jnp.bfloat16), wdn_ref[0],
                    preferred_element_type=jnp.float32)

    o_ref[...] = h


def backbone_layers(params, ids, cos, sin):
    """All decoder layers (and the embedding) in ONE pallas_call."""
    BS = ids.shape[0]
    S = cos.shape[0]
    D = HIDDEN
    F = INTERMEDIATE
    assert BS % BATCH_BLOCKS == 0 and (BS // BATCH_BLOCKS) % S == 0
    bs_blk = BS // BATCH_BLOCKS
    kernel = functools.partial(_backbone_kernel, seq_len=S, n_batch=bs_blk // S)
    return pl.pallas_call(
        kernel,
        out_shape=jax.ShapeDtypeStruct((BS, D), jnp.float32),
        grid=(BATCH_BLOCKS, N_LAYERS),
        in_specs=[
            pl.BlockSpec((bs_blk, 1), lambda p, l: (p, 0)),            # token ids
            pl.BlockSpec((VOCAB, D), lambda p, l: (0, 0)),             # embed table
            pl.BlockSpec((1, 1, D), lambda p, l: (l, 0, 0)),           # ln1 (per layer)
            pl.BlockSpec((1, D, 3 * D), lambda p, l: (l, 0, 0)),       # wq|wk|wv
            pl.BlockSpec((1, D, D), lambda p, l: (l, 0, 0)),           # wo
            pl.BlockSpec((1, 1, D), lambda p, l: (l, 0, 0)),           # ln2
            pl.BlockSpec((1, D, 2 * F), lambda p, l: (l, 0, 0)),       # w_gate|w_up
            pl.BlockSpec((1, F, D), lambda p, l: (l, 0, 0)),           # w_down
            pl.BlockSpec((S, HEAD_DIM), lambda p, l: (0, 0)),          # cos
            pl.BlockSpec((S, HEAD_DIM), lambda p, l: (0, 0)),          # sin
        ],
        out_specs=pl.BlockSpec((bs_blk, D), lambda p, l: (p, 0)),
        scratch_shapes=[pltpu.VMEM((bs_blk, D), jnp.float32)],          # attn context
        compiler_params=pltpu.CompilerParams(
            dimension_semantics=("parallel", "arbitrary"),
            vmem_limit_bytes=_VMEM_LIMIT),
        # TODO(synk): at real Mistral dims the whole-matrix weight BlockSpecs
        # must be K/N-tiled with another grid axis (they would not fit VMEM).
    )(ids, params["embed"], params["ln1"], params["wqkv"], params["wo"],
      params["ln2"], params["w_gate_up"], params["w_down"], cos, sin)


# ---------------- fused final-norm + LM head + cross-entropy kernel ----------------
def _head_kernel(h_ref, wn_ref, whead_ref, tgt_ref, logits_ref, nll_ref,
                 hn_s, m_s, l_s, pick_s):
    v = pl.program_id(0)
    nv = pl.num_programs(0)

    @pl.when(v == 0)
    def _():
        # Normalized hidden cached once as bf16 (reused as matmul LHS directly).
        hn_s[...] = _rms(h_ref[...], wn_ref[...]).astype(jnp.bfloat16)
        m_s[...] = jnp.full(m_s.shape, -1e30, jnp.float32)
        l_s[...] = jnp.zeros(l_s.shape, jnp.float32)
        pick_s[...] = jnp.zeros(pick_s.shape, jnp.float32)

    logits = jnp.dot(hn_s[...], whead_ref[...],
                     preferred_element_type=jnp.float32)  # (B*S, V_TILE)
    logits_ref[...] = logits                              # module returns logits.float()

    # online logsumexp over streamed vocab tiles
    m_new = jnp.maximum(m_s[...], jnp.max(logits, axis=-1, keepdims=True))
    l_s[...] = (l_s[...] * jnp.exp(m_s[...] - m_new)
                + jnp.sum(jnp.exp(logits - m_new), axis=-1, keepdims=True))
    m_s[...] = m_new

    # logit at the target column (exactly one vocab tile contributes per row)
    col = lax.broadcasted_iota(jnp.int32, logits.shape, 1) + v * V_TILE
    pick_s[...] += jnp.sum(jnp.where(col == tgt_ref[...], logits, 0.0),
                           axis=-1, keepdims=True)

    @pl.when(v == nv - 1)
    def _():
        nll_ref[...] = (m_s[...] + jnp.log(l_s[...])) - pick_s[...]


def lm_head_and_nll(h2d, w_norm, w_head, targets2d):
    BS, D = h2d.shape
    V = w_head.shape[1]
    assert V % V_TILE == 0
    logits, nll = pl.pallas_call(
        _head_kernel,
        out_shape=(jax.ShapeDtypeStruct((BS, V), jnp.float32),
                   jax.ShapeDtypeStruct((BS, 1), jnp.float32)),
        grid=(V // V_TILE,),
        in_specs=[
            pl.BlockSpec((BS, D), lambda v: (0, 0)),
            pl.BlockSpec((1, D), lambda v: (0, 0)),
            pl.BlockSpec((D, V_TILE), lambda v: (0, v)),
            pl.BlockSpec((BS, 1), lambda v: (0, 0)),
        ],
        out_specs=(pl.BlockSpec((BS, V_TILE), lambda v: (0, v)),
                   pl.BlockSpec((BS, 1), lambda v: (0, 0))),
        scratch_shapes=[pltpu.VMEM((BS, D), jnp.bfloat16),   # normalized hidden (bf16)
                        pltpu.VMEM((BS, 1), jnp.float32),    # running max
                        pltpu.VMEM((BS, 1), jnp.float32),    # running sum
                        pltpu.VMEM((BS, 1), jnp.float32)],   # picked logit
        compiler_params=pltpu.CompilerParams(
            dimension_semantics=("arbitrary",),
            vmem_limit_bytes=_VMEM_LIMIT),
    )(h2d, w_norm.reshape(1, D), w_head, targets2d)
    return logits, nll[:, 0]


# ---------------- parameters (deterministic, synthetic; weights in bf16) ----------------
def init_params(key):
    keys = jax.random.split(key, 6)

    def w(k, shape, scale=0.02, dtype=jnp.bfloat16):
        return (jax.random.normal(k, shape, jnp.float32) * scale).astype(dtype)

    return {
        "embed": w(keys[0], (VOCAB, HIDDEN)),                               # bf16
        "ln1": jnp.ones((N_LAYERS, 1, HIDDEN), jnp.float32),
        "ln2": jnp.ones((N_LAYERS, 1, HIDDEN), jnp.float32),
        "wqkv": w(keys[1], (N_LAYERS, HIDDEN, 3 * HIDDEN)),                 # fused wq|wk|wv
        "wo": w(keys[2], (N_LAYERS, HIDDEN, HIDDEN)),
        "w_gate_up": w(keys[3], (N_LAYERS, HIDDEN, 2 * INTERMEDIATE)),      # fused gate|up
        "w_down": w(keys[4], (N_LAYERS, INTERMEDIATE, HIDDEN)),
        "final_norm": jnp.ones((HIDDEN,), jnp.float32),
        "lm_head": w(keys[5], (HIDDEN, VOCAB)),
    }


def rope_cos_sin(S, Dh):
    inv_freq = 1.0 / (ROPE_THETA ** (jnp.arange(0, Dh, 2, dtype=jnp.float32) / Dh))
    t = jnp.arange(S, dtype=jnp.float32)
    freqs = jnp.outer(t, inv_freq)                            # (S, Dh/2)
    emb = jnp.concatenate([freqs, freqs], axis=-1)            # (S, Dh)
    return jnp.cos(emb), jnp.sin(emb)


# ---------------- MistralBackbone.forward equivalent ----------------
def mistral_backbone_forward(params, input_ids, ft_labels=None):
    B, S = input_ids.shape
    BS = B * S
    cos, sin = rope_cos_sin(S, HEAD_DIM)
    ids = input_ids.reshape(BS, 1).astype(jnp.int32)

    # Embedding + all decoder layers in ONE pallas_call (residual stays in VMEM).
    h2d = backbone_layers(params, ids, cos, sin)              # (B*S, D) f32

    if ft_labels is None:
        # Pretraining branch: next-token targets.
        # TODO(synk): the reference passes input_ids.flatten() (B*S labels) against
        # B*(S-1) shifted logit rows, which is shape-inconsistent; we use standard
        # shifted targets input_ids[:, 1:], averaging over B*(S-1) valid tokens.
        targets = jnp.pad(input_ids[:, 1:], ((0, 0), (0, 1)))
        valid = jnp.concatenate([jnp.ones((B, S - 1), jnp.float32),
                                 jnp.zeros((B, 1), jnp.float32)], axis=1)
    else:
        # TODO(synk): no ignore-index (-100) handling on the ft_labels path.
        targets = ft_labels.reshape(B, S).astype(jnp.int32)
        valid = jnp.ones((B, S), jnp.float32)

    # Fused final RMSNorm + LM head + per-token NLL (vocab streamed in-kernel).
    logits2d, nll = lm_head_and_nll(h2d, params["final_norm"], params["lm_head"],
                                    targets.reshape(BS, 1).astype(jnp.int32))
    logits = logits2d.reshape(B, S, VOCAB)
    nll = nll.reshape(B, S)
    # Tiny (B*S)-element masked mean kept as scalar glue.
    loss = jnp.sum(nll * valid) / jnp.sum(valid)

    # TODO(synk): past_key_values / hidden_states / attentions bookkeeping not modeled.
    return dict(loss=loss, logits=logits, past_key_values=None,
                hidden_states=None, attentions=None)


if __name__ == "__main__":
    key = jax.random.PRNGKey(0)
    pkey, dkey = jax.random.split(key)
    params = init_params(pkey)

    B, S = 2, 16
    input_ids = jax.random.randint(dkey, (B, S), 0, VOCAB, dtype=jnp.int32)

    fwd = jax.jit(functools.partial(mistral_backbone_forward, params))
    out = fwd(input_ids)
    jax.block_until_ready(out["logits"])
    jax.block_until_ready(out["loss"])

    assert out["logits"].shape == (B, S, VOCAB)
    assert out["logits"].dtype == jnp.float32
    assert bool(jnp.isfinite(out["loss"]))
    print("KERNEL_OK")
</pallas_src>

<mosaic_0001>
module attributes {stable_mosaic.version = 11 : i64} {
  func.func @_head_kernel(%arg0: i32, %arg1: memref<32x256xf32, #tpu.memory_space<vmem>>, %arg2: memref<1x256xf32, #tpu.memory_space<vmem>>, %arg3: memref<256x256xbf16, #tpu.memory_space<vmem>>, %arg4: memref<32x1xi32, #tpu.memory_space<vmem>>, %arg5: memref<32x256xf32, #tpu.memory_space<vmem>>, %arg6: memref<32x1xf32, #tpu.memory_space<vmem>>, %arg7: memref<32x256xbf16, #tpu.memory_space<vmem>>, %arg8: memref<32x1xf32, #tpu.memory_space<vmem>>, %arg9: memref<32x1xf32, #tpu.memory_space<vmem>>, %arg10: memref<32x1xf32, #tpu.memory_space<vmem>>) attributes {dimension_semantics = [#tpu.dimension_semantics<arbitrary>], iteration_bounds = array<i64: 1>, scalar_prefetch = 0 : i64, scratch_operands = 4 : i64, tpu.core_type = #tpu.core_type<tc>, window_params = [{pipeline_mode = #tpu.pipeline_mode<synchronous>, transform_indices = @transform_0, window_bounds = array<i64: 32, 256>}, {pipeline_mode = #tpu.pipeline_mode<synchronous>, transform_indices = @transform_1, window_bounds = array<i64: 1, 256>}, {transform_indices = @transform_2, window_bounds = array<i64: 256, 256>}, {pipeline_mode = #tpu.pipeline_mode<synchronous>, transform_indices = @transform_3, window_bounds = array<i64: 32, 1>}, {transform_indices = @transform_4, window_bounds = array<i64: 32, 256>}, {pipeline_mode = #tpu.pipeline_mode<synchronous>, transform_indices = @transform_5, window_bounds = array<i64: 32, 1>}]} {
    %c0_i32 = arith.constant 0 : i32
    %0 = arith.cmpi eq, %arg0, %c0_i32 : i32
    %1 = arith.extui %0 : i1 to i32
    %c0_i32_0 = arith.constant 0 : i32
    %2 = arith.cmpi ne, %1, %c0_i32_0 : i32
    scf.if %2 {
      %c0_28 = arith.constant 0 : index
      %c0_29 = arith.constant 0 : index
      %41 = vector.load %arg1[%c0_28, %c0_29] : memref<32x256xf32, #tpu.memory_space<vmem>>, vector<32x256xf32>
      %c0_30 = arith.constant 0 : index
      %c0_31 = arith.constant 0 : index
      %42 = vector.load %arg2[%c0_30, %c0_31] : memref<1x256xf32, #tpu.memory_space<vmem>>, vector<1x256xf32>
      %43 = arith.mulf %41, %41 : vector<32x256xf32>
      %cst_32 = arith.constant dense<0.000000e+00> : vector<32xf32>
      %44 = vector.multi_reduction <add>, %43, %cst_32 [1] : vector<32x256xf32> to vector<32xf32>
      %45 = vector.shape_cast %44 : vector<32xf32> to vector<32x1xf32>
      %cst_33 = arith.constant 2.560000e+02 : f32
      %46 = vector.broadcast %cst_33 : f32 to vector<32x1xf32>
      %47 = arith.divf %45, %46 : vector<32x1xf32>
      %cst_34 = arith.constant 9.99999997E-7 : f32
      %48 = vector.broadcast %cst_34 : f32 to vector<32x1xf32>
      %49 = arith.addf %47, %48 : vector<32x1xf32>
      %50 = math.rsqrt %49 : vector<32x1xf32>
      %51 = vector.broadcast %50 : vector<32x1xf32> to vector<32x256xf32>
      %52 = arith.mulf %41, %51 : vector<32x256xf32>
      %53 = vector.broadcast %42 : vector<1x256xf32> to vector<32x256xf32>
      %54 = arith.mulf %52, %53 : vector<32x256xf32>
      %55 = arith.truncf %54 : vector<32x256xf32> to vector<32x256xbf16>
      %c0_35 = arith.constant 0 : index
      %c0_36 = arith.constant 0 : index
      %56 = vector.load %arg7[%c0_35, %c0_36] : memref<32x256xbf16, #tpu.memory_space<vmem>>, vector<32x256xbf16>
      tpu.vector_store %arg7[%c0_35, %c0_36], %55 {strides = array<i32>} : memref<32x256xbf16, #tpu.memory_space<vmem>>, vector<32x256xbf16>,
      %cst_37 = arith.constant -1.000000e+30 : f32
      %57 = vector.broadcast %cst_37 : f32 to vector<32x1xf32>
      %c0_38 = arith.constant 0 : index
      %c0_39 = arith.constant 0 : index
      %58 = vector.load %arg8[%c0_38, %c0_39] : memref<32x1xf32, #tpu.memory_space<vmem>>, vector<32x1xf32>
      tpu.vector_store %arg8[%c0_38, %c0_39], %57 {strides = array<i32>} : memref<32x1xf32, #tpu.memory_space<vmem>>, vector<32x1xf32>,
      %cst_40 = arith.constant 0.000000e+00 : f32
      %59 = vector.broadcast %cst_40 : f32 to vector<32x1xf32>
      %c0_41 = arith.constant 0 : index
      %c0_42 = arith.constant 0 : index
      %60 = vector.load %arg9[%c0_41, %c0_42] : memref<32x1xf32, #tpu.memory_space<vmem>>, vector<32x1xf32>
      tpu.vector_store %arg9[%c0_41, %c0_42], %59 {strides = array<i32>} : memref<32x1xf32, #tpu.memory_space<vmem>>, vector<32x1xf32>,
      %cst_43 = arith.constant 0.000000e+00 : f32
      %61 = vector.broadcast %cst_43 : f32 to vector<32x1xf32>
      %c0_44 = arith.constant 0 : index
      %c0_45 = arith.constant 0 : index
      %62 = vector.load %arg10[%c0_44, %c0_45] : memref<32x1xf32, #tpu.memory_space<vmem>>, vector<32x1xf32>
      tpu.vector_store %arg10[%c0_44, %c0_45], %61 {strides = array<i32>} : memref<32x1xf32, #tpu.memory_space<vmem>>, vector<32x1xf32>,
    } else {
    }
    %c0 = arith.constant 0 : index
    %c0_1 = arith.constant 0 : index
    %3 = vector.load %arg7[%c0, %c0_1] : memref<32x256xbf16, #tpu.memory_space<vmem>>, vector<32x256xbf16>
    %c0_2 = arith.constant 0 : index
    %c0_3 = arith.constant 0 : index
    %4 = vector.load %arg3[%c0_2, %c0_3] : memref<256x256xbf16, #tpu.memory_space<vmem>>, vector<256x256xbf16>
    %cst = arith.constant dense<0.000000e+00> : vector<32x256xf32>
    %5 = tpu.matmul %3, %4, %cst {dimension_numbers = #tpu.dot_dimension_numbers<[1], [0], [0], [1], [0, 0, 1, 1], [], []>} : vector<32x256xbf16>, vector<256x256xbf16>, vector<32x256xf32> -> vector<32x256xf32>
    %c0_4 = arith.constant 0 : index
    %c0_5 = arith.constant 0 : index
    %6 = vector.load %arg5[%c0_4, %c0_5] : memref<32x256xf32, #tpu.memory_space<vmem>>, vector<32x256xf32>
    tpu.vector_store %arg5[%c0_4, %c0_5], %5 {strides = array<i32>} : memref<32x256xf32, #tpu.memory_space<vmem>>, vector<32x256xf32>,
    %c0_6 = arith.constant 0 : index
    %c0_7 = arith.constant 0 : index
    %7 = vector.load %arg8[%c0_6, %c0_7] : memref<32x1xf32, #tpu.memory_space<vmem>>, vector<32x1xf32>
    %cst_8 = arith.constant dense<0xFF800000> : vector<32xf32>
    %8 = vector.multi_reduction <maximumf>, %5, %cst_8 [1] : vector<32x256xf32> to vector<32xf32>
    %9 = vector.shape_cast %8 : vector<32xf32> to vector<32x1xf32>
    %10 = arith.maximumf %7, %9 : vector<32x1xf32>
    %c0_9 = arith.constant 0 : index
    %c0_10 = arith.constant 0 : index
    %11 = vector.load %arg9[%c0_9, %c0_10] : memref<32x1xf32, #tpu.memory_space<vmem>>, vector<32x1xf32>
    %c0_11 = arith.constant 0 : index
    %c0_12 = arith.constant 0 : index
    %12 = vector.load %arg8[%c0_11, %c0_12] : memref<32x1xf32, #tpu.memory_space<vmem>>, vector<32x1xf32>
    %13 = arith.subf %12, %10 : vector<32x1xf32>
    %14 = math.exp %13 : vector<32x1xf32>
    %15 = arith.mulf %11, %14 : vector<32x1xf32>
    %16 = vector.broadcast %10 : vector<32x1xf32> to vector<32x256xf32>
    %17 = arith.subf %5, %16 : vector<32x256xf32>
    %18 = math.exp %17 : vector<32x256xf32>
    %cst_13 = arith.constant dense<0.000000e+00> : vector<32xf32>
    %19 = vector.multi_reduction <add>, %18, %cst_13 [1] : vector<32x256xf32> to vector<32xf32>
    %20 = vector.shape_cast %19 : vector<32xf32> to vector<32x1xf32>
    %21 = arith.addf %15, %20 : vector<32x1xf32>
    %c0_14 = arith.constant 0 : index
    %c0_15 = arith.constant 0 : index
    %22 = vector.load %arg9[%c0_14, %c0_15] : memref<32x1xf32, #tpu.memory_space<vmem>>, vector<32x1xf32>
    tpu.vector_store %arg9[%c0_14, %c0_15], %21 {strides = array<i32>} : memref<32x1xf32, #tpu.memory_space<vmem>>, vector<32x1xf32>,
    %c0_16 = arith.constant 0 : index
    %c0_17 = arith.constant 0 : index
    %23 = vector.load %arg8[%c0_16, %c0_17] : memref<32x1xf32, #tpu.memory_space<vmem>>, vector<32x1xf32>
    tpu.vector_store %arg8[%c0_16, %c0_17], %10 {strides = array<i32>} : memref<32x1xf32, #tpu.memory_space<vmem>>, vector<32x1xf32>,
    %24 = tpu.iota {dimensions = array<i32: 1>} : vector<32x256xi32>
    %c256_i32 = arith.constant 256 : i32
    %25 = arith.muli %arg0, %c256_i32 : i32
    %26 = vector.broadcast %25 : i32 to vector<32x256xi32>
    %27 = arith.addi %24, %26 : vector<32x256xi32>
    %c0_18 = arith.constant 0 : index
    %c0_19 = arith.constant 0 : index
    %28 = vector.load %arg10[%c0_18, %c0_19] : memref<32x1xf32, #tpu.memory_space<vmem>>, vector<32x1xf32>
    %c0_20 = arith.constant 0 : index
    %c0_21 = arith.constant 0 : index
    %29 = vector.load %arg4[%c0_20, %c0_21] : memref<32x1xi32, #tpu.memory_space<vmem>>, vector<32x1xi32>
    %30 = vector.broadcast %29 : vector<32x1xi32> to vector<32x256xi32>
    %31 = arith.cmpi eq, %27, %30 : vector<32x256xi32>
    %cst_22 = arith.constant 0.000000e+00 : f32
    %32 = vector.broadcast %cst_22 : f32 to vector<32x256xf32>
    %33 = arith.select %31, %5, %32 : vector<32x256xi1>, vector<32x256xf32>
    %cst_23 = arith.constant dense<0.000000e+00> : vector<32xf32>
    %34 = vector.multi_reduction <add>, %33, %cst_23 [1] : vector<32x256xf32> to vector<32xf32>
    %35 = vector.shape_cast %34 : vector<32xf32> to vector<32x1xf32>
    %36 = arith.addf %28, %35 : vector<32x1xf32>
    %c0_24 = arith.constant 0 : index
    %c0_25 = arith.constant 0 : index
    %37 = vector.load %arg10[%c0_24, %c0_25] : memref<32x1xf32, #tpu.memory_space<vmem>>, vector<32x1xf32>
    tpu.vector_store %arg10[%c0_24, %c0_25], %36 {strides = array<i32>} : memref<32x1xf32, #tpu.memory_space<vmem>>, vector<32x1xf32>,
    %c0_i32_26 = arith.constant 0 : i32
    %38 = arith.cmpi eq, %arg0, %c0_i32_26 : i32
    %39 = arith.extui %38 : i1 to i32
    %c0_i32_27 = arith.constant 0 : i32
    %40 = arith.cmpi ne, %39, %c0_i32_27 : i32
    scf.if %40 {
      %c0_28 = arith.constant 0 : index
      %c0_29 = arith.constant 0 : index
      %41 = vector.load %arg8[%c0_28, %c0_29] : memref<32x1xf32, #tpu.memory_space<vmem>>, vector<32x1xf32>
      %c0_30 = arith.constant 0 : index
      %c0_31 = arith.constant 0 : index
      %42 = vector.load %arg9[%c0_30, %c0_31] : memref<32x1xf32, #tpu.memory_space<vmem>>, vector<32x1xf32>
      %43 = math.log %42 : vector<32x1xf32>
      %44 = arith.addf %41, %43 : vector<32x1xf32>
      %c0_32 = arith.constant 0 : index
      %c0_33 = arith.constant 0 : index
      %45 = vector.load %arg10[%c0_32, %c0_33] : memref<32x1xf32, #tpu.memory_space<vmem>>, vector<32x1xf32>
      %46 = arith.subf %44, %45 : vector<32x1xf32>
      %c0_34 = arith.constant 0 : index
      %c0_35 = arith.constant 0 : index
      %47 = vector.load %arg6[%c0_34, %c0_35] : memref<32x1xf32, #tpu.memory_space<vmem>>, vector<32x1xf32>
      tpu.vector_store %arg6[%c0_34, %c0_35], %46 {strides = array<i32>} : memref<32x1xf32, #tpu.memory_space<vmem>>, vector<32x1xf32>,
    } else {
    }
    return
  }
  func.func @transform_0(%arg0: i32) -> (i32, i32) {
    %c0_i32 = arith.constant 0 : i32
    %c0_i32_0 = arith.constant 0 : i32
    %c0_i32_1 = arith.constant 0 : i32
    return %c0_i32, %c0_i32_0 : i32, i32
  }
  func.func @transform_1(%arg0: i32) -> (i32, i32) {
    %c0_i32 = arith.constant 0 : i32
    %c0_i32_0 = arith.constant 0 : i32
    %c0_i32_1 = arith.constant 0 : i32
    return %c0_i32, %c0_i32_0 : i32, i32
  }
  func.func @transform_2(%arg0: i32) -> (i32, i32) {
    %c0_i32 = arith.constant 0 : i32
    %c0_i32_0 = arith.constant 0 : i32
    return %c0_i32, %arg0 : i32, i32
  }
  func.func @transform_3(%arg0: i32) -> (i32, i32) {
    %c0_i32 = arith.constant 0 : i32
    %c0_i32_0 = arith.constant 0 : i32
    %c0_i32_1 = arith.constant 0 : i32
    return %c0_i32, %c0_i32_0 : i32, i32
  }
  func.func @transform_4(%arg0: i32) -> (i32, i32) {
    %c0_i32 = arith.constant 0 : i32
    %c0_i32_0 = arith.constant 0 : i32
    return %c0_i32, %arg0 : i32, i32
  }
  func.func @transform_5(%arg0: i32) -> (i32, i32) {
    %c0_i32 = arith.constant 0 : i32
    %c0_i32_0 = arith.constant 0 : i32
    %c0_i32_1 = arith.constant 0 : i32
    return %c0_i32, %c0_i32_0 : i32, i32
  }
}

module attributes {stable_mosaic.version = 11 : i64} {
  func.func @_backbone_kernel(%arg0: i32, %arg1: i32, %arg2: memref<32x1xi32, #tpu.memory_space<vmem>>, %arg3: memref<256x256xbf16, #tpu.memory_space<vmem>>, %arg4: memref<1x1x256xf32, #tpu.memory_space<vmem>>, %arg5: memref<1x256x768xbf16, #tpu.memory_space<vmem>>, %arg6: memref<1x256x256xbf16, #tpu.memory_space<vmem>>, %arg7: memref<1x1x256xf32, #tpu.memory_space<vmem>>, %arg8: memref<1x256x1024xbf16, #tpu.memory_space<vmem>>, %arg9: memref<1x512x256xbf16, #tpu.memory_space<vmem>>, %arg10: memref<16x128xf32, #tpu.memory_space<vmem>>, %arg11: memref<16x128xf32, #tpu.memory_space<vmem>>, %arg12: memref<32x256xf32, #tpu.memory_space<vmem>>, %arg13: memref<32x256xf32, #tpu.memory_space<vmem>>) attributes {dimension_semantics = [#tpu.dimension_semantics<parallel>, #tpu.dimension_semantics<arbitrary>], iteration_bounds = array<i64: 1, 2>, scalar_prefetch = 0 : i64, scratch_operands = 1 : i64, tpu.core_type = #tpu.core_type<tc>, window_params = [{transform_indices = @transform_0, window_bounds = array<i64: 32, 1>}, {pipeline_mode = #tpu.pipeline_mode<synchronous>, transform_indices = @transform_1, window_bounds = array<i64: 256, 256>}, {transform_indices = @transform_2, window_bounds = array<i64: 1, 1, 256>}, {transform_indices = @transform_3, window_bounds = array<i64: 1, 256, 768>}, {transform_indices = @transform_4, window_bounds = array<i64: 1, 256, 256>}, {transform_indices = @transform_5, window_bounds = array<i64: 1, 1, 256>}, {transform_indices = @transform_6, window_bounds = array<i64: 1, 256, 1024>}, {transform_indices = @transform_7, window_bounds = array<i64: 1, 512, 256>}, {pipeline_mode = #tpu.pipeline_mode<synchronous>, transform_indices = @transform_8, window_bounds = array<i64: 16, 128>}, {pipeline_mode = #tpu.pipeline_mode<synchronous>, transform_indices = @transform_9, window_bounds = array<i64: 16, 128>}, {transform_indices = @transform_10, window_bounds = array<i64: 32, 256>}]} {
    %c0_i32 = arith.constant 0 : i32
    %0 = arith.cmpi eq, %arg1, %c0_i32 : i32
    %1 = arith.extui %0 : i1 to i32
    %c0_i32_0 = arith.constant 0 : i32
    %2 = arith.cmpi ne, %1, %c0_i32_0 : i32
    scf.if %2 {
      %222 = tpu.iota {dimensions = array<i32: 1>} : vector<32x256xi32>
      %c0_76 = arith.constant 0 : index
      %c0_77 = arith.constant 0 : index
      %223 = vector.load %arg2[%c0_76, %c0_77] : memref<32x1xi32, #tpu.memory_space<vmem>>, vector<32x1xi32>
      %224 = vector.broadcast %223 : vector<32x1xi32> to vector<32x256xi32>
      %225 = arith.cmpi eq, %222, %224 : vector<32x256xi32>
      %226 = arith.extui %225 : vector<32x256xi1> to vector<32x256xi32>
      %227 = arith.sitofp %226 : vector<32x256xi32> to vector<32x256xf32>
      %228 = arith.truncf %227 : vector<32x256xf32> to vector<32x256xbf16>
      %c0_78 = arith.constant 0 : index
      %c0_79 = arith.constant 0 : index
      %229 = vector.load %arg3[%c0_78, %c0_79] : memref<256x256xbf16, #tpu.memory_space<vmem>>, vector<256x256xbf16>
      %cst_80 = arith.constant dense<0.000000e+00> : vector<32x256xf32>
      %230 = tpu.matmul %228, %229, %cst_80 {dimension_numbers = #tpu.dot_dimension_numbers<[1], [0], [0], [1], [0, 0, 1, 1], [], []>} : vector<32x256xbf16>, vector<256x256xbf16>, vector<32x256xf32> -> vector<32x256xf32>
      %c0_81 = arith.constant 0 : index
      %c0_82 = arith.constant 0 : index
      %231 = vector.load %arg12[%c0_81, %c0_82] : memref<32x256xf32, #tpu.memory_space<vmem>>, vector<32x256xf32>
      tpu.vector_store %arg12[%c0_81, %c0_82], %230 {strides = array<i32>} : memref<32x256xf32, #tpu.memory_space<vmem>>, vector<32x256xf32>,
    } else {
    }
    %c0 = arith.constant 0 : index
    %c0_1 = arith.constant 0 : index
    %3 = vector.load %arg12[%c0, %c0_1] : memref<32x256xf32, #tpu.memory_space<vmem>>, vector<32x256xf32>
    %c0_2 = arith.constant 0 : index
    %c0_3 = arith.constant 0 : index
    %4 = vector.load %arg10[%c0_2, %c0_3] : memref<16x128xf32, #tpu.memory_space<vmem>>, vector<16x128xf32>
    %c0_4 = arith.constant 0 : index
    %c0_5 = arith.constant 0 : index
    %5 = vector.load %arg11[%c0_4, %c0_5] : memref<16x128xf32, #tpu.memory_space<vmem>>, vector<16x128xf32>
    %c0_6 = arith.constant 0 : index
    %c0_7 = arith.constant 0 : index
    %c0_8 = arith.constant 0 : index
    %6 = vector.load %arg4[%c0_6, %c0_7, %c0_8] : memref<1x1x256xf32, #tpu.memory_space<vmem>>, vector<1x1x256xf32>
    %7 = vector.shape_cast %6 : vector<1x1x256xf32> to vector<1x256xf32>
    %8 = arith.mulf %3, %3 : vector<32x256xf32>
    %cst = arith.constant dense<0.000000e+00> : vector<32xf32>
    %9 = vector.multi_reduction <add>, %8, %cst [1] : vector<32x256xf32> to vector<32xf32>
    %10 = vector.shape_cast %9 : vector<32xf32> to vector<32x1xf32>
    %cst_9 = arith.constant 2.560000e+02 : f32
    %11 = vector.broadcast %cst_9 : f32 to vector<32x1xf32>
    %12 = arith.divf %10, %11 : vector<32x1xf32>
    %cst_10 = arith.constant 9.99999997E-7 : f32
    %13 = vector.broadcast %cst_10 : f32 to vector<32x1xf32>
    %14 = arith.addf %12, %13 : vector<32x1xf32>
    %15 = math.rsqrt %14 : vector<32x1xf32>
    %16 = vector.broadcast %15 : vector<32x1xf32> to vector<32x256xf32>
    %17 = arith.mulf %3, %16 : vector<32x256xf32>
    %18 = vector.broadcast %7 : vector<1x256xf32> to vector<32x256xf32>
    %19 = arith.mulf %17, %18 : vector<32x256xf32>
    %20 = arith.truncf %19 : vector<32x256xf32> to vector<32x256xbf16>
    %c0_11 = arith.constant 0 : index
    %c0_12 = arith.constant 0 : index
    %c0_13 = arith.constant 0 : index
    %21 = vector.load %arg5[%c0_11, %c0_12, %c0_13] : memref<1x256x768xbf16, #tpu.memory_space<vmem>>, vector<1x256x768xbf16>
    %22 = vector.shape_cast %21 : vector<1x256x768xbf16> to vector<256x768xbf16>
    %cst_14 = arith.constant dense<0.000000e+00> : vector<32x768xf32>
    %23 = tpu.matmul %20, %22, %cst_14 {dimension_numbers = #tpu.dot_dimension_numbers<[1], [0], [0], [1], [0, 0, 1, 1], [], []>} : vector<32x256xbf16>, vector<256x768xbf16>, vector<32x768xf32> -> vector<32x768xf32>
    %24 = tpu.iota {dimensions = array<i32: 0>} : vector<16x16xi32>
    %25 = tpu.iota {dimensions = array<i32: 1>} : vector<16x16xi32>
    %26 = arith.cmpi sle, %25, %24 : vector<16x16xi32>
    %27 = vector.extract_strided_slice %23 {offsets = [0, 0], sizes = [16, 128], strides = [1, 1]} : vector<32x768xf32> to vector<16x128xf32>
    %28 = vector.extract_strided_slice %27 {offsets = [0, 0], sizes = [16, 64], strides = [1, 1]} : vector<16x128xf32> to vector<16x64xf32>
    %29 = vector.extract_strided_slice %27 {offsets = [0, 64], sizes = [16, 64], strides = [1, 1]} : vector<16x128xf32> to vector<16x64xf32>
    %30 = arith.mulf %27, %4 : vector<16x128xf32>
    %cst_15 = arith.constant 0.000000e+00 : f32
    %31 = vector.broadcast %cst_15 : f32 to vector<16x64xf32>
    %32 = arith.subf %31, %29 : vector<16x64xf32>
    %33 = tpu.concatenate %32, %28 in 1 : vector<16x64xf32>, vector<16x64xf32> -> vector<16x128xf32>
    %34 = arith.mulf %33, %5 : vector<16x128xf32>
    %35 = arith.addf %30, %34 : vector<16x128xf32>
    %36 = vector.extract_strided_slice %23 {offsets = [0, 256], sizes = [16, 128], strides = [1, 1]} : vector<32x768xf32> to vector<16x128xf32>
    %37 = vector.extract_strided_slice %36 {offsets = [0, 0], sizes = [16, 64], strides = [1, 1]} : vector<16x128xf32> to vector<16x64xf32>
    %38 = vector.extract_strided_slice %36 {offsets = [0, 64], sizes = [16, 64], strides = [1, 1]} : vector<16x128xf32> to vector<16x64xf32>
    %39 = arith.mulf %36, %4 : vector<16x128xf32>
    %cst_16 = arith.constant 0.000000e+00 : f32
    %40 = vector.broadcast %cst_16 : f32 to vector<16x64xf32>
    %41 = arith.subf %40, %38 : vector<16x64xf32>
    %42 = tpu.concatenate %41, %37 in 1 : vector<16x64xf32>, vector<16x64xf32> -> vector<16x128xf32>
    %43 = arith.mulf %42, %5 : vector<16x128xf32>
    %44 = arith.addf %39, %43 : vector<16x128xf32>
    %45 = vector.extract_strided_slice %23 {offsets = [0, 512], sizes = [16, 128], strides = [1, 1]} : vector<32x768xf32> to vector<16x128xf32>
    %46 = arith.truncf %35 : vector<16x128xf32> to vector<16x128xbf16>
    %47 = arith.truncf %44 : vector<16x128xf32> to vector<16x128xbf16>
    %cst_17 = arith.constant dense<0.000000e+00> : vector<16x16xf32>
    %48 = tpu.matmul %46, %47, %cst_17 {dimension_numbers = #tpu.dot_dimension_numbers<[1], [1], [0], [0], [0, 0, 1, 0], [], []>} : vector<16x128xbf16>, vector<16x128xbf16>, vector<16x16xf32> -> vector<16x16xf32>
    %cst_18 = arith.constant 0.0883883461 : f32
    %49 = vector.broadcast %cst_18 : f32 to vector<16x16xf32>
    %50 = arith.mulf %48, %49 : vector<16x16xf32>
    %cst_19 = arith.constant -1.000000e+30 : f32
    %51 = vector.broadcast %cst_19 : f32 to vector<16x16xf32>
    %52 = arith.select %26, %50, %51 : vector<16x16xi1>, vector<16x16xf32>
    %cst_20 = arith.constant dense<0xFF800000> : vector<16xf32>
    %53 = vector.multi_reduction <maximumf>, %52, %cst_20 [1] : vector<16x16xf32> to vector<16xf32>
    %54 = vector.shape_cast %53 : vector<16xf32> to vector<16x1xf32>
    %55 = vector.broadcast %54 : vector<16x1xf32> to vector<16x16xf32>
    %56 = arith.subf %52, %55 : vector<16x16xf32>
    %57 = math.exp %56 : vector<16x16xf32>
    %cst_21 = arith.constant dense<0.000000e+00> : vector<16xf32>
    %58 = vector.multi_reduction <add>, %57, %cst_21 [1] : vector<16x16xf32> to vector<16xf32>
    %59 = vector.shape_cast %58 : vector<16xf32> to vector<16x1xf32>
    %60 = vector.broadcast %59 : vector<16x1xf32> to vector<16x16xf32>
    %61 = arith.divf %57, %60 : vector<16x16xf32>
    %62 = arith.truncf %61 : vector<16x16xf32> to vector<16x16xbf16>
    %63 = arith.truncf %45 : vector<16x128xf32> to vector<16x128xbf16>
    %cst_22 = arith.constant dense<0.000000e+00> : vector<16x128xf32>
    %64 = tpu.matmul %62, %63, %cst_22 {dimension_numbers = #tpu.dot_dimension_numbers<[1], [0], [0], [1], [0, 0, 1, 1], [], []>} : vector<16x16xbf16>, vector<16x128xbf16>, vector<16x128xf32> -> vector<16x128xf32>
    %c0_23 = arith.constant 0 : index
    %c0_24 = arith.constant 0 : index
    %65 = vector.load %arg13[%c0_23, %c0_24] : memref<32x256xf32, #tpu.memory_space<vmem>>, vector<16x128xf32>
    tpu.vector_store %arg13[%c0_23, %c0_24], %64 {strides = array<i32>} : memref<32x256xf32, #tpu.memory_space<vmem>>, vector<16x128xf32>,
    %66 = vector.extract_strided_slice %23 {offsets = [0, 128], sizes = [16, 128], strides = [1, 1]} : vector<32x768xf32> to vector<16x128xf32>
    %67 = vector.extract_strided_slice %66 {offsets = [0, 0], sizes = [16, 64], strides = [1, 1]} : vector<16x128xf32> to vector<16x64xf32>
    %68 = vector.extract_strided_slice %66 {offsets = [0, 64], sizes = [16, 64], strides = [1, 1]} : vector<16x128xf32> to vector<16x64xf32>
    %69 = arith.mulf %66, %4 : vector<16x128xf32>
    %cst_25 = arith.constant 0.000000e+00 : f32
    %70 = vector.broadcast %cst_25 : f32 to vector<16x64xf32>
    %71 = arith.subf %70, %68 : vector<16x64xf32>
    %72 = tpu.concatenate %71, %67 in 1 : vector<16x64xf32>, vector<16x64xf32> -> vector<16x128xf32>
    %73 = arith.mulf %72, %5 : vector<16x128xf32>
    %74 = arith.addf %69, %73 : vector<16x128xf32>
    %75 = vector.extract_strided_slice %23 {offsets = [0, 384], sizes = [16, 128], strides = [1, 1]} : vector<32x768xf32> to vector<16x128xf32>
    %76 = vector.extract_strided_slice %75 {offsets = [0, 0], sizes = [16, 64], strides = [1, 1]} : vector<16x128xf32> to vector<16x64xf32>
    %77 = vector.extract_strided_slice %75 {offsets = [0, 64], sizes = [16, 64], strides = [1, 1]} : vector<16x128xf32> to vector<16x64xf32>
    %78 = arith.mulf %75, %4 : vector<16x128xf32>
    %cst_26 = arith.constant 0.000000e+00 : f32
    %79 = vector.broadcast %cst_26 : f32 to vector<16x64xf32>
    %80 = arith.subf %79, %77 : vector<16x64xf32>
    %81 = tpu.concatenate %80, %76 in 1 : vector<16x64xf32>, vector<16x64xf32> -> vector<16x128xf32>
    %82 = arith.mulf %81, %5 : vector<16x128xf32>
    %83 = arith.addf %78, %82 : vector<16x128xf32>
    %84 = vector.extract_strided_slice %23 {offsets = [0, 640], sizes = [16, 128], strides = [1, 1]} : vector<32x768xf32> to vector<16x128xf32>
    %85 = arith.truncf %74 : vector<16x128xf32> to vector<16x128xbf16>
    %86 = arith.truncf %83 : vector<16x128xf32> to vector<16x128xbf16>
    %cst_27 = arith.constant dense<0.000000e+00> : vector<16x16xf32>
    %87 = tpu.matmul %85, %86, %cst_27 {dimension_numbers = #tpu.dot_dimension_numbers<[1], [1], [0], [0], [0, 0, 1, 0], [], []>} : vector<16x128xbf16>, vector<16x128xbf16>, vector<16x16xf32> -> vector<16x16xf32>
    %cst_28 = arith.constant 0.0883883461 : f32
    %88 = vector.broadcast %cst_28 : f32 to vector<16x16xf32>
    %89 = arith.mulf %87, %88 : vector<16x16xf32>
    %cst_29 = arith.constant -1.000000e+30 : f32
    %90 = vector.broadcast %cst_29 : f32 to vector<16x16xf32>
    %91 = arith.select %26, %89, %90 : vector<16x16xi1>, vector<16x16xf32>
    %cst_30 = arith.constant dense<0xFF800000> : vector<16xf32>
    %92 = vector.multi_reduction <maximumf>, %91, %cst_30 [1] : vector<16x16xf32> to vector<16xf32>
    %93 = vector.shape_cast %92 : vector<16xf32> to vector<16x1xf32>
    %94 = vector.broadcast %93 : vector<16x1xf32> to vector<16x16xf32>
    %95 = arith.subf %91, %94 : vector<16x16xf32>
    %96 = math.exp %95 : vector<16x16xf32>
    %cst_31 = arith.constant dense<0.000000e+00> : vector<16xf32>
    %97 = vector.multi_reduction <add>, %96, %cst_31 [1] : vector<16x16xf32> to vector<16xf32>
    %98 = vector.shape_cast %97 : vector<16xf32> to vector<16x1xf32>
    %99 = vector.broadcast %98 : vector<16x1xf32> to vector<16x16xf32>
    %100 = arith.divf %96, %99 : vector<16x16xf32>
    %101 = arith.truncf %100 : vector<16x16xf32> to vector<16x16xbf16>
    %102 = arith.truncf %84 : vector<16x128xf32> to vector<16x128xbf16>
    %cst_32 = arith.constant dense<0.000000e+00> : vector<16x128xf32>
    %103 = tpu.matmul %101, %102, %cst_32 {dimension_numbers = #tpu.dot_dimension_numbers<[1], [0], [0], [1], [0, 0, 1, 1], [], []>} : vector<16x16xbf16>, vector<16x128xbf16>, vector<16x128xf32> -> vector<16x128xf32>
    %c0_33 = arith.constant 0 : index
    %c128 = arith.constant 128 : index
    %104 = vector.load %arg13[%c0_33, %c128] : memref<32x256xf32, #tpu.memory_space<vmem>>, vector<16x128xf32>
    tpu.vector_store %arg13[%c0_33, %c128], %103 {strides = array<i32>} : memref<32x256xf32, #tpu.memory_space<vmem>>, vector<16x128xf32>,
    %105 = vector.extract_strided_slice %23 {offsets = [16, 0], sizes = [16, 128], strides = [1, 1]} : vector<32x768xf32> to vector<16x128xf32>
    %106 = vector.extract_strided_slice %105 {offsets = [0, 0], sizes = [16, 64], strides = [1, 1]} : vector<16x128xf32> to vector<16x64xf32>
    %107 = vector.extract_strided_slice %105 {offsets = [0, 64], sizes = [16, 64], strides = [1, 1]} : vector<16x128xf32> to vector<16x64xf32>
    %108 = arith.mulf %105, %4 : vector<16x128xf32>
    %cst_34 = arith.constant 0.000000e+00 : f32
    %109 = vector.broadcast %cst_34 : f32 to vector<16x64xf32>
    %110 = arith.subf %109, %107 : vector<16x64xf32>
    %111 = tpu.concatenate %110, %106 in 1 : vector<16x64xf32>, vector<16x64xf32> -> vector<16x128xf32>
    %112 = arith.mulf %111, %5 : vector<16x128xf32>
    %113 = arith.addf %108, %112 : vector<16x128xf32>
    %114 = vector.extract_strided_slice %23 {offsets = [16, 256], sizes = [16, 128], strides = [1, 1]} : vector<32x768xf32> to vector<16x128xf32>
    %115 = vector.extract_strided_slice %114 {offsets = [0, 0], sizes = [16, 64], strides = [1, 1]} : vector<16x128xf32> to vector<16x64xf32>
    %116 = vector.extract_strided_slice %114 {offsets = [0, 64], sizes = [16, 64], strides = [1, 1]} : vector<16x128xf32> to vector<16x64xf32>
    %117 = arith.mulf %114, %4 : vector<16x128xf32>
    %cst_35 = arith.constant 0.000000e+00 : f32
    %118 = vector.broadcast %cst_35 : f32 to vector<16x64xf32>
    %119 = arith.subf %118, %116 : vector<16x64xf32>
    %120 = tpu.concatenate %119, %115 in 1 : vector<16x64xf32>, vector<16x64xf32> -> vector<16x128xf32>
    %121 = arith.mulf %120, %5 : vector<16x128xf32>
    %122 = arith.addf %117, %121 : vector<16x128xf32>
    %123 = vector.extract_strided_slice %23 {offsets = [16, 512], sizes = [16, 128], strides = [1, 1]} : vector<32x768xf32> to vector<16x128xf32>
    %124 = arith.truncf %113 : vector<16x128xf32> to vector<16x128xbf16>
    %125 = arith.truncf %122 : vector<16x128xf32> to vector<16x128xbf16>
    %cst_36 = arith.constant dense<0.000000e+00> : vector<16x16xf32>
    %126 = tpu.matmul %124, %125, %cst_36 {dimension_numbers = #tpu.dot_dimension_numbers<[1], [1], [0], [0], [0, 0, 1, 0], [], []>} : vector<16x128xbf16>, vector<16x128xbf16>, vector<16x16xf32> -> vector<16x16xf32>
    %cst_37 = arith.constant 0.0883883461 : f32
    %127 = vector.broadcast %cst_37 : f32 to vector<16x16xf32>
    %128 = arith.mulf %126, %127 : vector<16x16xf32>
    %cst_38 = arith.constant -1.000000e+30 : f32
    %129 = vector.broadcast %cst_38 : f32 to vector<16x16xf32>
    %130 = arith.select %26, %128, %129 : vector<16x16xi1>, vector<16x16xf32>
    %cst_39 = arith.constant dense<0xFF800000> : vector<16xf32>
    %131 = vector.multi_reduction <maximumf>, %130, %cst_39 [1] : vector<16x16xf32> to vector<16xf32>
    %132 = vector.shape_cast %131 : vector<16xf32> to vector<16x1xf32>
    %133 = vector.broadcast %132 : vector<16x1xf32> to vector<16x16xf32>
    %134 = arith.subf %130, %133 : vector<16x16xf32>
    %135 = math.exp %134 : vector<16x16xf32>
    %cst_40 = arith.constant dense<0.000000e+00> : vector<16xf32>
    %136 = vector.multi_reduction <add>, %135, %cst_40 [1] : vector<16x16xf32> to vector<16xf32>
    %137 = vector.shape_cast %136 : vector<16xf32> to vector<16x1xf32>
    %138 = vector.broadcast %137 : vector<16x1xf32> to vector<16x16xf32>
    %139 = arith.divf %135, %138 : vector<16x16xf32>
    %140 = arith.truncf %139 : vector<16x16xf32> to vector<16x16xbf16>
    %141 = arith.truncf %123 : vector<16x128xf32> to vector<16x128xbf16>
    %cst_41 = arith.constant dense<0.000000e+00> : vector<16x128xf32>
    %142 = tpu.matmul %140, %141, %cst_41 {dimension_numbers = #tpu.dot_dimension_numbers<[1], [0], [0], [1], [0, 0, 1, 1], [], []>} : vector<16x16xbf16>, vector<16x128xbf16>, vector<16x128xf32> -> vector<16x128xf32>
    %c16 = arith.constant 16 : index
    %c0_42 = arith.constant 0 : index
    %143 = vector.load %arg13[%c16, %c0_42] : memref<32x256xf32, #tpu.memory_space<vmem>>, vector<16x128xf32>
    tpu.vector_store %arg13[%c16, %c0_42], %142 {strides = array<i32>} : memref<32x256xf32, #tpu.memory_space<vmem>>, vector<16x128xf32>,
    %144 = vector.extract_strided_slice %23 {offsets = [16, 128], sizes = [16, 128], strides = [1, 1]} : vector<32x768xf32> to vector<16x128xf32>
    %145 = vector.extract_strided_slice %144 {offsets = [0, 0], sizes = [16, 64], strides = [1, 1]} : vector<16x128xf32> to vector<16x64xf32>
    %146 = vector.extract_strided_slice %144 {offsets = [0, 64], sizes = [16, 64], strides = [1, 1]} : vector<16x128xf32> to vector<16x64xf32>
    %147 = arith.mulf %144, %4 : vector<16x128xf32>
    %cst_43 = arith.constant 0.000000e+00 : f32
    %148 = vector.broadcast %cst_43 : f32 to vector<16x64xf32>
    %149 = arith.subf %148, %146 : vector<16x64xf32>
    %150 = tpu.concatenate %149, %145 in 1 : vector<16x64xf32>, vector<16x64xf32> -> vector<16x128xf32>
    %151 = arith.mulf %150, %5 : vector<16x128xf32>
    %152 = arith.addf %147, %151 : vector<16x128xf32>
    %153 = vector.extract_strided_slice %23 {offsets = [16, 384], sizes = [16, 128], strides = [1, 1]} : vector<32x768xf32> to vector<16x128xf32>
    %154 = vector.extract_strided_slice %153 {offsets = [0, 0], sizes = [16, 64], strides = [1, 1]} : vector<16x128xf32> to vector<16x64xf32>
    %155 = vector.extract_strided_slice %153 {offsets = [0, 64], sizes = [16, 64], strides = [1, 1]} : vector<16x128xf32> to vector<16x64xf32>
    %156 = arith.mulf %153, %4 : vector<16x128xf32>
    %cst_44 = arith.constant 0.000000e+00 : f32
    %157 = vector.broadcast %cst_44 : f32 to vector<16x64xf32>
    %158 = arith.subf %157, %155 : vector<16x64xf32>
    %159 = tpu.concatenate %158, %154 in 1 : vector<16x64xf32>, vector<16x64xf32> -> vector<16x128xf32>
    %160 = arith.mulf %159, %5 : vector<16x128xf32>
    %161 = arith.addf %156, %160 : vector<16x128xf32>
    %162 = vector.extract_strided_slice %23 {offsets = [16, 640], sizes = [16, 128], strides = [1, 1]} : vector<32x768xf32> to vector<16x128xf32>
    %163 = arith.truncf %152 : vector<16x128xf32> to vector<16x128xbf16>
    %164 = arith.truncf %161 : vector<16x128xf32> to vector<16x128xbf16>
    %cst_45 = arith.constant dense<0.000000e+00> : vector<16x16xf32>
    %165 = tpu.matmul %163, %164, %cst_45 {dimension_numbers = #tpu.dot_dimension_numbers<[1], [1], [0], [0], [0, 0, 1, 0], [], []>} : vector<16x128xbf16>, vector<16x128xbf16>, vector<16x16xf32> -> vector<16x16xf32>
    %cst_46 = arith.constant 0.0883883461 : f32
    %166 = vector.broadcast %cst_46 : f32 to vector<16x16xf32>
    %167 = arith.mulf %165, %166 : vector<16x16xf32>
    %cst_47 = arith.constant -1.000000e+30 : f32
    %168 = vector.broadcast %cst_47 : f32 to vector<16x16xf32>
    %169 = arith.select %26, %167, %168 : vector<16x16xi1>, vector<16x16xf32>
    %cst_48 = arith.constant dense<0xFF800000> : vector<16xf32>
    %170 = vector.multi_reduction <maximumf>, %169, %cst_48 [1] : vector<16x16xf32> to vector<16xf32>
    %171 = vector.shape_cast %170 : vector<16xf32> to vector<16x1xf32>
    %172 = vector.broadcast %171 : vector<16x1xf32> to vector<16x16xf32>
    %173 = arith.subf %169, %172 : vector<16x16xf32>
    %174 = math.exp %173 : vector<16x16xf32>
    %cst_49 = arith.constant dense<0.000000e+00> : vector<16xf32>
    %175 = vector.multi_reduction <add>, %174, %cst_49 [1] : vector<16x16xf32> to vector<16xf32>
    %176 = vector.shape_cast %175 : vector<16xf32> to vector<16x1xf32>
    %177 = vector.broadcast %176 : vector<16x1xf32> to vector<16x16xf32>
    %178 = arith.divf %174, %177 : vector<16x16xf32>
    %179 = arith.truncf %178 : vector<16x16xf32> to vector<16x16xbf16>
    %180 = arith.truncf %162 : vector<16x128xf32> to vector<16x128xbf16>
    %cst_50 = arith.constant dense<0.000000e+00> : vector<16x128xf32>
    %181 = tpu.matmul %179, %180, %cst_50 {dimension_numbers = #tpu.dot_dimension_numbers<[1], [0], [0], [1], [0, 0, 1, 1], [], []>} : vector<16x16xbf16>, vector<16x128xbf16>, vector<16x128xf32> -> vector<16x128xf32>
    %c16_51 = arith.constant 16 : index
    %c128_52 = arith.constant 128 : index
    %182 = vector.load %arg13[%c16_51, %c128_52] : memref<32x256xf32, #tpu.memory_space<vmem>>, vector<16x128xf32>
    tpu.vector_store %arg13[%c16_51, %c128_52], %181 {strides = array<i32>} : memref<32x256xf32, #tpu.memory_space<vmem>>, vector<16x128xf32>,
    %c0_53 = arith.constant 0 : index
    %c0_54 = arith.constant 0 : index
    %183 = vector.load %arg13[%c0_53, %c0_54] : memref<32x256xf32, #tpu.memory_space<vmem>>, vector<32x256xf32>
    %184 = arith.truncf %183 : vector<32x256xf32> to vector<32x256xbf16>
    %c0_55 = arith.constant 0 : index
    %c0_56 = arith.constant 0 : index
    %c0_57 = arith.constant 0 : index
    %185 = vector.load %arg6[%c0_55, %c0_56, %c0_57] : memref<1x256x256xbf16, #tpu.memory_space<vmem>>, vector<1x256x256xbf16>
    %186 = vector.shape_cast %185 : vector<1x256x256xbf16> to vector<256x256xbf16>
    %cst_58 = arith.constant dense<0.000000e+00> : vector<32x256xf32>
    %187 = tpu.matmul %184, %186, %cst_58 {dimension_numbers = #tpu.dot_dimension_numbers<[1], [0], [0], [1], [0, 0, 1, 1], [], []>} : vector<32x256xbf16>, vector<256x256xbf16>, vector<32x256xf32> -> vector<32x256xf32>
    %188 = arith.addf %3, %187 : vector<32x256xf32>
    %c0_59 = arith.constant 0 : index
    %c0_60 = arith.constant 0 : index
    %c0_61 = arith.constant 0 : index
    %189 = vector.load %arg7[%c0_59, %c0_60, %c0_61] : memref<1x1x256xf32, #tpu.memory_space<vmem>>, vector<1x1x256xf32>
    %190 = vector.shape_cast %189 : vector<1x1x256xf32> to vector<1x256xf32>
    %191 = arith.mulf %188, %188 : vector<32x256xf32>
    %cst_62 = arith.constant dense<0.000000e+00> : vector<32xf32>
    %192 = vector.multi_reduction <add>, %191, %cst_62 [1] : vector<32x256xf32> to vector<32xf32>
    %193 = vector.shape_cast %192 : vector<32xf32> to vector<32x1xf32>
    %cst_63 = arith.constant 2.560000e+02 : f32
    %194 = vector.broadcast %cst_63 : f32 to vector<32x1xf32>
    %195 = arith.divf %193, %194 : vector<32x1xf32>
    %cst_64 = arith.constant 9.99999997E-7 : f32
    %196 = vector.broadcast %cst_64 : f32 to vector<32x1xf32>
    %197 = arith.addf %195, %196 : vector<32x1xf32>
    %198 = math.rsqrt %197 : vector<32x1xf32>
    %199 = vector.broadcast %198 : vector<32x1xf32> to vector<32x256xf32>
    %200 = arith.mulf %188, %199 : vector<32x256xf32>
    %201 = vector.broadcast %190 : vector<1x256xf32> to vector<32x256xf32>
    %202 = arith.mulf %200, %201 : vector<32x256xf32>
    %203 = arith.truncf %202 : vector<32x256xf32> to vector<32x256xbf16>
    %c0_65 = arith.constant 0 : index
    %c0_66 = arith.constant 0 : index
    %c0_67 = arith.constant 0 : index
    %204 = vector.load %arg8[%c0_65, %c0_66, %c0_67] : memref<1x256x1024xbf16, #tpu.memory_space<vmem>>, vector<1x256x1024xbf16>
    %205 = vector.shape_cast %204 : vector<1x256x1024xbf16> to vector<256x1024xbf16>
    %cst_68 = arith.constant dense<0.000000e+00> : vector<32x1024xf32>
    %206 = tpu.matmul %203, %205, %cst_68 {dimension_numbers = #tpu.dot_dimension_numbers<[1], [0], [0], [1], [0, 0, 1, 1], [], []>} : vector<32x256xbf16>, vector<256x1024xbf16>, vector<32x1024xf32> -> vector<32x1024xf32>
    %207 = vector.extract_strided_slice %206 {offsets = [0, 0], sizes = [32, 512], strides = [1, 1]} : vector<32x1024xf32> to vector<32x512xf32>
    %208 = vector.extract_strided_slice %206 {offsets = [0, 512], sizes = [32, 512], strides = [1, 1]} : vector<32x1024xf32> to vector<32x512xf32>
    %209 = arith.negf %207 : vector<32x512xf32>
    %210 = math.exp %209 : vector<32x512xf32>
    %cst_69 = arith.constant 1.000000e+00 : f32
    %211 = vector.broadcast %cst_69 : f32 to vector<32x512xf32>
    %212 = arith.addf %211, %210 : vector<32x512xf32>
    %213 = arith.divf %211, %212 : vector<32x512xf32>
    %214 = arith.mulf %207, %213 : vector<32x512xf32>
    %215 = arith.mulf %214, %208 : vector<32x512xf32>
    %216 = arith.truncf %215 : vector<32x512xf32> to vector<32x512xbf16>
    %c0_70 = arith.constant 0 : index
    %c0_71 = arith.constant 0 : index
    %c0_72 = arith.constant 0 : index
    %217 = vector.load %arg9[%c0_70, %c0_71, %c0_72] : memref<1x512x256xbf16, #tpu.memory_space<vmem>>, vector<1x512x256xbf16>
    %218 = vector.shape_cast %217 : vector<1x512x256xbf16> to vector<512x256xbf16>
    %cst_73 = arith.constant dense<0.000000e+00> : vector<32x256xf32>
    %219 = tpu.matmul %216, %218, %cst_73 {dimension_numbers = #tpu.dot_dimension_numbers<[1], [0], [0], [1], [0, 0, 1, 1], [], []>} : vector<32x512xbf16>, vector<512x256xbf16>, vector<32x256xf32> -> vector<32x256xf32>
    %220 = arith.addf %188, %219 : vector<32x256xf32>
    %c0_74 = arith.constant 0 : index
    %c0_75 = arith.constant 0 : index
    %221 = vector.load %arg12[%c0_74, %c0_75] : memref<32x256xf32, #tpu.memory_space<vmem>>, vector<32x256xf32>
    tpu.vector_store %arg12[%c0_74, %c0_75], %220 {strides = array<i32>} : memref<32x256xf32, #tpu.memory_space<vmem>>, vector<32x256xf32>,
    return
  }
  func.func @transform_0(%arg0: i32, %arg1: i32) -> (i32, i32) {
    %c0_i32 = arith.constant 0 : i32
    %c0_i32_0 = arith.constant 0 : i32
    return %arg0, %c0_i32 : i32, i32
  }
  func.func @transform_1(%arg0: i32, %arg1: i32) -> (i32, i32) {
    %c0_i32 = arith.constant 0 : i32
    %c0_i32_0 = arith.constant 0 : i32
    %c0_i32_1 = arith.constant 0 : i32
    return %c0_i32, %c0_i32_0 : i32, i32
  }
  func.func @transform_2(%arg0: i32, %arg1: i32) -> (i32, i32, i32) {
    %c0_i32 = arith.constant 0 : i32
    %c0_i32_0 = arith.constant 0 : i32
    %c0_i32_1 = arith.constant 0 : i32
    return %arg1, %c0_i32, %c0_i32_0 : i32, i32, i32
  }
  func.func @transform_3(%arg0: i32, %arg1: i32) -> (i32, i32, i32) {
    %c0_i32 = arith.constant 0 : i32
    %c0_i32_0 = arith.constant 0 : i32
    %c0_i32_1 = arith.constant 0 : i32
    return %arg1, %c0_i32, %c0_i32_0 : i32, i32, i32
  }
  func.func @transform_4(%arg0: i32, %arg1: i32) -> (i32, i32, i32) {
    %c0_i32 = arith.constant 0 : i32
    %c0_i32_0 = arith.constant 0 : i32
    %c0_i32_1 = arith.constant 0 : i32
    return %arg1, %c0_i32, %c0_i32_0 : i32, i32, i32
  }
  func.func @transform_5(%arg0: i32, %arg1: i32) -> (i32, i32, i32) {
    %c0_i32 = arith.constant 0 : i32
    %c0_i32_0 = arith.constant 0 : i32
    %c0_i32_1 = arith.constant 0 : i32
    return %arg1, %c0_i32, %c0_i32_0 : i32, i32, i32
  }
  func.func @transform_6(%arg0: i32, %arg1: i32) -> (i32, i32, i32) {
    %c0_i32 = arith.constant 0 : i32
    %c0_i32_0 = arith.constant 0 : i32
    %c0_i32_1 = arith.constant 0 : i32
    return %arg1, %c0_i32, %c0_i32_0 : i32, i32, i32
  }
  func.func @transform_7(%arg0: i32, %arg1: i32) -> (i32, i32, i32) {
    %c0_i32 = arith.constant 0 : i32
    %c0_i32_0 = arith.constant 0 : i32
    %c0_i32_1 = arith.constant 0 : i32
    return %arg1, %c0_i32, %c0_i32_0 : i32, i32, i32
  }
  func.func @transform_8(%arg0: i32, %arg1: i32) -> (i32, i32) {
    %c0_i32 = arith.constant 0 : i32
    %c0_i32_0 = arith.constant 0 : i32
    %c0_i32_1 = arith.constant 0 : i32
    return %c0_i32, %c0_i32_0 : i32, i32
  }
  func.func @transform_9(%arg0: i32, %arg1: i32) -> (i32, i32) {
    %c0_i32 = arith.constant 0 : i32
    %c0_i32_0 = arith.constant 0 : i32
    %c0_i32_1 = arith.constant 0 : i32
    return %c0_i32, %c0_i32_0 : i32, i32
  }
  func.func @transform_10(%arg0: i32, %arg1: i32) -> (i32, i32) {
    %c0_i32 = arith.constant 0 : i32
    %c0_i32_0 = arith.constant 0 : i32
    return %arg0, %c0_i32 : i32, i32
  }
}

</mosaic_0001>

<llo_original>
// kernel: mistral_backbone_forward.3
$region0: #{mistral_backbone_forward.3}
  #allocation0 [shape = 'u32[]', space=smem, size = 0x4, offset = 0x4, fixed_abs, tag = 'smem constant byte address 0x4 - core index']
  #allocation1 [shape = 'u32[144,128]{1,0:T(1,128)}', space=vmem, size = 0x12000, scoped, tag = 'internal scratch']
  #allocation2 [shape = 'bf16[32,256]{1,0:T(16,128)(2,1)}', space=vmem, size = 0x4000, scoped, tag = 'scratch operand']
  #allocation3 [shape = 'f32[32,1]{1,0:T(8,128)}', space=vmem, size = 0x4000, scoped, tag = 'scratch operand']
  #allocation4 [shape = 'f32[32,1]{1,0:T(8,128)}', space=vmem, size = 0x4000, scoped, tag = 'scratch operand']
  #allocation5 [shape = 'f32[32,1]{1,0:T(8,128)}', space=vmem, size = 0x4000, scoped, tag = 'scratch operand']
  %s0 = inlined_call_operand.vmem [shape: f32[32,256], index: 0, kind: input, shape index: {}]
  %s1 = inlined_call_operand.vmem [shape: f32[1,256], index: 1, kind: input, shape index: {}]
  %s2 = inlined_call_operand.vmem [shape: bf16[256,256], index: 2, kind: input, shape index: {}]
  %s3 = inlined_call_operand.vmem [shape: s32[32,1], index: 3, kind: input, shape index: {}]
  %s4 = inlined_call_operand.hbm [shape: f32[32,256], index: 4, kind: output, shape index: {0}]
  %s5 = inlined_call_operand.vmem [shape: f32[32,1], index: 5, kind: output, shape index: {1}]
  %6 = xla_tuple %s4, %s5
  %s7 = sld [smem:[#allocation0]]
  $region42: #{mistral_backbone_forward.3} parent=0
    _
  %s9 = ssub.s32 1, %s7
  %s10 = scalar_select 0, %s9, %s7
  $region1: #{mistral_backbone_forward.3} parent=0
    #allocation6 [shape = 'u8[32768]{0}', space=vmem, size = 0x8000, scoped, tag = 'output window, operand 0, single buffered']
    #allocation7 [shape = 's32[1]{0}', space=sflag, size = 0x4, scoped, tag = 'scoped memory for mistral_backbone_forward.3']
    %11 = vsyncpa [#allocation7], 0
    // Predicated region
    $region2: #{mistral_backbone_forward.3} parent=1 // pred_check
      _
    $region3: #{mistral_backbone_forward.3} parent=1 // pred_check_branch
      %13 = sbr.rel (0) target = $region5
    $region4: #{mistral_backbone_forward.3} parent=1 // pred_region
      _
    $region5: #{mistral_backbone_forward.3} parent=1 // pred_fallthru
      _
    // Predicated region
    $region6: #{mistral_backbone_forward.3} parent=1 // pred_check
      _
    $region7: #{mistral_backbone_forward.3} parent=1 // pred_check_branch
      %15 = sbr.rel (0) target = $region9
    $region8: #{mistral_backbone_forward.3} parent=1 // pred_region
      _
    $region9: #{mistral_backbone_forward.3} parent=1 // pred_fallthru
      _
    // Predicated region
    $region10: #{mistral_backbone_forward.3} parent=1 // pred_check
      _
    $region11: #{mistral_backbone_forward.3} parent=1 // pred_check_branch
      %17 = sbr.rel (0) target = $region13
    $region12: #{mistral_backbone_forward.3} parent=1 // pred_region
      _
    $region13: #{mistral_backbone_forward.3} parent=1 // pred_fallthru
      _
    // Predicated region
    $region14: #{mistral_backbone_forward.3} parent=1 // pred_check
      _
    $region15: #{mistral_backbone_forward.3} parent=1 // pred_check_branch
      %19 = sbr.rel (0) target = $region17
    $region16: #{mistral_backbone_forward.3} parent=1 // pred_region
      _
    $region17: #{mistral_backbone_forward.3} parent=1 // pred_fallthru
      _
    %p20 = scmp.eq.s32.totalorder 0, 0
    // Predicated region
    $region18: #{mistral_backbone_forward.3} parent=1 // pred_check
      %p21 = pneg %p20
    $region19: #{mistral_backbone_forward.3} parent=1 // pred_check_branch
      %23 = sbr.rel (%p21) target = $region21
    $region20: #{mistral_backbone_forward.3} parent=1 // pred_region
      %v24 = vld [vmem:[%s0] sm:$0xff]
      %v25 = vld [vmem:[%s0 + $0x8] sm:$0xff]
      %v26 = vld [vmem:[%s0 + $0x10] sm:$0xff]
      %v27 = vld [vmem:[%s0 + $0x18] sm:$0xff]
      %v28 = vld [vmem:[%s0 + $0x20] sm:$0xff]
      %v29 = vld [vmem:[%s0 + $0x28] sm:$0xff]
      %v30 = vld [vmem:[%s0 + $0x30] sm:$0xff]
      %v31 = vld [vmem:[%s0 + $0x38] sm:$0xff]
      %v32 = vld [vmem:[%s1] sm:$0x3]
      %v33 = vmul.f32 %v24, %v24
      %v34 = vmul.f32 %v25, %v25
      %v35 = vmul.f32 %v26, %v26
      %v36 = vmul.f32 %v27, %v27
      %v37 = vmul.f32 %v28, %v28
      %v38 = vmul.f32 %v29, %v29
      %v39 = vmul.f32 %v30, %v30
      %v40 = vmul.f32 %v31, %v31
      %v41 = vadd.f32 %v33, %v34
      %42 = vadd.xlane.f32.xlu0 %v41
      %v43 = vpop.xlane.xlu0 %42
      %v44 = vadd.f32 %v35, %v36
      %45 = vadd.xlane.f32.xlu0 %v44
      %v46 = vpop.xlane.xlu0 %45
      %v47 = vadd.f32 %v37, %v38
      %48 = vadd.xlane.f32.xlu0 %v47
      %v49 = vpop.xlane.xlu0 %48
      %v50 = vadd.f32 %v39, %v40
      %51 = vadd.xlane.f32.xlu0 %v50
      %v52 = vpop.xlane.xlu0 %51
      %v53 = vrcp.pop 256.0
      %v54 = vmul.f32 %v43, %v53
      %v55 = vmul.f32 %v46, %v53
      %v56 = vmul.f32 %v49, %v53
      %v57 = vmul.f32 %v52, %v53
      %v58 = vadd.f32 %v54, 1e-06
      %v59 = vadd.f32 %v55, 1e-06
      %v60 = vadd.f32 %v56, 1e-06
      %v61 = vadd.f32 %v57, 1e-06
      %v62 = vrsqrt.pop %v58
      %v63 = vrsqrt.pop %v59
      %v64 = vrsqrt.pop %v60
      %v65 = vrsqrt.pop %v61
      %v66 = vmul.f32 %v24, %v62
      %v67 = vmul.f32 %v25, %v62
      %v68 = vmul.f32 %v26, %v63
      %v69 = vmul.f32 %v27, %v63
      %v70 = vmul.f32 %v28, %v64
      %v71 = vmul.f32 %v29, %v64
      %v72 = vmul.f32 %v30, %v65
      %v73 = vmul.f32 %v31, %v65
      %v75 = vlaneseq
      %v76 = vshrl.u32 %v75, 7
      %v77 = vsub.s32 0, %v76
      %v78 = vrot.slane %v32, %v77
      %v79 = vlaneseq
      %v80 = vshrl.u32 %v79, 7
      %v81 = vsub.s32 1, %v80
      %v82 = vrot.slane %v32, %v81
      %v85 = vmul.f32 %v66, %v78
      %v86 = vmul.f32 %v67, %v82
      %v87 = vmul.f32 %v68, %v78
      %v88 = vmul.f32 %v69, %v82
      %v89 = vmul.f32 %v70, %v78
      %v90 = vmul.f32 %v71, %v82
      %v91 = vmul.f32 %v72, %v78
      %v92 = vmul.f32 %v73, %v82
      %v93 = vpack.c.bf16 %v87, %v85
      %v94 = vpack.c.bf16 %v88, %v86
      %v95 = vpack.c.bf16 %v91, %v89
      %v96 = vpack.c.bf16 %v92, %v90
      %97 = vst [vmem:[#allocation2] sm:$0xff] %v93
      %98 = vst [vmem:[#allocation2 + $0x8] sm:$0xff] %v94
      %99 = vst [vmem:[#allocation2 + $0x10] sm:$0xff] %v95
      %100 = vst [vmem:[#allocation2 + $0x18] sm:$0xff] %v96
      %vm101 = vcmask 7168
      %102 = vst.msk [vmem:[#allocation3] sm:$0xff] %vm101, -1e+30
      %103 = vst.msk [vmem:[#allocation3 + $0x8] sm:$0xff] %vm101, -1e+30
      %104 = vst.msk [vmem:[#allocation3 + $0x10] sm:$0xff] %vm101, -1e+30
      %105 = vst.msk [vmem:[#allocation3 + $0x18] sm:$0xff] %vm101, -1e+30
      %106 = vst.msk [vmem:[#allocation4] sm:$0xff] %vm101, 0.0
      %107 = vst.msk [vmem:[#allocation4 + $0x8] sm:$0xff] %vm101, 0.0
      %108 = vst.msk [vmem:[#allocation4 + $0x10] sm:$0xff] %vm101, 0.0
      %109 = vst.msk [vmem:[#allocation4 + $0x18] sm:$0xff] %vm101, 0.0
      %110 = vst.msk [vmem:[#allocation5] sm:$0xff] %vm101, 0.0
      %111 = vst.msk [vmem:[#allocation5 + $0x8] sm:$0xff] %vm101, 0.0
      %112 = vst.msk [vmem:[#allocation5 + $0x10] sm:$0xff] %vm101, 0.0
      %113 = vst.msk [vmem:[#allocation5 + $0x18] sm:$0xff] %vm101, 0.0
    $region21: #{mistral_backbone_forward.3} parent=1 // pred_fallthru
      _
    %v114 = vld [vmem:[#allocation2] sm:$0xff]
    %v115 = vld [vmem:[#allocation2 + $0x8] sm:$0xff]
    %v116 = vld [vmem:[#allocation2 + $0x10] sm:$0xff]
    %v117 = vld [vmem:[#allocation2 + $0x18] sm:$0xff]
    %v118 = vld [vmem:[%s2] sm:$0xff]
    %v119 = vld [vmem:[%s2 + $0x8] sm:$0xff]
    %v120 = vld [vmem:[%s2 + $0x10] sm:$0xff]
    %v121 = vld [vmem:[%s2 + $0x18] sm:$0xff]
    %v122 = vld [vmem:[%s2 + $0x20] sm:$0xff]
    %v123 = vld [vmem:[%s2 + $0x28] sm:$0xff]
    %v124 = vld [vmem:[%s2 + $0x30] sm:$0xff]
    %v125 = vld [vmem:[%s2 + $0x38] sm:$0xff]
    %v126 = vld [vmem:[%s2 + $0x40] sm:$0xff]
    %v127 = vld [vmem:[%s2 + $0x48] sm:$0xff]
    %v128 = vld [vmem:[%s2 + $0x50] sm:$0xff]
    %v129 = vld [vmem:[%s2 + $0x58] sm:$0xff]
    %v130 = vld [vmem:[%s2 + $0x60] sm:$0xff]
    %v131 = vld [vmem:[%s2 + $0x68] sm:$0xff]
    %v132 = vld [vmem:[%s2 + $0x70] sm:$0xff]
    %v133 = vld [vmem:[%s2 + $0x78] sm:$0xff]
    %v134 = vld [vmem:[%s2 + $0x80] sm:$0xff]
    %v135 = vld [vmem:[%s2 + $0x88] sm:$0xff]
    %v136 = vld [vmem:[%s2 + $0x90] sm:$0xff]
    %v137 = vld [vmem:[%s2 + $0x98] sm:$0xff]
    %v138 = vld [vmem:[%s2 + $0xa0] sm:$0xff]
    %v139 = vld [vmem:[%s2 + $0xa8] sm:$0xff]
    %v140 = vld [vmem:[%s2 + $0xb0] sm:$0xff]
    %v141 = vld [vmem:[%s2 + $0xb8] sm:$0xff]
    %v142 = vld [vmem:[%s2 + $0xc0] sm:$0xff]
    %v143 = vld [vmem:[%s2 + $0xc8] sm:$0xff]
    %v144 = vld [vmem:[%s2 + $0xd0] sm:$0xff]
    %v145 = vld [vmem:[%s2 + $0xd8] sm:$0xff]
    %v146 = vld [vmem:[%s2 + $0xe0] sm:$0xff]
    %v147 = vld [vmem:[%s2 + $0xe8] sm:$0xff]
    %v148 = vld [vmem:[%s2 + $0xf0] sm:$0xff]
    %v149 = vld [vmem:[%s2 + $0xf8] sm:$0xff]
    %v182 = vunpack.c.l.b16 %v118
    %v183 = vunpack.c.h.b16 %v118
    %v184 = vunpack.c.l.b16 %v119
    %v185 = vunpack.c.h.b16 %v119
    %v186 = vunpack.c.l.b16 %v120
    %v187 = vunpack.c.h.b16 %v120
    %v188 = vunpack.c.l.b16 %v121
    %v189 = vunpack.c.h.b16 %v121
    %v190 = vunpack.c.l.b16 %v122
    %v191 = vunpack.c.h.b16 %v122
    %v192 = vunpack.c.l.b16 %v123
    %v193 = vunpack.c.h.b16 %v123
    %v194 = vunpack.c.l.b16 %v124
    %v195 = vunpack.c.h.b16 %v124
    %v196 = vunpack.c.l.b16 %v125
    %v197 = vunpack.c.h.b16 %v125
    %v198 = vunpack.c.l.b16 %v126
    %v199 = vunpack.c.h.b16 %v126
    %v200 = vunpack.c.l.b16 %v127
    %v201 = vunpack.c.h.b16 %v127
    %v202 = vunpack.c.l.b16 %v128
    %v203 = vunpack.c.h.b16 %v128
    %v204 = vunpack.c.l.b16 %v129
    %v205 = vunpack.c.h.b16 %v129
    %v206 = vunpack.c.l.b16 %v130
    %v207 = vunpack.c.h.b16 %v130
    %v208 = vunpack.c.l.b16 %v131
    %v209 = vunpack.c.h.b16 %v131
    %v210 = vunpack.c.l.b16 %v132
    %v211 = vunpack.c.h.b16 %v132
    %v212 = vunpack.c.l.b16 %v133
    %v213 = vunpack.c.h.b16 %v133
    %v214 = vunpack.c.l.b16 %v134
    %v215 = vunpack.c.h.b16 %v134
    %v216 = vunpack.c.l.b16 %v135
    %v217 = vunpack.c.h.b16 %v135
    %v218 = vunpack.c.l.b16 %v136
    %v219 = vunpack.c.h.b16 %v136
    %v220 = vunpack.c.l.b16 %v137
    %v221 = vunpack.c.h.b16 %v137
    %v222 = vunpack.c.l.b16 %v138
    %v223 = vunpack.c.h.b16 %v138
    %v224 = vunpack.c.l.b16 %v139
    %v225 = vunpack.c.h.b16 %v139
    %v226 = vunpack.c.l.b16 %v140
    %v227 = vunpack.c.h.b16 %v140
    %v228 = vunpack.c.l.b16 %v141
    %v229 = vunpack.c.h.b16 %v141
    %v230 = vunpack.c.l.b16 %v142
    %v231 = vunpack.c.h.b16 %v142
    %v232 = vunpack.c.l.b16 %v143
    %v233 = vunpack.c.h.b16 %v143
    %v234 = vunpack.c.l.b16 %v144
    %v235 = vunpack.c.h.b16 %v144
    %v236 = vunpack.c.l.b16 %v145
    %v237 = vunpack.c.h.b16 %v145
    %v238 = vunpack.c.l.b16 %v146
    %v239 = vunpack.c.h.b16 %v146
    %v240 = vunpack.c.l.b16 %v147
    %v241 = vunpack.c.h.b16 %v147
    %v242 = vunpack.c.l.b16 %v148
    %v243 = vunpack.c.h.b16 %v148
    %v244 = vunpack.c.l.b16 %v149
    %v245 = vunpack.c.h.b16 %v149
    %v246 = vpack.c.b16 %v184, %v182
    %v247 = vpack.c.b16 %v185, %v183
    %v248 = vpack.c.b16 %v188, %v186
    %v249 = vpack.c.b16 %v189, %v187
    %v250 = vpack.c.b16 %v192, %v190
    %v251 = vpack.c.b16 %v193, %v191
    %v252 = vpack.c.b16 %v196, %v194
    %v253 = vpack.c.b16 %v197, %v195
    %v254 = vpack.c.b16 %v200, %v198
    %v255 = vpack.c.b16 %v201, %v199
    %v256 = vpack.c.b16 %v204, %v202
    %v257 = vpack.c.b16 %v205, %v203
    %v258 = vpack.c.b16 %v208, %v206
    %v259 = vpack.c.b16 %v209, %v207
    %v260 = vpack.c.b16 %v212, %v210
    %v261 = vpack.c.b16 %v213, %v211
    %v262 = vpack.c.b16 %v216, %v214
    %v263 = vpack.c.b16 %v217, %v215
    %v264 = vpack.c.b16 %v220, %v218
    %v265 = vpack.c.b16 %v221, %v219
    %v266 = vpack.c.b16 %v224, %v222
    %v267 = vpack.c.b16 %v225, %v223
    %v268 = vpack.c.b16 %v228, %v226
    %v269 = vpack.c.b16 %v229, %v227
    %v270 = vpack.c.b16 %v232, %v230
    %v271 = vpack.c.b16 %v233, %v231
    %v272 = vpack.c.b16 %v236, %v234
    %v273 = vpack.c.b16 %v237, %v235
    %v274 = vpack.c.b16 %v240, %v238
    %v275 = vpack.c.b16 %v241, %v239
    %v276 = vpack.c.b16 %v244, %v242
    %v277 = vpack.c.b16 %v245, %v243
    %310 = vmatprep.subr.bf16.mxu0 %v247
    %311 = vmatpush1.bf16.msra.mxu0 %v246
    %312 = vmatprep.subr.bf16.mxu0 %v249
    %313 = vmatpush1.bf16.msra.mxu0 %v248
    %314 = vmatprep.subr.bf16.mxu0 %v251
    %315 = vmatpush1.bf16.msra.mxu0 %v250
    %316 = vmatprep.subr.bf16.mxu0 %v253
    %317 = vmatpush1.bf16.msra.mxu0 %v252
    %318 = vmatprep.subr.bf16.mxu0 %v255
    %319 = vmatpush1.bf16.msra.mxu0 %v254
    %320 = vmatprep.subr.bf16.mxu0 %v257
    %321 = vmatpush1.bf16.msra.mxu0 %v256
    %322 = vmatprep.subr.bf16.mxu0 %v259
    %323 = vmatpush1.bf16.msra.mxu0 %v258
    %324 = vmatprep.subr.bf16.mxu0 %v261
    %325 = vmatpush1.bf16.msra.mxu0 %v260
    %326 = vmatprep.subr.bf16.mxu0 %v263
    %327 = vmatpush1.bf16.msra.mxu0 %v262
    %328 = vmatprep.subr.bf16.mxu0 %v265
    %329 = vmatpush1.bf16.msra.mxu0 %v264
    %330 = vmatprep.subr.bf16.mxu0 %v267
    %331 = vmatpush1.bf16.msra.mxu0 %v266
    %332 = vmatprep.subr.bf16.mxu0 %v269
    %333 = vmatpush1.bf16.msra.mxu0 %v268
    %334 = vmatprep.subr.bf16.mxu0 %v271
    %335 = vmatpush1.bf16.msra.mxu0 %v270
    %336 = vmatprep.subr.bf16.mxu0 %v273
    %337 = vmatpush1.bf16.msra.mxu0 %v272
    %338 = vmatprep.subr.bf16.mxu0 %v275
    %339 = vmatpush1.bf16.msra.mxu0 %v274
    %340 = vmatprep.subr.bf16.mxu0 %v277
    %341 = vmatpush1.bf16.msra.mxu0 %v276
    %342 = vmatprep.mubr.bf16.mxu0 %v115
    %343 = vmatmul.mubr.bf16.gmra.mrb[0].mxu0 %v114
    %v344 = vpop.f32.mrb[0].mxu0
    %v345 = vadd.f32 0.0, %v344
    %v346 = vpop.f32.mrb[0].mxu0
    %v347 = vadd.f32 0.0, %v346
    %v348 = vpop.f32.mrb[0].mxu0
    %v349 = vadd.f32 0.0, %v348
    %v350 = vpop.f32.mrb[0].mxu0
    %v351 = vadd.f32 0.0, %v350
    %352 = vmatprep.mubr.bf16.mxu0 %v117
    %353 = vmatmul.mubr.bf16.gmra.mrb[0].mxu0 %v116
    %v354 = vpop.f32.mrb[0].mxu0
    %v355 = vadd.f32 0.0, %v354
    %v356 = vpop.f32.mrb[0].mxu0
    %v357 = vadd.f32 0.0, %v356
    %v358 = vpop.f32.mrb[0].mxu0
    %v359 = vadd.f32 0.0, %v358
    %v360 = vpop.f32.mrb[0].mxu0
    %v361 = vadd.f32 0.0, %v360
    %362 = vdwg.mxu0
    %363 = vst [vmem:[#allocation6] sm:$0xff] %v345
    %364 = vst [vmem:[#allocation6 + $0x8] sm:$0xff] %v347
    %365 = vst [vmem:[#allocation6 + $0x10] sm:$0xff] %v349
    %366 = vst [vmem:[#allocation6 + $0x18] sm:$0xff] %v351
    %367 = vst [vmem:[#allocation6 + $0x20] sm:$0xff] %v355
    %368 = vst [vmem:[#allocation6 + $0x28] sm:$0xff] %v357
    %369 = vst [vmem:[#allocation6 + $0x30] sm:$0xff] %v359
    %370 = vst [vmem:[#allocation6 + $0x38] sm:$0xff] %v361
    %v371 = vld [vmem:[#allocation3] sm:$0xff]
    %v372 = vld [vmem:[#allocation3 + $0x8] sm:$0xff]
    %v373 = vld [vmem:[#allocation3 + $0x10] sm:$0xff]
    %v374 = vld [vmem:[#allocation3 + $0x18] sm:$0xff]
    %v375 = vmax.f32 %v345, %v347
    %376 = vmax.xlane.f32.xlu0 %v375
    %v377 = vpop.xlane.xlu0 %376
    %v378 = vmax.f32 %v349, %v351
    %379 = vmax.xlane.f32.xlu0 %v378
    %v380 = vpop.xlane.xlu0 %379
    %v381 = vmax.f32 %v355, %v357
    %382 = vmax.xlane.f32.xlu0 %v381
    %v383 = vpop.xlane.xlu0 %382
    %v384 = vmax.f32 %v359, %v361
    %385 = vmax.xlane.f32.xlu0 %v384
    %v386 = vpop.xlane.xlu0 %385
    %v387 = vmax.f32 %v371, %v377
    %v388 = vmax.f32 %v372, %v380
    %v389 = vmax.f32 %v373, %v383
    %v390 = vmax.f32 %v374, %v386
    %v391 = vld [vmem:[#allocation4] sm:$0xff]
    %v392 = vld [vmem:[#allocation4 + $0x8] sm:$0xff]
    %v393 = vld [vmem:[#allocation4 + $0x10] sm:$0xff]
    %v394 = vld [vmem:[#allocation4 + $0x18] sm:$0xff]
    %v395 = vsub.f32 %v371, %v387
    %v396 = vsub.f32 %v372, %v388
    %v397 = vsub.f32 %v373, %v389
    %v398 = vsub.f32 %v374, %v390
    %v399 = vmul.f32 %v395, 1.442695
    %v400 = vpow.pop %v399
    %v401 = vmul.f32 %v396, 1.442695
    %v402 = vpow.pop %v401
    %v403 = vmul.f32 %v397, 1.442695
    %v404 = vpow.pop %v403
    %v405 = vmul.f32 %v398, 1.442695
    %v406 = vpow.pop %v405
    %v407 = vmul.f32 %v391, %v400
    %v408 = vmul.f32 %v392, %v402
    %v409 = vmul.f32 %v393, %v404
    %v410 = vmul.f32 %v394, %v406
    %412 = vset.pattern.permute.xlu0 0
    %413 = vperm.xlu0 %412, %v387
    %v414 = vpop.permute.xlu0 %413
    %417 = vset.pattern.permute.xlu0 0
    %418 = vperm.xlu0 %417, %v388
    %v419 = vpop.permute.xlu0 %418
    %422 = vset.pattern.permute.xlu0 0
    %423 = vperm.xlu0 %422, %v389
    %v424 = vpop.permute.xlu0 %423
    %427 = vset.pattern.permute.xlu0 0
    %428 = vperm.xlu0 %427, %v390
    %v429 = vpop.permute.xlu0 %428
    %v431 = vsub.f32 %v345, %v414
    %v432 = vsub.f32 %v347, %v414
    %v433 = vsub.f32 %v349, %v419
    %v434 = vsub.f32 %v351, %v419
    %v435 = vsub.f32 %v355, %v424
    %v436 = vsub.f32 %v357, %v424
    %v437 = vsub.f32 %v359, %v429
    %v438 = vsub.f32 %v361, %v429
    %v439 = vmul.f32 %v431, 1.442695
    %v440 = vpow.pop %v439
    %v441 = vmul.f32 %v432, 1.442695
    %v442 = vpow.pop %v441
    %v443 = vmul.f32 %v433, 1.442695
    %v444 = vpow.pop %v443
    %v445 = vmul.f32 %v434, 1.442695
    %v446 = vpow.pop %v445
    %v447 = vmul.f32 %v435, 1.442695
    %v448 = vpow.pop %v447
    %v449 = vmul.f32 %v436, 1.442695
    %v450 = vpow.pop %v449
    %v451 = vmul.f32 %v437, 1.442695
    %v452 = vpow.pop %v451
    %v453 = vmul.f32 %v438, 1.442695
    %v454 = vpow.pop %v453
    %v455 = vadd.f32 %v440, %v442
    %456 = vadd.xlane.f32.xlu0 %v455
    %v457 = vpop.xlane.xlu0 %456
    %v458 = vadd.f32 %v444, %v446
    %459 = vadd.xlane.f32.xlu0 %v458
    %v460 = vpop.xlane.xlu0 %459
    %v461 = vadd.f32 %v448, %v450
    %462 = vadd.xlane.f32.xlu0 %v461
    %v463 = vpop.xlane.xlu0 %462
    %v464 = vadd.f32 %v452, %v454
    %465 = vadd.xlane.f32.xlu0 %v464
    %v466 = vpop.xlane.xlu0 %465
    %v467 = vadd.f32 %v407, %v457
    %v468 = vadd.f32 %v408, %v460
    %v469 = vadd.f32 %v409, %v463
    %v470 = vadd.f32 %v410, %v466
    %vm471 = vcmask 7168
    %472 = vst.msk [vmem:[#allocation4] sm:$0xff] %vm471, %v467
    %473 = vst.msk [vmem:[#allocation4 + $0x8] sm:$0xff] %vm471, %v468
    %474 = vst.msk [vmem:[#allocation4 + $0x10] sm:$0xff] %vm471, %v469
    %475 = vst.msk [vmem:[#allocation4 + $0x18] sm:$0xff] %vm471, %v470
    %476 = vst.msk [vmem:[#allocation3] sm:$0xff] %vm471, %v387
    %477 = vst.msk [vmem:[#allocation3 + $0x8] sm:$0xff] %vm471, %v388
    %478 = vst.msk [vmem:[#allocation3 + $0x10] sm:$0xff] %vm471, %v389
    %479 = vst.msk [vmem:[#allocation3 + $0x18] sm:$0xff] %vm471, %v390
    %v480 = vlaneseq
    %v481 = vand.u32 %v480, 127
    %v482 = vadd.s32 %v481, 128
    %s483 = smul.u32 0, 256
    %v484 = vstv %s483
    %v485 = vadd.s32 %v481, %v484
    %v486 = vadd.s32 %v482, %v484
    %v487 = vld [vmem:[#allocation5] sm:$0xff]
    %v488 = vld [vmem:[#allocation5 + $0x8] sm:$0xff]
    %v489 = vld [vmem:[#allocation5 + $0x10] sm:$0xff]
    %v490 = vld [vmem:[#allocation5 + $0x18] sm:$0xff]
    %v491 = vld [vmem:[%s3] sm:$0xff]
    %v492 = vld [vmem:[%s3 + $0x8] sm:$0xff]
    %v493 = vld [vmem:[%s3 + $0x10] sm:$0xff]
    %v494 = vld [vmem:[%s3 + $0x18] sm:$0xff]
    %495 = vset.pattern.permute.xlu0 0
    %496 = vperm.xlu0 %495, %v491
    %v497 = vpop.permute.xlu0 %496
    %498 = vset.pattern.permute.xlu0 0
    %499 = vperm.xlu0 %498, %v492
    %v500 = vpop.permute.xlu0 %499
    %501 = vset.pattern.permute.xlu0 0
    %502 = vperm.xlu0 %501, %v493
    %v503 = vpop.permute.xlu0 %502
    %504 = vset.pattern.permute.xlu0 0
    %505 = vperm.xlu0 %504, %v494
    %v506 = vpop.permute.xlu0 %505
    %vm507 = vcmp.eq.s32.totalorder %v485, %v497
    %vm508 = vcmp.eq.s32.totalorder %v486, %v497
    %vm509 = vcmp.eq.s32.totalorder %v485, %v500
    %vm510 = vcmp.eq.s32.totalorder %v486, %v500
    %vm511 = vcmp.eq.s32.totalorder %v485, %v503
    %vm512 = vcmp.eq.s32.totalorder %v486, %v503
    %vm513 = vcmp.eq.s32.totalorder %v485, %v506
    %vm514 = vcmp.eq.s32.totalorder %v486, %v506
    %v515 = vsel %vm507, %v345, 0.0
    %v516 = vsel %vm508, %v347, 0.0
    %v517 = vsel %vm509, %v349, 0.0
    %v518 = vsel %vm510, %v351, 0.0
    %v519 = vsel %vm511, %v355, 0.0
    %v520 = vsel %vm512, %v357, 0.0
    %v521 = vsel %vm513, %v359, 0.0
    %v522 = vsel %vm514, %v361, 0.0
    %v523 = vadd.f32 %v515, %v516
    %524 = vadd.xlane.f32.xlu0 %v523
    %v525 = vpop.xlane.xlu0 %524
    %v526 = vadd.f32 %v517, %v518
    %527 = vadd.xlane.f32.xlu0 %v526
    %v528 = vpop.xlane.xlu0 %527
    %v529 = vadd.f32 %v519, %v520
    %530 = vadd.xlane.f32.xlu0 %v529
    %v531 = vpop.xlane.xlu0 %530
    %v532 = vadd.f32 %v521, %v522
    %533 = vadd.xlane.f32.xlu0 %v532
    %v534 = vpop.xlane.xlu0 %533
    %v535 = vadd.f32 %v487, %v525
    %v536 = vadd.f32 %v488, %v528
    %v537 = vadd.f32 %v489, %v531
    %v538 = vadd.f32 %v490, %v534
    %539 = vst.msk [vmem:[#allocation5] sm:$0xff] %vm471, %v535
    %540 = vst.msk [vmem:[#allocation5 + $0x8] sm:$0xff] %vm471, %v536
    %541 = vst.msk [vmem:[#allocation5 + $0x10] sm:$0xff] %vm471, %v537
    %542 = vst.msk [vmem:[#allocation5 + $0x18] sm:$0xff] %vm471, %v538
    // Predicated region
    $region22: #{mistral_backbone_forward.3} parent=1 // pred_check
      %p543 = pneg %p20
    $region23: #{mistral_backbone_forward.3} parent=1 // pred_check_branch
      %545 = sbr.rel (%p543) target = $region25
    $region24: #{mistral_backbone_forward.3} parent=1 // pred_region
      %v546 = vld [vmem:[#allocation3] sm:$0xff]
      %v547 = vld [vmem:[#allocation3 + $0x8] sm:$0xff]
      %v548 = vld [vmem:[#allocation3 + $0x10] sm:$0xff]
      %v549 = vld [vmem:[#allocation3 + $0x18] sm:$0xff]
      %v550 = vld [vmem:[#allocation4] sm:$0xff]
      %v551 = vld [vmem:[#allocation4 + $0x8] sm:$0xff]
      %v552 = vld [vmem:[#allocation4 + $0x10] sm:$0xff]
      %v553 = vld [vmem:[#allocation4 + $0x18] sm:$0xff]
      %v554 = vlog2.pop %v550
      %v555 = vmul.f32 %v554, 0.6931472
      %v556 = vlog2.pop %v551
      %v557 = vmul.f32 %v556, 0.6931472
      %v558 = vlog2.pop %v552
      %v559 = vmul.f32 %v558, 0.6931472
      %v560 = vlog2.pop %v553
      %v561 = vmul.f32 %v560, 0.6931472
      %v562 = vadd.f32 %v546, %v555
      %v563 = vadd.f32 %v547, %v557
      %v564 = vadd.f32 %v548, %v559
      %v565 = vadd.f32 %v549, %v561
      %v566 = vld [vmem:[#allocation5] sm:$0xff]
      %v567 = vld [vmem:[#allocation5 + $0x8] sm:$0xff]
      %v568 = vld [vmem:[#allocation5 + $0x10] sm:$0xff]
      %v569 = vld [vmem:[#allocation5 + $0x18] sm:$0xff]
      %v570 = vsub.f32 %v562, %v566
      %v571 = vsub.f32 %v563, %v567
      %v572 = vsub.f32 %v564, %v568
      %v573 = vsub.f32 %v565, %v569
      %574 = vst.msk [vmem:[%s5] sm:$0xff] %vm471, %v570
      %575 = vst.msk [vmem:[%s5 + $0x8] sm:$0xff] %vm471, %v571
      %576 = vst.msk [vmem:[%s5 + $0x10] sm:$0xff] %vm471, %v572
      %577 = vst.msk [vmem:[%s5 + $0x18] sm:$0xff] %vm471, %v573
    $region25: #{mistral_backbone_forward.3} parent=1 // pred_fallthru
      _
    // Predicated region
    $region26: #{mistral_backbone_forward.3} parent=1 // pred_check
      _
    $region27: #{mistral_backbone_forward.3} parent=1 // pred_check_branch
      %579 = sbr.rel (0) target = $region29
    $region28: #{mistral_backbone_forward.3} parent=1 // pred_region
      %s581 = ssub.s32 1024, 1024
      %582 = vsyncadd [#allocation7], %s581
      %s583 = sshll.u32 [#allocation6], 4
      %s584 = int_to_ptr.vmem [resolvable:$true] %s583
      %589 = dma.vmem_to_hbm [thread:$0]  %s584, 1024, %s4, [#allocation7], 256, 256, 16
    $region29: #{mistral_backbone_forward.3} parent=1 // pred_fallthru
      _
    // Predicated region
    $region30: #{mistral_backbone_forward.3} parent=1 // pred_check
      _
    $region31: #{mistral_backbone_forward.3} parent=1 // pred_check_branch
      %591 = sbr.rel (0) target = $region33
    $region32: #{mistral_backbone_forward.3} parent=1 // pred_region
      _
    $region33: #{mistral_backbone_forward.3} parent=1 // pred_fallthru
      _
    // Predicated region
    $region34: #{mistral_backbone_forward.3} parent=1 // pred_check
      _
    $region35: #{mistral_backbone_forward.3} parent=1 // pred_check_branch
      %593 = sbr.rel (0) target = $region37
    $region36: #{mistral_backbone_forward.3} parent=1 // pred_region
      %594 = dma.done [#allocation7], 1024
    $region37: #{mistral_backbone_forward.3} parent=1 // pred_fallthru
      _
    // Predicated region
    $region38: #{mistral_backbone_forward.3} parent=1 // pred_check
      _
    $region39: #{mistral_backbone_forward.3} parent=1 // pred_check_branch
      %596 = sbr.rel (0) target = $region41
    $region40: #{mistral_backbone_forward.3} parent=1 // pred_region
      _
    $region41: #{mistral_backbone_forward.3} parent=1 // pred_fallthru
      _
    %597 = vsyncpa [#allocation7], 1

// kernel: mistral_backbone_forward.2
$region0: #{mistral_backbone_forward.2}
  #allocation0 [shape = 'u32[]', space=smem, size = 0x4, offset = 0x4, fixed_abs, tag = 'smem constant byte address 0x4 - core index']
  #allocation1 [shape = 'u32[144,128]{1,0:T(1,128)}', space=vmem, size = 0x12000, scoped, tag = 'internal scratch']
  #allocation2 [shape = 'f32[32,256]{1,0:T(8,128)}', space=vmem, size = 0x8000, scoped, tag = 'scratch operand']
  %s0 = inlined_call_operand.vmem [shape: s32[32,1], index: 0, kind: input, shape index: {}]
  %s1 = inlined_call_operand.vmem [shape: bf16[256,256], index: 1, kind: input, shape index: {}]
  %s2 = inlined_call_operand.vmem [shape: f32[2,1,256], index: 2, kind: input, shape index: {}, may-alias: {2,5}]
  %s3 = inlined_call_operand.vmem [shape: bf16[2,256,768], index: 3, kind: input, shape index: {}]
  %s4 = inlined_call_operand.vmem [shape: bf16[2,256,256], index: 4, kind: input, shape index: {}]
  %s5 = inlined_call_operand.vmem [shape: f32[2,1,256], index: 5, kind: input, shape index: {}, may-alias: {2,5}]
  %s6 = inlined_call_operand.vmem [shape: bf16[2,256,1024], index: 6, kind: input, shape index: {}]
  %s7 = inlined_call_operand.vmem [shape: bf16[2,512,256], index: 7, kind: input, shape index: {}]
  %s8 = inlined_call_operand.vmem [shape: f32[16,128], index: 8, kind: input, shape index: {}]
  %s9 = inlined_call_operand.vmem [shape: f32[16,128], index: 9, kind: input, shape index: {}]
  %s10 = inlined_call_operand.vmem [shape: f32[32,256], index: 10, kind: output, shape index: {}]
  %s11 = sld [smem:[#allocation0]]
  $region77: #{mistral_backbone_forward.2} parent=0
    _
  %s13 = ssub.s32 1, %s11
  %s14 = scalar_select 0, %s13, %s11
  loop: start=0, step=1, limit=4
  $region2: #{mistral_backbone_forward.2} parent=0 // loop_pre_header
    _
  $region3: #{mistral_backbone_forward.2} parent=0 // loop_header
    %s16 = sphi 0, %s20
    %p17 = scmp.ge.s32.totalorder %s16, 4
    %s23 = sphi 0, %s35
    %s24 = sphi 0, %s31
    %s25 = sphi 0, %s23
    %s26 = sphi 0, %s24
    %s27 = sphi 0, %s25
    %s28 = sphi 0, %s26
    %s38 = sphi 0, %s40
    %s41 = sphi 0, %s38
    %s42 = sphi 0, %s41
    %s58 = sphi 0, %s42
    %s62 = sphi 0, %s62
    %s64 = sphi 0, %s62
    %s65 = sphi 0, %s64
    %s79 = sphi 0, %s65
    %s85 = sphi 0, %s87
    %s88 = sphi 0, %s85
    %s89 = sphi 0, %s88
    %s105 = sphi 0, %s89
    %s111 = sphi 0, %s113
    %s114 = sphi 0, %s111
    %s115 = sphi 0, %s114
    %s131 = sphi 0, %s115
    %s137 = sphi 0, %s139
    %s140 = sphi 0, %s137
    %s141 = sphi 0, %s140
    %s157 = sphi 0, %s141
    %s163 = sphi 0, %s165
    %s166 = sphi 0, %s163
    %s167 = sphi 0, %s166
    %s183 = sphi 0, %s167
    %s189 = sphi 0, %s191
    %s192 = sphi 0, %s189
    %s193 = sphi 0, %s192
    %s209 = sphi 0, %s193
    %s215 = sphi 0, %s217
    %s218 = sphi 0, %s215
    %s219 = sphi 0, %s218
    %s235 = sphi 0, %s219
    %s239 = sphi 0, %s239
    %s241 = sphi 0, %s239
    %s242 = sphi 0, %s241
    %s256 = sphi 0, %s242
    %s260 = sphi 0, %s260
    %s262 = sphi 0, %s260
    %s263 = sphi 0, %s262
    %s277 = sphi 0, %s263
    %s283 = sphi 0, %s285
    %s286 = sphi 0, %s283
    %s287 = sphi 0, %s286
    %s303 = sphi 0, %s287
  $region4: #{mistral_backbone_forward.2} parent=0 // loop_header_branch
    %19 = sbr.rel (%p17) target = $region8
  $region5: #{mistral_backbone_forward.2} parent=0 // loop_body
    %s21 = ssub.s32 %s16, 1
    %s22 = ssub.s32 %s16, 2
    %s29 = sadd.s32 1, %s24
    %p30 = scmp.ge.s32.totalorder %s29, 2
    %s31 = scalar_select %p30, 0, %s29
    %s32 = sadd.s32 1, %s23
    %s33 = scalar_select %p30, %s32, %s23
    %p34 = scmp.ge.s32.totalorder %s33, 1
    %s35 = scalar_select %p34, 0, %s33
    %s36 = ssub.s32 %s23, %s35
    %p37 = scmp.eq.s32.totalorder %s36, 0
    %s39 = sadd.s32 %s38, 1
    %s40 = scalar_select %p37, %s38, %s39
    %p43 = pneg %p37
    %p44 = scmp.eq.s32.totalorder %s16, 1
    %p45 = por %p43, %p44
    %p46 = scmp.ne.s32.totalorder %s38, %s41
    %p47 = scmp.eq.s32.totalorder %s16, 0
    %p48 = por %p46, %p47
    %p49 = scmp.ne.s32.totalorder %s38, %s41
    %p50 = scmp.eq.s32.totalorder %s21, 1
    %p51 = por %p49, %p50
    %p52 = scmp.ne.s32.totalorder %s41, %s42
    %p53 = scmp.eq.s32.totalorder %s21, 0
    %p54 = por %p52, %p53
    %p55 = scmp.ne.s32.totalorder %s41, %s42
    %p56 = scmp.eq.s32.totalorder %s22, 1
    %p57 = por %p55, %p56
    %p59 = scmp.ne.s32.totalorder %s42, %s58
    %p60 = scmp.eq.s32.totalorder %s22, 0
    %p61 = por %p59, %p60
    %s63 = sadd.s32 %s62, 1
    %p66 = scmp.eq.s32.totalorder %s16, 1
    %p67 = scmp.ne.s32.totalorder %s62, %s64
    %p68 = scmp.eq.s32.totalorder %s16, 0
    %p69 = por %p67, %p68
    %p70 = scmp.ne.s32.totalorder %s62, %s64
    %p71 = scmp.eq.s32.totalorder %s21, 1
    %p72 = por %p70, %p71
    %p73 = scmp.ne.s32.totalorder %s64, %s65
    %p74 = scmp.eq.s32.totalorder %s21, 0
    %p75 = por %p73, %p74
    %p76 = scmp.ne.s32.totalorder %s64, %s65
    %p77 = scmp.eq.s32.totalorder %s22, 1
    %p78 = por %p76, %p77
    %p80 = scmp.ne.s32.totalorder %s65, %s79
    %p81 = scmp.eq.s32.totalorder %s22, 0
    %p82 = por %p80, %p81
    %s83 = ssub.s32 %s24, %s31
    %p84 = scmp.eq.s32.totalorder %s83, 0
    %s86 = sadd.s32 %s85, 1
    %s87 = scalar_select %p84, %s85, %s86
    %p90 = pneg %p84
    %p91 = scmp.eq.s32.totalorder %s16, 1
    %p92 = por %p90, %p91
    %p93 = scmp.ne.s32.totalorder %s85, %s88
    %p94 = scmp.eq.s32.totalorder %s16, 0
    %p95 = por %p93, %p94
    %p96 = scmp.ne.s32.totalorder %s85, %s88
    %p97 = scmp.eq.s32.totalorder %s21, 1
    %p98 = por %p96, %p97
    %p99 = scmp.ne.s32.totalorder %s88, %s89
    %p100 = scmp.eq.s32.totalorder %s21, 0
    %p101 = por %p99, %p100
    %p102 = scmp.ne.s32.totalorder %s88, %s89
    %p103 = scmp.eq.s32.totalorder %s22, 1
    %p104 = por %p102, %p103
    %p106 = scmp.ne.s32.totalorder %s89, %s105
    %p107 = scmp.eq.s32.totalorder %s22, 0
    %p108 = por %p106, %p107
    %s109 = ssub.s32 %s24, %s31
    %p110 = scmp.eq.s32.totalorder %s109, 0
    %s112 = sadd.s32 %s111, 1
    %s113 = scalar_select %p110, %s111, %s112
    %p116 = pneg %p110
    %p117 = scmp.eq.s32.totalorder %s16, 1
    %p118 = por %p116, %p117
    %p119 = scmp.ne.s32.totalorder %s111, %s114
    %p120 = scmp.eq.s32.totalorder %s16, 0
    %p121 = por %p119, %p120
    %p122 = scmp.ne.s32.totalorder %s111, %s114
    %p123 = scmp.eq.s32.totalorder %s21, 1
    %p124 = por %p122, %p123
    %p125 = scmp.ne.s32.totalorder %s114, %s115
    %p126 = scmp.eq.s32.totalorder %s21, 0
    %p127 = por %p125, %p126
    %p128 = scmp.ne.s32.totalorder %s114, %s115
    %p129 = scmp.eq.s32.totalorder %s22, 1
    %p130 = por %p128, %p129
    %p132 = scmp.ne.s32.totalorder %s115, %s131
    %p133 = scmp.eq.s32.totalorder %s22, 0
    %p134 = por %p132, %p133
    %s135 = ssub.s32 %s24, %s31
    %p136 = scmp.eq.s32.totalorder %s135, 0
    %s138 = sadd.s32 %s137, 1
    %s139 = scalar_select %p136, %s137, %s138
    %p142 = pneg %p136
    %p143 = scmp.eq.s32.totalorder %s16, 1
    %p144 = por %p142, %p143
    %p145 = scmp.ne.s32.totalorder %s137, %s140
    %p146 = scmp.eq.s32.totalorder %s16, 0
    %p147 = por %p145, %p146
    %p148 = scmp.ne.s32.totalorder %s137, %s140
    %p149 = scmp.eq.s32.totalorder %s21, 1
    %p150 = por %p148, %p149
    %p151 = scmp.ne.s32.totalorder %s140, %s141
    %p152 = scmp.eq.s32.totalorder %s21, 0
    %p153 = por %p151, %p152
    %p154 = scmp.ne.s32.totalorder %s140, %s141
    %p155 = scmp.eq.s32.totalorder %s22, 1
    %p156 = por %p154, %p155
    %p158 = scmp.ne.s32.totalorder %s141, %s157
    %p159 = scmp.eq.s32.totalorder %s22, 0
    %p160 = por %p158, %p159
    %s161 = ssub.s32 %s24, %s31
    %p162 = scmp.eq.s32.totalorder %s161, 0
    %s164 = sadd.s32 %s163, 1
    %s165 = scalar_select %p162, %s163, %s164
    %p168 = pneg %p162
    %p169 = scmp.eq.s32.totalorder %s16, 1
    %p170 = por %p168, %p169
    %p171 = scmp.ne.s32.totalorder %s163, %s166
    %p172 = scmp.eq.s32.totalorder %s16, 0
    %p173 = por %p171, %p172
    %p174 = scmp.ne.s32.totalorder %s163, %s166
    %p175 = scmp.eq.s32.totalorder %s21, 1
    %p176 = por %p174, %p175
    %p177 = scmp.ne.s32.totalorder %s166, %s167
    %p178 = scmp.eq.s32.totalorder %s21, 0
    %p179 = por %p177, %p178
    %p180 = scmp.ne.s32.totalorder %s166, %s167
    %p181 = scmp.eq.s32.totalorder %s22, 1
    %p182 = por %p180, %p181
    %p184 = scmp.ne.s32.totalorder %s167, %s183
    %p185 = scmp.eq.s32.totalorder %s22, 0
    %p186 = por %p184, %p185
    %s187 = ssub.s32 %s24, %s31
    %p188 = scmp.eq.s32.totalorder %s187, 0
    %s190 = sadd.s32 %s189, 1
    %s191 = scalar_select %p188, %s189, %s190
    %p194 = pneg %p188
    %p195 = scmp.eq.s32.totalorder %s16, 1
    %p196 = por %p194, %p195
    %p197 = scmp.ne.s32.totalorder %s189, %s192
    %p198 = scmp.eq.s32.totalorder %s16, 0
    %p199 = por %p197, %p198
    %p200 = scmp.ne.s32.totalorder %s189, %s192
    %p201 = scmp.eq.s32.totalorder %s21, 1
    %p202 = por %p200, %p201
    %p203 = scmp.ne.s32.totalorder %s192, %s193
    %p204 = scmp.eq.s32.totalorder %s21, 0
    %p205 = por %p203, %p204
    %p206 = scmp.ne.s32.totalorder %s192, %s193
    %p207 = scmp.eq.s32.totalorder %s22, 1
    %p208 = por %p206, %p207
    %p210 = scmp.ne.s32.totalorder %s193, %s209
    %p211 = scmp.eq.s32.totalorder %s22, 0
    %p212 = por %p210, %p211
    %s213 = ssub.s32 %s24, %s31
    %p214 = scmp.eq.s32.totalorder %s213, 0
    %s216 = sadd.s32 %s215, 1
    %s217 = scalar_select %p214, %s215, %s216
    %p220 = pneg %p214
    %p221 = scmp.eq.s32.totalorder %s16, 1
    %p222 = por %p220, %p221
    %p223 = scmp.ne.s32.totalorder %s215, %s218
    %p224 = scmp.eq.s32.totalorder %s16, 0
    %p225 = por %p223, %p224
    %p226 = scmp.ne.s32.totalorder %s215, %s218
    %p227 = scmp.eq.s32.totalorder %s21, 1
    %p228 = por %p226, %p227
    %p229 = scmp.ne.s32.totalorder %s218, %s219
    %p230 = scmp.eq.s32.totalorder %s21, 0
    %p231 = por %p229, %p230
    %p232 = scmp.ne.s32.totalorder %s218, %s219
    %p233 = scmp.eq.s32.totalorder %s22, 1
    %p234 = por %p232, %p233
    %p236 = scmp.ne.s32.totalorder %s219, %s235
    %p237 = scmp.eq.s32.totalorder %s22, 0
    %p238 = por %p236, %p237
    %s240 = sadd.s32 %s239, 1
    %p243 = scmp.eq.s32.totalorder %s16, 1
    %p244 = scmp.ne.s32.totalorder %s239, %s241
    %p245 = scmp.eq.s32.totalorder %s16, 0
    %p246 = por %p244, %p245
    %p247 = scmp.ne.s32.totalorder %s239, %s241
    %p248 = scmp.eq.s32.totalorder %s21, 1
    %p249 = por %p247, %p248
    %p250 = scmp.ne.s32.totalorder %s241, %s242
    %p251 = scmp.eq.s32.totalorder %s21, 0
    %p252 = por %p250, %p251
    %p253 = scmp.ne.s32.totalorder %s241, %s242
    %p254 = scmp.eq.s32.totalorder %s22, 1
    %p255 = por %p253, %p254
    %p257 = scmp.ne.s32.totalorder %s242, %s256
    %p258 = scmp.eq.s32.totalorder %s22, 0
    %p259 = por %p257, %p258
    %s261 = sadd.s32 %s260, 1
    %p264 = scmp.eq.s32.totalorder %s16, 1
    %p265 = scmp.ne.s32.totalorder %s260, %s262
    %p266 = scmp.eq.s32.totalorder %s16, 0
    %p267 = por %p265, %p266
    %p268 = scmp.ne.s32.totalorder %s260, %s262
    %p269 = scmp.eq.s32.totalorder %s21, 1
    %p270 = por %p268, %p269
    %p271 = scmp.ne.s32.totalorder %s262, %s263
    %p272 = scmp.eq.s32.totalorder %s21, 0
    %p273 = por %p271, %p272
    %p274 = scmp.ne.s32.totalorder %s262, %s263
    %p275 = scmp.eq.s32.totalorder %s22, 1
    %p276 = por %p274, %p275
    %p278 = scmp.ne.s32.totalorder %s263, %s277
    %p279 = scmp.eq.s32.totalorder %s22, 0
    %p280 = por %p278, %p279
    %s281 = ssub.s32 %s23, %s35
    %p282 = scmp.eq.s32.totalorder %s281, 0
    %s284 = sadd.s32 %s283, 1
    %s285 = scalar_select %p282, %s283, %s284
    %p288 = pneg %p282
    %p289 = scmp.eq.s32.totalorder %s16, 1
    %p290 = por %p288, %p289
    %p291 = scmp.ne.s32.totalorder %s283, %s286
    %p292 = scmp.eq.s32.totalorder %s16, 0
    %p293 = por %p291, %p292
    %p294 = scmp.ne.s32.totalorder %s283, %s286
    %p295 = scmp.eq.s32.totalorder %s21, 1
    %p296 = por %p294, %p295
    %p297 = scmp.ne.s32.totalorder %s286, %s287
    %p298 = scmp.eq.s32.totalorder %s21, 0
    %p299 = por %p297, %p298
    %p300 = scmp.ne.s32.totalorder %s286, %s287
    %p301 = scmp.eq.s32.totalorder %s22, 1
    %p302 = por %p300, %p301
    %p304 = scmp.ne.s32.totalorder %s287, %s303
    %p305 = scmp.eq.s32.totalorder %s22, 0
    %p306 = por %p304, %p305
    %p307 = scmp.le.s32.totalorder 1, %s16
    %p308 = scmp.lt.s32.totalorder %s16, 3
    %p309 = pnand %p307, %p308
    %p310 = pneg %p309
    // Predicated region
    $region9: #{mistral_backbone_forward.2} parent=5 // pred_check
      _
    $region10: #{mistral_backbone_forward.2} parent=5 // pred_check_branch
      %312 = sbr.rel (%p309) target = $region12
    $region11: #{mistral_backbone_forward.2} parent=5 // pred_region
      %s313 = ssub.s32 %s16, 1
      // Predicated region
      $region13: #{mistral_backbone_forward.2} parent=11 // pred_check
        %p314 = pneg %p54
      $region14: #{mistral_backbone_forward.2} parent=11 // pred_check_branch
        %316 = sbr.rel (%p314) target = $region16
      $region15: #{mistral_backbone_forward.2} parent=11 // pred_region
        %s317 = smul.u32 4, %s25
        %p318 = scmp.lt.s32.totalorder %s317, 3
        %s319 = scalar_select %p318, %s317, 3
        %s320 = smul.addr %s319, 8
        %s321 = scalar_lea.vmem %s0, %s320
        %s322 = smul.u32 4, %s25
      $region16: #{mistral_backbone_forward.2} parent=11 // pred_fallthru
        _
      // Predicated region
      $region17: #{mistral_backbone_forward.2} parent=11 // pred_check
        %p323 = pneg %p75
      $region18: #{mistral_backbone_forward.2} parent=11 // pred_check_branch
        %325 = sbr.rel (%p323) target = $region20
      $region19: #{mistral_backbone_forward.2} parent=11 // pred_region
        _
      $region20: #{mistral_backbone_forward.2} parent=11 // pred_fallthru
        _
      // Predicated region
      $region21: #{mistral_backbone_forward.2} parent=11 // pred_check
        %p326 = pneg %p252
      $region22: #{mistral_backbone_forward.2} parent=11 // pred_check_branch
        %328 = sbr.rel (%p326) target = $region24
      $region23: #{mistral_backbone_forward.2} parent=11 // pred_region
        _
      $region24: #{mistral_backbone_forward.2} parent=11 // pred_fallthru
        _
      // Predicated region
      $region25: #{mistral_backbone_forward.2} parent=11 // pred_check
        %p329 = pneg %p273
      $region26: #{mistral_backbone_forward.2} parent=11 // pred_check_branch
        %331 = sbr.rel (%p329) target = $region28
      $region27: #{mistral_backbone_forward.2} parent=11 // pred_region
        _
      $region28: #{mistral_backbone_forward.2} parent=11 // pred_fallthru
        _
    $region12: #{mistral_backbone_forward.2} parent=5 // pred_fallthru
      _
    %p332 = scmp.lt.s32.totalorder %s16, 2
    // Predicated region
    $region29: #{mistral_backbone_forward.2} parent=5 // pred_check
      %p333 = pneg %p332
    $region30: #{mistral_backbone_forward.2} parent=5 // pred_check_branch
      %335 = sbr.rel (%p333) target = $region32
    $region31: #{mistral_backbone_forward.2} parent=5 // pred_region
      // Predicated region
      $region33: #{mistral_backbone_forward.2} parent=31 // pred_check
        %p336 = pneg %p95
      $region34: #{mistral_backbone_forward.2} parent=31 // pred_check_branch
        %338 = sbr.rel (%p336) target = $region36
      $region35: #{mistral_backbone_forward.2} parent=31 // pred_region
        %p339 = scmp.lt.s32.totalorder %s24, 1
        %s340 = scalar_select %p339, %s24, 1
        %s341 = smul.addr %s340, 2
        %s342 = scalar_lea.vmem %s2, %s341
      $region36: #{mistral_backbone_forward.2} parent=31 // pred_fallthru
        _
      // Predicated region
      $region37: #{mistral_backbone_forward.2} parent=31 // pred_check
        %p343 = pneg %p121
      $region38: #{mistral_backbone_forward.2} parent=31 // pred_check_branch
        %345 = sbr.rel (%p343) target = $region40
      $region39: #{mistral_backbone_forward.2} parent=31 // pred_region
        %p346 = scmp.lt.s32.totalorder %s24, 1
        %s347 = scalar_select %p346, %s24, 1
        %s348 = smul.addr %s347, 192
        %s349 = smul.addr %s348, 4
        %s350 = scalar_lea.vmem %s3, %s349
      $region40: #{mistral_backbone_forward.2} parent=31 // pred_fallthru
        _
      // Predicated region
      $region41: #{mistral_backbone_forward.2} parent=31 // pred_check
        %p351 = pneg %p147
      $region42: #{mistral_backbone_forward.2} parent=31 // pred_check_branch
        %353 = sbr.rel (%p351) target = $region44
      $region43: #{mistral_backbone_forward.2} parent=31 // pred_region
        %p354 = scmp.lt.s32.totalorder %s24, 1
        %s355 = scalar_select %p354, %s24, 1
        %s356 = smul.addr %s355, 64
        %s357 = smul.addr %s356, 4
        %s358 = scalar_lea.vmem %s4, %s357
      $region44: #{mistral_backbone_forward.2} parent=31 // pred_fallthru
        _
      // Predicated region
      $region45: #{mistral_backbone_forward.2} parent=31 // pred_check
        %p359 = pneg %p173
      $region46: #{mistral_backbone_forward.2} parent=31 // pred_check_branch
        %361 = sbr.rel (%p359) target = $region48
      $region47: #{mistral_backbone_forward.2} parent=31 // pred_region
        %p362 = scmp.lt.s32.totalorder %s24, 1
        %s363 = scalar_select %p362, %s24, 1
        %s364 = smul.addr %s363, 2
        %s365 = scalar_lea.vmem %s5, %s364
      $region48: #{mistral_backbone_forward.2} parent=31 // pred_fallthru
        _
      // Predicated region
      $region49: #{mistral_backbone_forward.2} parent=31 // pred_check
        %p366 = pneg %p199
      $region50: #{mistral_backbone_forward.2} parent=31 // pred_check_branch
        %368 = sbr.rel (%p366) target = $region52
      $region51: #{mistral_backbone_forward.2} parent=31 // pred_region
        %p369 = scmp.lt.s32.totalorder %s24, 1
        %s370 = scalar_select %p369, %s24, 1
        %s371 = smul.addr %s370, 256
        %s372 = smul.addr %s371, 4
        %s373 = scalar_lea.vmem %s6, %s372
      $region52: #{mistral_backbone_forward.2} parent=31 // pred_fallthru
        _
      // Predicated region
      $region53: #{mistral_backbone_forward.2} parent=31 // pred_check
        %p374 = pneg %p225
      $region54: #{mistral_backbone_forward.2} parent=31 // pred_check_branch
        %376 = sbr.rel (%p374) target = $region56
      $region55: #{mistral_backbone_forward.2} parent=31 // pred_region
        %p377 = scmp.lt.s32.totalorder %s24, 1
        %s378 = scalar_select %p377, %s24, 1
        %s379 = smul.addr %s378, 128
        %s380 = smul.addr %s379, 4
        %s381 = scalar_lea.vmem %s7, %s380
      $region56: #{mistral_backbone_forward.2} parent=31 // pred_fallthru
        _
    $region32: #{mistral_backbone_forward.2} parent=5 // pred_fallthru
      _
    %p382 = scmp.le.s32.totalorder 1, %s16
    %p383 = scmp.lt.s32.totalorder %s16, 3
    %p384 = pnand %p382, %p383
    %p385 = pneg %p384
    // Predicated region
    $region57: #{mistral_backbone_forward.2} parent=5 // pred_check
      _
    $region58: #{mistral_backbone_forward.2} parent=5 // pred_check_branch
      %387 = sbr.rel (%p384) target = $region60
    $region59: #{mistral_backbone_forward.2} parent=5 // pred_region
      %s388 = ssub.s32 %s16, 1
      %s389 = smul.u32 4, %s25
      %p390 = scmp.lt.s32.totalorder %s389, 3
      %s391 = scalar_select %p390, %s389, 3
      %s392 = smul.addr %s391, 8
      %s393 = scalar_lea.vmem %s0, %s392
      %p394 = pneg %p54
      %p395 = pneg %p51
      %p396 = pneg %p75
      %p397 = pneg %p72
      %p398 = scmp.lt.s32.totalorder %s26, 1
      %s399 = scalar_select %p398, %s26, 1
      %s400 = smul.addr %s399, 2
      %s401 = scalar_lea.vmem %s2, %s400
      %p402 = pneg %p101
      %p403 = pneg %p98
      %p404 = scmp.lt.s32.totalorder %s26, 1
      %s405 = scalar_select %p404, %s26, 1
      %s406 = smul.addr %s405, 192
      %s407 = smul.addr %s406, 4
      %s408 = scalar_lea.vmem %s3, %s407
      %p409 = pneg %p127
      %p410 = pneg %p124
      %p411 = scmp.lt.s32.totalorder %s26, 1
      %s412 = scalar_select %p411, %s26, 1
      %s413 = smul.addr %s412, 64
      %s414 = smul.addr %s413, 4
      %s415 = scalar_lea.vmem %s4, %s414
      %p416 = pneg %p153
      %p417 = pneg %p150
      %p418 = scmp.lt.s32.totalorder %s26, 1
      %s419 = scalar_select %p418, %s26, 1
      %s420 = smul.addr %s419, 2
      %s421 = scalar_lea.vmem %s5, %s420
      %p422 = pneg %p179
      %p423 = pneg %p176
      %p424 = scmp.lt.s32.totalorder %s26, 1
      %s425 = scalar_select %p424, %s26, 1
      %s426 = smul.addr %s425, 256
      %s427 = smul.addr %s426, 4
      %s428 = scalar_lea.vmem %s6, %s427
      %p429 = pneg %p205
      %p430 = pneg %p202
      %p431 = scmp.lt.s32.totalorder %s26, 1
      %s432 = scalar_select %p431, %s26, 1
      %s433 = smul.addr %s432, 128
      %s434 = smul.addr %s433, 4
      %s435 = scalar_lea.vmem %s7, %s434
      %p436 = pneg %p231
      %p437 = pneg %p228
      %p438 = pneg %p252
      %p439 = pneg %p249
      %p440 = pneg %p273
      %p441 = pneg %p270
      %p442 = pneg %p299
      %p443 = pneg %p296
      %s444 = smul.u32 4, %s25
      %p445 = scmp.lt.s32.totalorder %s444, 3
      %s446 = scalar_select %p445, %s444, 3
      %s447 = smul.addr %s446, 2
      %s448 = smul.addr %s447, 8
      %s449 = scalar_lea.vmem %s10, %s448
      %s450 = smul.u32 4, %s25
      %p451 = scmp.lt.s32.totalorder %s450, 3
      %s452 = scalar_select %p451, %s450, 3
      %s453 = smul.addr %s452, 8
      %s454 = scalar_lea.vmem %s0, %s453
      %s455 = smul.u32 4, %s25
      %p456 = scmp.lt.s32.totalorder %s26, 1
      %s457 = scalar_select %p456, %s26, 1
      %s458 = smul.addr %s457, 2
      %s459 = scalar_lea.vmem %s2, %s458
      %p460 = scmp.lt.s32.totalorder %s26, 1
      %s461 = scalar_select %p460, %s26, 1
      %s462 = smul.addr %s461, 192
      %s463 = smul.addr %s462, 4
      %s464 = scalar_lea.vmem %s3, %s463
      %p465 = scmp.lt.s32.totalorder %s26, 1
      %s466 = scalar_select %p465, %s26, 1
      %s467 = smul.addr %s466, 64
      %s468 = smul.addr %s467, 4
      %s469 = scalar_lea.vmem %s4, %s468
      %p470 = scmp.lt.s32.totalorder %s26, 1
      %s471 = scalar_select %p470, %s26, 1
      %s472 = smul.addr %s471, 2
      %s473 = scalar_lea.vmem %s5, %s472
      %p474 = scmp.lt.s32.totalorder %s26, 1
      %s475 = scalar_select %p474, %s26, 1
      %s476 = smul.addr %s475, 256
      %s477 = smul.addr %s476, 4
      %s478 = scalar_lea.vmem %s6, %s477
      %p479 = scmp.lt.s32.totalorder %s26, 1
      %s480 = scalar_select %p479, %s26, 1
      %s481 = smul.addr %s480, 128
      %s482 = smul.addr %s481, 4
      %s483 = scalar_lea.vmem %s7, %s482
      %s484 = smul.u32 4, %s25
      %p485 = scmp.lt.s32.totalorder %s484, 3
      %s486 = scalar_select %p485, %s484, 3
      %s487 = smul.addr %s486, 2
      %s488 = smul.addr %s487, 8
      %s489 = scalar_lea.vmem %s10, %s488
      %s490 = smul.u32 4, %s25
      %p492 = scmp.eq.s32.totalorder %s26, 0
      // Predicated region
      $region61: #{mistral_backbone_forward.2} parent=59 // pred_check
        %p493 = pneg %p492
      $region62: #{mistral_backbone_forward.2} parent=59 // pred_check_branch
        %495 = sbr.rel (%p493) target = $region64
      $region63: #{mistral_backbone_forward.2} parent=59 // pred_region
        %v496 = vlaneseq
        %v497 = vand.u32 %v496, 127
        %v498 = vadd.s32 %v497, 128
        %v499 = vld [vmem:[%s454] sm:$0xff]
        %v500 = vld [vmem:[%s454 + $0x8] sm:$0xff]
        %v501 = vld [vmem:[%s454 + $0x10] sm:$0xff]
        %v502 = vld [vmem:[%s454 + $0x18] sm:$0xff]
        %503 = vset.pattern.permute.xlu0 0
        %504 = vperm.xlu0 %503, %v499
        %v505 = vpop.permute.xlu0 %504
        %506 = vset.pattern.permute.xlu0 0
        %507 = vperm.xlu0 %506, %v500
        %v508 = vpop.permute.xlu0 %507
        %509 = vset.pattern.permute.xlu0 0
        %510 = vperm.xlu0 %509, %v501
        %v511 = vpop.permute.xlu0 %510
        %512 = vset.pattern.permute.xlu0 0
        %513 = vperm.xlu0 %512, %v502
        %v514 = vpop.permute.xlu0 %513
        %vm515 = vcmp.eq.s32.totalorder %v497, %v505
        %vm516 = vcmp.eq.s32.totalorder %v498, %v505
        %vm517 = vcmp.eq.s32.totalorder %v497, %v508
        %vm518 = vcmp.eq.s32.totalorder %v498, %v508
        %vm519 = vcmp.eq.s32.totalorder %v497, %v511
        %vm520 = vcmp.eq.s32.totalorder %v498, %v511
        %vm521 = vcmp.eq.s32.totalorder %v497, %v514
        %vm522 = vcmp.eq.s32.totalorder %v498, %v514
        %v523 = vsel %vm515, 1, 0
        %v524 = vsel %vm516, 1, 0
        %v525 = vsel %vm517, 1, 0
        %v526 = vsel %vm518, 1, 0
        %v527 = vsel %vm519, 1, 0
        %v528 = vsel %vm520, 1, 0
        %v529 = vsel %vm521, 1, 0
        %v530 = vsel %vm522, 1, 0
        %v531 = vcvt.s32.f32 %v523
        %v532 = vcvt.s32.f32 %v524
        %v533 = vcvt.s32.f32 %v525
        %v534 = vcvt.s32.f32 %v526
        %v535 = vcvt.s32.f32 %v527
        %v536 = vcvt.s32.f32 %v528
        %v537 = vcvt.s32.f32 %v529
        %v538 = vcvt.s32.f32 %v530
        %v539 = vpack.c.bf16 %v533, %v531
        %v540 = vpack.c.bf16 %v534, %v532
        %v541 = vpack.c.bf16 %v537, %v535
        %v542 = vpack.c.bf16 %v538, %v536
        %v543 = vld [vmem:[%s1] sm:$0xff]
        %v544 = vld [vmem:[%s1 + $0x8] sm:$0xff]
        %v545 = vld [vmem:[%s1 + $0x10] sm:$0xff]
        %v546 = vld [vmem:[%s1 + $0x18] sm:$0xff]
        %v547 = vld [vmem:[%s1 + $0x20] sm:$0xff]
        %v548 = vld [vmem:[%s1 + $0x28] sm:$0xff]
        %v549 = vld [vmem:[%s1 + $0x30] sm:$0xff]
        %v550 = vld [vmem:[%s1 + $0x38] sm:$0xff]
        %v551 = vld [vmem:[%s1 + $0x40] sm:$0xff]
        %v552 = vld [vmem:[%s1 + $0x48] sm:$0xff]
        %v553 = vld [vmem:[%s1 + $0x50] sm:$0xff]
        %v554 = vld [vmem:[%s1 + $0x58] sm:$0xff]
        %v555 = vld [vmem:[%s1 + $0x60] sm:$0xff]
        %v556 = vld [vmem:[%s1 + $0x68] sm:$0xff]
        %v557 = vld [vmem:[%s1 + $0x70] sm:$0xff]
        %v558 = vld [vmem:[%s1 + $0x78] sm:$0xff]
        %v559 = vld [vmem:[%s1 + $0x80] sm:$0xff]
        %v560 = vld [vmem:[%s1 + $0x88] sm:$0xff]
        %v561 = vld [vmem:[%s1 + $0x90] sm:$0xff]
        %v562 = vld [vmem:[%s1 + $0x98] sm:$0xff]
        %v563 = vld [vmem:[%s1 + $0xa0] sm:$0xff]
        %v564 = vld [vmem:[%s1 + $0xa8] sm:$0xff]
        %v565 = vld [vmem:[%s1 + $0xb0] sm:$0xff]
        %v566 = vld [vmem:[%s1 + $0xb8] sm:$0xff]
        %v567 = vld [vmem:[%s1 + $0xc0] sm:$0xff]
        %v568 = vld [vmem:[%s1 + $0xc8] sm:$0xff]
        %v569 = vld [vmem:[%s1 + $0xd0] sm:$0xff]
        %v570 = vld [vmem:[%s1 + $0xd8] sm:$0xff]
        %v571 = vld [vmem:[%s1 + $0xe0] sm:$0xff]
        %v572 = vld [vmem:[%s1 + $0xe8] sm:$0xff]
        %v573 = vld [vmem:[%s1 + $0xf0] sm:$0xff]
        %v574 = vld [vmem:[%s1 + $0xf8] sm:$0xff]
        %v607 = vunpack.c.l.b16 %v543
        %v608 = vunpack.c.h.b16 %v543
        %v609 = vunpack.c.l.b16 %v544
        %v610 = vunpack.c.h.b16 %v544
        %v611 = vunpack.c.l.b16 %v545
        %v612 = vunpack.c.h.b16 %v545
        %v613 = vunpack.c.l.b16 %v546
        %v614 = vunpack.c.h.b16 %v546
        %v615 = vunpack.c.l.b16 %v547
        %v616 = vunpack.c.h.b16 %v547
        %v617 = vunpack.c.l.b16 %v548
        %v618 = vunpack.c.h.b16 %v548
        %v619 = vunpack.c.l.b16 %v549
        %v620 = vunpack.c.h.b16 %v549
        %v621 = vunpack.c.l.b16 %v550
        %v622 = vunpack.c.h.b16 %v550
        %v623 = vunpack.c.l.b16 %v551
        %v624 = vunpack.c.h.b16 %v551
        %v625 = vunpack.c.l.b16 %v552
        %v626 = vunpack.c.h.b16 %v552
        %v627 = vunpack.c.l.b16 %v553
        %v628 = vunpack.c.h.b16 %v553
        %v629 = vunpack.c.l.b16 %v554
        %v630 = vunpack.c.h.b16 %v554
        %v631 = vunpack.c.l.b16 %v555
        %v632 = vunpack.c.h.b16 %v555
        %v633 = vunpack.c.l.b16 %v556
        %v634 = vunpack.c.h.b16 %v556
        %v635 = vunpack.c.l.b16 %v557
        %v636 = vunpack.c.h.b16 %v557
        %v637 = vunpack.c.l.b16 %v558
        %v638 = vunpack.c.h.b16 %v558
        %v639 = vunpack.c.l.b16 %v559
        %v640 = vunpack.c.h.b16 %v559
        %v641 = vunpack.c.l.b16 %v560
        %v642 = vunpack.c.h.b16 %v560
        %v643 = vunpack.c.l.b16 %v561
        %v644 = vunpack.c.h.b16 %v561
        %v645 = vunpack.c.l.b16 %v562
        %v646 = vunpack.c.h.b16 %v562
        %v647 = vunpack.c.l.b16 %v563
        %v648 = vunpack.c.h.b16 %v563
        %v649 = vunpack.c.l.b16 %v564
        %v650 = vunpack.c.h.b16 %v564
        %v651 = vunpack.c.l.b16 %v565
        %v652 = vunpack.c.h.b16 %v565
        %v653 = vunpack.c.l.b16 %v566
        %v654 = vunpack.c.h.b16 %v566
        %v655 = vunpack.c.l.b16 %v567
        %v656 = vunpack.c.h.b16 %v567
        %v657 = vunpack.c.l.b16 %v568
        %v658 = vunpack.c.h.b16 %v568
        %v659 = vunpack.c.l.b16 %v569
        %v660 = vunpack.c.h.b16 %v569
        %v661 = vunpack.c.l.b16 %v570
        %v662 = vunpack.c.h.b16 %v570
        %v663 = vunpack.c.l.b16 %v571
        %v664 = vunpack.c.h.b16 %v571
        %v665 = vunpack.c.l.b16 %v572
        %v666 = vunpack.c.h.b16 %v572
        %v667 = vunpack.c.l.b16 %v573
        %v668 = vunpack.c.h.b16 %v573
        %v669 = vunpack.c.l.b16 %v574
        %v670 = vunpack.c.h.b16 %v574
        %v671 = vpack.c.b16 %v609, %v607
        %v672 = vpack.c.b16 %v610, %v608
        %v673 = vpack.c.b16 %v613, %v611
        %v674 = vpack.c.b16 %v614, %v612
        %v675 = vpack.c.b16 %v617, %v615
        %v676 = vpack.c.b16 %v618, %v616
        %v677 = vpack.c.b16 %v621, %v619
        %v678 = vpack.c.b16 %v622, %v620
        %v679 = vpack.c.b16 %v625, %v623
        %v680 = vpack.c.b16 %v626, %v624
        %v681 = vpack.c.b16 %v629, %v627
        %v682 = vpack.c.b16 %v630, %v628
        %v683 = vpack.c.b16 %v633, %v631
        %v684 = vpack.c.b16 %v634, %v632
        %v685 = vpack.c.b16 %v637, %v635
        %v686 = vpack.c.b16 %v638, %v636
        %v687 = vpack.c.b16 %v641, %v639
        %v688 = vpack.c.b16 %v642, %v640
        %v689 = vpack.c.b16 %v645, %v643
        %v690 = vpack.c.b16 %v646, %v644
        %v691 = vpack.c.b16 %v649, %v647
        %v692 = vpack.c.b16 %v650, %v648
        %v693 = vpack.c.b16 %v653, %v651
        %v694 = vpack.c.b16 %v654, %v652
        %v695 = vpack.c.b16 %v657, %v655
        %v696 = vpack.c.b16 %v658, %v656
        %v697 = vpack.c.b16 %v661, %v659
        %v698 = vpack.c.b16 %v662, %v660
        %v699 = vpack.c.b16 %v665, %v663
        %v700 = vpack.c.b16 %v666, %v664
        %v701 = vpack.c.b16 %v669, %v667
        %v702 = vpack.c.b16 %v670, %v668
        %735 = vmatprep.subr.bf16.mxu0 %v672
        %736 = vmatpush1.bf16.msra.mxu0 %v671
        %737 = vmatprep.subr.bf16.mxu0 %v674
        %738 = vmatpush1.bf16.msra.mxu0 %v673
        %739 = vmatprep.subr.bf16.mxu0 %v676
        %740 = vmatpush1.bf16.msra.mxu0 %v675
        %741 = vmatprep.subr.bf16.mxu0 %v678
        %742 = vmatpush1.bf16.msra.mxu0 %v677
        %743 = vmatprep.subr.bf16.mxu0 %v680
        %744 = vmatpush1.bf16.msra.mxu0 %v679
        %745 = vmatprep.subr.bf16.mxu0 %v682
        %746 = vmatpush1.bf16.msra.mxu0 %v681
        %747 = vmatprep.subr.bf16.mxu0 %v684
        %748 = vmatpush1.bf16.msra.mxu0 %v683
        %749 = vmatprep.subr.bf16.mxu0 %v686
        %750 = vmatpush1.bf16.msra.mxu0 %v685
        %751 = vmatprep.subr.bf16.mxu0 %v688
        %752 = vmatpush1.bf16.msra.mxu0 %v687
        %753 = vmatprep.subr.bf16.mxu0 %v690
        %754 = vmatpush1.bf16.msra.mxu0 %v689
        %755 = vmatprep.subr.bf16.mxu0 %v692
        %756 = vmatpush1.bf16.msra.mxu0 %v691
        %757 = vmatprep.subr.bf16.mxu0 %v694
        %758 = vmatpush1.bf16.msra.mxu0 %v693
        %759 = vmatprep.subr.bf16.mxu0 %v696
        %760 = vmatpush1.bf16.msra.mxu0 %v695
        %761 = vmatprep.subr.bf16.mxu0 %v698
        %762 = vmatpush1.bf16.msra.mxu0 %v697
        %763 = vmatprep.subr.bf16.mxu0 %v700
        %764 = vmatpush1.bf16.msra.mxu0 %v699
        %765 = vmatprep.subr.bf16.mxu0 %v702
        %766 = vmatpush1.bf16.msra.mxu0 %v701
        %767 = vmatprep.mubr.bf16.mxu0 %v540
        %768 = vmatmul.mubr.bf16.gmra.mrb[0].mxu0 %v539
        %v769 = vpop.f32.mrb[0].mxu0
        %v770 = vadd.f32 0.0, %v769
        %v771 = vpop.f32.mrb[0].mxu0
        %v772 = vadd.f32 0.0, %v771
        %v773 = vpop.f32.mrb[0].mxu0
        %v774 = vadd.f32 0.0, %v773
        %v775 = vpop.f32.mrb[0].mxu0
        %v776 = vadd.f32 0.0, %v775
        %777 = vmatprep.mubr.bf16.mxu0 %v542
        %778 = vmatmul.mubr.bf16.gmra.mrb[0].mxu0 %v541
        %v779 = vpop.f32.mrb[0].mxu0
        %v780 = vadd.f32 0.0, %v779
        %v781 = vpop.f32.mrb[0].mxu0
        %v782 = vadd.f32 0.0, %v781
        %v783 = vpop.f32.mrb[0].mxu0
        %v784 = vadd.f32 0.0, %v783
        %v785 = vpop.f32.mrb[0].mxu0
        %v786 = vadd.f32 0.0, %v785
        %787 = vdwg.mxu0
        %788 = vst [vmem:[%s489] sm:$0xff] %v770
        %789 = vst [vmem:[%s489 + $0x8] sm:$0xff] %v772
        %790 = vst [vmem:[%s489 + $0x10] sm:$0xff] %v774
        %791 = vst [vmem:[%s489 + $0x18] sm:$0xff] %v776
        %792 = vst [vmem:[%s489 + $0x20] sm:$0xff] %v780
        %793 = vst [vmem:[%s489 + $0x28] sm:$0xff] %v782
        %794 = vst [vmem:[%s489 + $0x30] sm:$0xff] %v784
        %795 = vst [vmem:[%s489 + $0x38] sm:$0xff] %v786
      $region64: #{mistral_backbone_forward.2} parent=59 // pred_fallthru
        _
      %v796 = vld [vmem:[%s489] sm:$0xff]
      %v797 = vld [vmem:[%s489 + $0x8] sm:$0xff]
      %v798 = vld [vmem:[%s489 + $0x10] sm:$0xff]
      %v799 = vld [vmem:[%s489 + $0x18] sm:$0xff]
      %v800 = vld [vmem:[%s489 + $0x20] sm:$0xff]
      %v801 = vld [vmem:[%s489 + $0x28] sm:$0xff]
      %v802 = vld [vmem:[%s489 + $0x30] sm:$0xff]
      %v803 = vld [vmem:[%s489 + $0x38] sm:$0xff]
      %v804 = vld [vmem:[%s8] sm:$0xff]
      %v805 = vld [vmem:[%s8 + $0x8] sm:$0xff]
      %v806 = vld [vmem:[%s9] sm:$0xff]
      %v807 = vld [vmem:[%s9 + $0x8] sm:$0xff]
      %v808 = vld [vmem:[%s459] sm:$0x3]
      %v809 = vmul.f32 %v796, %v796
      %v810 = vmul.f32 %v797, %v797
      %v811 = vmul.f32 %v798, %v798
      %v812 = vmul.f32 %v799, %v799
      %v813 = vmul.f32 %v800, %v800
      %v814 = vmul.f32 %v801, %v801
      %v815 = vmul.f32 %v802, %v802
      %v816 = vmul.f32 %v803, %v803
      %v817 = vadd.f32 %v809, %v810
      %818 = vadd.xlane.f32.xlu0 %v817
      %v819 = vpop.xlane.xlu0 %818
      %v820 = vadd.f32 %v811, %v812
      %821 = vadd.xlane.f32.xlu0 %v820
      %v822 = vpop.xlane.xlu0 %821
      %v823 = vadd.f32 %v813, %v814
      %824 = vadd.xlane.f32.xlu0 %v823
      %v825 = vpop.xlane.xlu0 %824
      %v826 = vadd.f32 %v815, %v816
      %827 = vadd.xlane.f32.xlu0 %v826
      %v828 = vpop.xlane.xlu0 %827
      %v829 = vrcp.pop 256.0
      %v830 = vmul.f32 %v819, %v829
      %v831 = vmul.f32 %v822, %v829
      %v832 = vmul.f32 %v825, %v829
      %v833 = vmul.f32 %v828, %v829
      %v834 = vadd.f32 %v830, 1e-06
      %v835 = vadd.f32 %v831, 1e-06
      %v836 = vadd.f32 %v832, 1e-06
      %v837 = vadd.f32 %v833, 1e-06
      %v838 = vrsqrt.pop %v834
      %v839 = vrsqrt.pop %v835
      %v840 = vrsqrt.pop %v836
      %v841 = vrsqrt.pop %v837
      %v842 = vmul.f32 %v796, %v838
      %v843 = vmul.f32 %v797, %v838
      %v844 = vmul.f32 %v798, %v839
      %v845 = vmul.f32 %v799, %v839
      %v846 = vmul.f32 %v800, %v840
      %v847 = vmul.f32 %v801, %v840
      %v848 = vmul.f32 %v802, %v841
      %v849 = vmul.f32 %v803, %v841
      %v851 = vlaneseq
      %v852 = vshrl.u32 %v851, 7
      %v853 = vsub.s32 0, %v852
      %v854 = vrot.slane %v808, %v853
      %v855 = vlaneseq
      %v856 = vshrl.u32 %v855, 7
      %v857 = vsub.s32 1, %v856
      %v858 = vrot.slane %v808, %v857
      %v861 = vmul.f32 %v842, %v854
      %v862 = vmul.f32 %v843, %v858
      %v863 = vmul.f32 %v844, %v854
      %v864 = vmul.f32 %v845, %v858
      %v865 = vmul.f32 %v846, %v854
      %v866 = vmul.f32 %v847, %v858
      %v867 = vmul.f32 %v848, %v854
      %v868 = vmul.f32 %v849, %v858
      %v869 = vpack.c.bf16 %v863, %v861
      %v870 = vpack.c.bf16 %v864, %v862
      %v871 = vpack.c.bf16 %v867, %v865
      %v872 = vpack.c.bf16 %v868, %v866
      %v873 = vld [vmem:[%s464] sm:$0xff]
      %v874 = vld [vmem:[%s464 + $0x8] sm:$0xff]
      %v875 = vld [vmem:[%s464 + $0x10] sm:$0xff]
      %v876 = vld [vmem:[%s464 + $0x18] sm:$0xff]
      %v877 = vld [vmem:[%s464 + $0x20] sm:$0xff]
      %v878 = vld [vmem:[%s464 + $0x28] sm:$0xff]
      %v879 = vld [vmem:[%s464 + $0x30] sm:$0xff]
      %v880 = vld [vmem:[%s464 + $0x38] sm:$0xff]
      %v881 = vld [vmem:[%s464 + $0x40] sm:$0xff]
      %v882 = vld [vmem:[%s464 + $0x48] sm:$0xff]
      %v883 = vld [vmem:[%s464 + $0x50] sm:$0xff]
      %v884 = vld [vmem:[%s464 + $0x58] sm:$0xff]
      %v885 = vld [vmem:[%s464 + $0x60] sm:$0xff]
      %v886 = vld [vmem:[%s464 + $0x68] sm:$0xff]
      %v887 = vld [vmem:[%s464 + $0x70] sm:$0xff]
      %v888 = vld [vmem:[%s464 + $0x78] sm:$0xff]
      %v889 = vld [vmem:[%s464 + $0x80] sm:$0xff]
      %v890 = vld [vmem:[%s464 + $0x88] sm:$0xff]
      %v891 = vld [vmem:[%s464 + $0x90] sm:$0xff]
      %v892 = vld [vmem:[%s464 + $0x98] sm:$0xff]
      %v893 = vld [vmem:[%s464 + $0xa0] sm:$0xff]
      %v894 = vld [vmem:[%s464 + $0xa8] sm:$0xff]
      %v895 = vld [vmem:[%s464 + $0xb0] sm:$0xff]
      %v896 = vld [vmem:[%s464 + $0xb8] sm:$0xff]
      %v897 = vld [vmem:[%s464 + $0xc0] sm:$0xff]
      %v898 = vld [vmem:[%s464 + $0xc8] sm:$0xff]
      %v899 = vld [vmem:[%s464 + $0xd0] sm:$0xff]
      %v900 = vld [vmem:[%s464 + $0xd8] sm:$0xff]
      %v901 = vld [vmem:[%s464 + $0xe0] sm:$0xff]
      %v902 = vld [vmem:[%s464 + $0xe8] sm:$0xff]
      %v903 = vld [vmem:[%s464 + $0xf0] sm:$0xff]
      %v904 = vld [vmem:[%s464 + $0xf8] sm:$0xff]
      %v905 = vld [vmem:[%s464 + $0x100] sm:$0xff]
      %v906 = vld [vmem:[%s464 + $0x108] sm:$0xff]
      %v907 = vld [vmem:[%s464 + $0x110] sm:$0xff]
      %v908 = vld [vmem:[%s464 + $0x118] sm:$0xff]
      %v909 = vld [vmem:[%s464 + $0x120] sm:$0xff]
      %v910 = vld [vmem:[%s464 + $0x128] sm:$0xff]
      %v911 = vld [vmem:[%s464 + $0x130] sm:$0xff]
      %v912 = vld [vmem:[%s464 + $0x138] sm:$0xff]
      %v913 = vld [vmem:[%s464 + $0x140] sm:$0xff]
      %v914 = vld [vmem:[%s464 + $0x148] sm:$0xff]
      %v915 = vld [vmem:[%s464 + $0x150] sm:$0xff]
      %v916 = vld [vmem:[%s464 + $0x158] sm:$0xff]
      %v917 = vld [vmem:[%s464 + $0x160] sm:$0xff]
      %v918 = vld [vmem:[%s464 + $0x168] sm:$0xff]
      %v919 = vld [vmem:[%s464 + $0x170] sm:$0xff]
      %v920 = vld [vmem:[%s464 + $0x178] sm:$0xff]
      %v921 = vld [vmem:[%s464 + $0x180] sm:$0xff]
      %v922 = vld [vmem:[%s464 + $0x188] sm:$0xff]
      %v923 = vld [vmem:[%s464 + $0x190] sm:$0xff]
      %v924 = vld [vmem:[%s464 + $0x198] sm:$0xff]
      %v925 = vld [vmem:[%s464 + $0x1a0] sm:$0xff]
      %v926 = vld [vmem:[%s464 + $0x1a8] sm:$0xff]
      %v927 = vld [vmem:[%s464 + $0x1b0] sm:$0xff]
      %v928 = vld [vmem:[%s464 + $0x1b8] sm:$0xff]
      %v929 = vld [vmem:[%s464 + $0x1c0] sm:$0xff]
      %v930 = vld [vmem:[%s464 + $0x1c8] sm:$0xff]
      %v931 = vld [vmem:[%s464 + $0x1d0] sm:$0xff]
      %v932 = vld [vmem:[%s464 + $0x1d8] sm:$0xff]
      %v933 = vld [vmem:[%s464 + $0x1e0] sm:$0xff]
      %v934 = vld [vmem:[%s464 + $0x1e8] sm:$0xff]
      %v935 = vld [vmem:[%s464 + $0x1f0] sm:$0xff]
      %v936 = vld [vmem:[%s464 + $0x1f8] sm:$0xff]
      %v937 = vld [vmem:[%s464 + $0x200] sm:$0xff]
      %v938 = vld [vmem:[%s464 + $0x208] sm:$0xff]
      %v939 = vld [vmem:[%s464 + $0x210] sm:$0xff]
      %v940 = vld [vmem:[%s464 + $0x218] sm:$0xff]
      %v941 = vld [vmem:[%s464 + $0x220] sm:$0xff]
      %v942 = vld [vmem:[%s464 + $0x228] sm:$0xff]
      %v943 = vld [vmem:[%s464 + $0x230] sm:$0xff]
      %v944 = vld [vmem:[%s464 + $0x238] sm:$0xff]
      %v945 = vld [vmem:[%s464 + $0x240] sm:$0xff]
      %v946 = vld [vmem:[%s464 + $0x248] sm:$0xff]
      %v947 = vld [vmem:[%s464 + $0x250] sm:$0xff]
      %v948 = vld [vmem:[%s464 + $0x258] sm:$0xff]
      %v949 = vld [vmem:[%s464 + $0x260] sm:$0xff]
      %v950 = vld [vmem:[%s464 + $0x268] sm:$0xff]
      %v951 = vld [vmem:[%s464 + $0x270] sm:$0xff]
      %v952 = vld [vmem:[%s464 + $0x278] sm:$0xff]
      %v953 = vld [vmem:[%s464 + $0x280] sm:$0xff]
      %v954 = vld [vmem:[%s464 + $0x288] sm:$0xff]
      %v955 = vld [vmem:[%s464 + $0x290] sm:$0xff]
      %v956 = vld [vmem:[%s464 + $0x298] sm:$0xff]
      %v957 = vld [vmem:[%s464 + $0x2a0] sm:$0xff]
      %v958 = vld [vmem:[%s464 + $0x2a8] sm:$0xff]
      %v959 = vld [vmem:[%s464 + $0x2b0] sm:$0xff]
      %v960 = vld [vmem:[%s464 + $0x2b8] sm:$0xff]
      %v961 = vld [vmem:[%s464 + $0x2c0] sm:$0xff]
      %v962 = vld [vmem:[%s464 + $0x2c8] sm:$0xff]
      %v963 = vld [vmem:[%s464 + $0x2d0] sm:$0xff]
      %v964 = vld [vmem:[%s464 + $0x2d8] sm:$0xff]
      %v965 = vld [vmem:[%s464 + $0x2e0] sm:$0xff]
      %v966 = vld [vmem:[%s464 + $0x2e8] sm:$0xff]
      %v967 = vld [vmem:[%s464 + $0x2f0] sm:$0xff]
      %v968 = vld [vmem:[%s464 + $0x2f8] sm:$0xff]
      %v1065 = vunpack.c.l.b16 %v873
      %v1066 = vunpack.c.h.b16 %v873
      %v1067 = vunpack.c.l.b16 %v874
      %v1068 = vunpack.c.h.b16 %v874
      %v1069 = vunpack.c.l.b16 %v875
      %v1070 = vunpack.c.h.b16 %v875
      %v1071 = vunpack.c.l.b16 %v876
      %v1072 = vunpack.c.h.b16 %v876
      %v1073 = vunpack.c.l.b16 %v877
      %v1074 = vunpack.c.h.b16 %v877
      %v1075 = vunpack.c.l.b16 %v878
      %v1076 = vunpack.c.h.b16 %v878
      %v1077 = vunpack.c.l.b16 %v879
      %v1078 = vunpack.c.h.b16 %v879
      %v1079 = vunpack.c.l.b16 %v880
      %v1080 = vunpack.c.h.b16 %v880
      %v1081 = vunpack.c.l.b16 %v881
      %v1082 = vunpack.c.h.b16 %v881
      %v1083 = vunpack.c.l.b16 %v882
      %v1084 = vunpack.c.h.b16 %v882
      %v1085 = vunpack.c.l.b16 %v883
      %v1086 = vunpack.c.h.b16 %v883
      %v1087 = vunpack.c.l.b16 %v884
      %v1088 = vunpack.c.h.b16 %v884
      %v1089 = vunpack.c.l.b16 %v885
      %v1090 = vunpack.c.h.b16 %v885
      %v1091 = vunpack.c.l.b16 %v886
      %v1092 = vunpack.c.h.b16 %v886
      %v1093 = vunpack.c.l.b16 %v887
      %v1094 = vunpack.c.h.b16 %v887
      %v1095 = vunpack.c.l.b16 %v888
      %v1096 = vunpack.c.h.b16 %v888
      %v1097 = vunpack.c.l.b16 %v889
      %v1098 = vunpack.c.h.b16 %v889
      %v1099 = vunpack.c.l.b16 %v890
      %v1100 = vunpack.c.h.b16 %v890
      %v1101 = vunpack.c.l.b16 %v891
      %v1102 = vunpack.c.h.b16 %v891
      %v1103 = vunpack.c.l.b16 %v892
      %v1104 = vunpack.c.h.b16 %v892
      %v1105 = vunpack.c.l.b16 %v893
      %v1106 = vunpack.c.h.b16 %v893
      %v1107 = vunpack.c.l.b16 %v894
      %v1108 = vunpack.c.h.b16 %v894
      %v1109 = vunpack.c.l.b16 %v895
      %v1110 = vunpack.c.h.b16 %v895
      %v1111 = vunpack.c.l.b16 %v896
      %v1112 = vunpack.c.h.b16 %v896
      %v1113 = vunpack.c.l.b16 %v897
      %v1114 = vunpack.c.h.b16 %v897
      %v1115 = vunpack.c.l.b16 %v898
      %v1116 = vunpack.c.h.b16 %v898
      %v1117 = vunpack.c.l.b16 %v899
      %v1118 = vunpack.c.h.b16 %v899
      %v1119 = vunpack.c.l.b16 %v900
      %v1120 = vunpack.c.h.b16 %v900
      %v1121 = vunpack.c.l.b16 %v901
      %v1122 = vunpack.c.h.b16 %v901
      %v1123 = vunpack.c.l.b16 %v902
      %v1124 = vunpack.c.h.b16 %v902
      %v1125 = vunpack.c.l.b16 %v903
      %v1126 = vunpack.c.h.b16 %v903
      %v1127 = vunpack.c.l.b16 %v904
      %v1128 = vunpack.c.h.b16 %v904
      %v1129 = vunpack.c.l.b16 %v905
      %v1130 = vunpack.c.h.b16 %v905
      %v1131 = vunpack.c.l.b16 %v906
      %v1132 = vunpack.c.h.b16 %v906
      %v1133 = vunpack.c.l.b16 %v907
      %v1134 = vunpack.c.h.b16 %v907
      %v1135 = vunpack.c.l.b16 %v908
      %v1136 = vunpack.c.h.b16 %v908
      %v1137 = vunpack.c.l.b16 %v909
      %v1138 = vunpack.c.h.b16 %v909
      %v1139 = vunpack.c.l.b16 %v910
      %v1140 = vunpack.c.h.b16 %v910
      %v1141 = vunpack.c.l.b16 %v911
      %v1142 = vunpack.c.h.b16 %v911
      %v1143 = vunpack.c.l.b16 %v912
      %v1144 = vunpack.c.h.b16 %v912
      %v1145 = vunpack.c.l.b16 %v913
      %v1146 = vunpack.c.h.b16 %v913
      %v1147 = vunpack.c.l.b16 %v914
      %v1148 = vunpack.c.h.b16 %v914
      %v1149 = vunpack.c.l.b16 %v915
      %v1150 = vunpack.c.h.b16 %v915
      %v1151 = vunpack.c.l.b16 %v916
      %v1152 = vunpack.c.h.b16 %v916
      %v1153 = vunpack.c.l.b16 %v917
      %v1154 = vunpack.c.h.b16 %v917
      %v1155 = vunpack.c.l.b16 %v918
      %v1156 = vunpack.c.h.b16 %v918
      %v1157 = vunpack.c.l.b16 %v919
      %v1158 = vunpack.c.h.b16 %v919
      %v1159 = vunpack.c.l.b16 %v920
      %v1160 = vunpack.c.h.b16 %v920
      %v1161 = vunpack.c.l.b16 %v921
      %v1162 = vunpack.c.h.b16 %v921
      %v1163 = vunpack.c.l.b16 %v922
      %v1164 = vunpack.c.h.b16 %v922
      %v1165 = vunpack.c.l.b16 %v923
      %v1166 = vunpack.c.h.b16 %v923
      %v1167 = vunpack.c.l.b16 %v924
      %v1168 = vunpack.c.h.b16 %v924
      %v1169 = vunpack.c.l.b16 %v925
      %v1170 = vunpack.c.h.b16 %v925
      %v1171 = vunpack.c.l.b16 %v926
      %v1172 = vunpack.c.h.b16 %v926
      %v1173 = vunpack.c.l.b16 %v927
      %v1174 = vunpack.c.h.b16 %v927
      %v1175 = vunpack.c.l.b16 %v928
      %v1176 = vunpack.c.h.b16 %v928
      %v1177 = vunpack.c.l.b16 %v929
      %v1178 = vunpack.c.h.b16 %v929
      %v1179 = vunpack.c.l.b16 %v930
      %v1180 = vunpack.c.h.b16 %v930
      %v1181 = vunpack.c.l.b16 %v931
      %v1182 = vunpack.c.h.b16 %v931
      %v1183 = vunpack.c.l.b16 %v932
      %v1184 = vunpack.c.h.b16 %v932
      %v1185 = vunpack.c.l.b16 %v933
      %v1186 = vunpack.c.h.b16 %v933
      %v1187 = vunpack.c.l.b16 %v934
      %v1188 = vunpack.c.h.b16 %v934
      %v1189 = vunpack.c.l.b16 %v935
      %v1190 = vunpack.c.h.b16 %v935
      %v1191 = vunpack.c.l.b16 %v936
      %v1192 = vunpack.c.h.b16 %v936
      %v1193 = vunpack.c.l.b16 %v937
      %v1194 = vunpack.c.h.b16 %v937
      %v1195 = vunpack.c.l.b16 %v938
      %v1196 = vunpack.c.h.b16 %v938
      %v1197 = vunpack.c.l.b16 %v939
      %v1198 = vunpack.c.h.b16 %v939
      %v1199 = vunpack.c.l.b16 %v940
      %v1200 = vunpack.c.h.b16 %v940
      %v1201 = vunpack.c.l.b16 %v941
      %v1202 = vunpack.c.h.b16 %v941
      %v1203 = vunpack.c.l.b16 %v942
      %v1204 = vunpack.c.h.b16 %v942
      %v1205 = vunpack.c.l.b16 %v943
      %v1206 = vunpack.c.h.b16 %v943
      %v1207 = vunpack.c.l.b16 %v944
      %v1208 = vunpack.c.h.b16 %v944
      %v1209 = vunpack.c.l.b16 %v945
      %v1210 = vunpack.c.h.b16 %v945
      %v1211 = vunpack.c.l.b16 %v946
      %v1212 = vunpack.c.h.b16 %v946
      %v1213 = vunpack.c.l.b16 %v947
      %v1214 = vunpack.c.h.b16 %v947
      %v1215 = vunpack.c.l.b16 %v948
      %v1216 = vunpack.c.h.b16 %v948
      %v1217 = vunpack.c.l.b16 %v949
      %v1218 = vunpack.c.h.b16 %v949
      %v1219 = vunpack.c.l.b16 %v950
      %v1220 = vunpack.c.h.b16 %v950
      %v1221 = vunpack.c.l.b16 %v951
      %v1222 = vunpack.c.h.b16 %v951
      %v1223 = vunpack.c.l.b16 %v952
      %v1224 = vunpack.c.h.b16 %v952
      %v1225 = vunpack.c.l.b16 %v953
      %v1226 = vunpack.c.h.b16 %v953
      %v1227 = vunpack.c.l.b16 %v954
      %v1228 = vunpack.c.h.b16 %v954
      %v1229 = vunpack.c.l.b16 %v955
      %v1230 = vunpack.c.h.b16 %v955
      %v1231 = vunpack.c.l.b16 %v956
      %v1232 = vunpack.c.h.b16 %v956
      %v1233 = vunpack.c.l.b16 %v957
      %v1234 = vunpack.c.h.b16 %v957
      %v1235 = vunpack.c.l.b16 %v958
      %v1236 = vunpack.c.h.b16 %v958
      %v1237 = vunpack.c.l.b16 %v959
      %v1238 = vunpack.c.h.b16 %v959
      %v1239 = vunpack.c.l.b16 %v960
      %v1240 = vunpack.c.h.b16 %v960
      %v1241 = vunpack.c.l.b16 %v961
      %v1242 = vunpack.c.h.b16 %v961
      %v1243 = vunpack.c.l.b16 %v962
      %v1244 = vunpack.c.h.b16 %v962
      %v1245 = vunpack.c.l.b16 %v963
      %v1246 = vunpack.c.h.b16 %v963
      %v1247 = vunpack.c.l.b16 %v964
      %v1248 = vunpack.c.h.b16 %v964
      %v1249 = vunpack.c.l.b16 %v965
      %v1250 = vunpack.c.h.b16 %v965
      %v1251 = vunpack.c.l.b16 %v966
      %v1252 = vunpack.c.h.b16 %v966
      %v1253 = vunpack.c.l.b16 %v967
      %v1254 = vunpack.c.h.b16 %v967
      %v1255 = vunpack.c.l.b16 %v968
      %v1256 = vunpack.c.h.b16 %v968
      %v1257 = vpack.c.b16 %v1071, %v1065
      %v1258 = vpack.c.b16 %v1072, %v1066
      %v1259 = vpack.c.b16 %v1073, %v1067
      %v1260 = vpack.c.b16 %v1074, %v1068
      %v1261 = vpack.c.b16 %v1075, %v1069
      %v1262 = vpack.c.b16 %v1076, %v1070
      %v1263 = vpack.c.b16 %v1083, %v1077
      %v1264 = vpack.c.b16 %v1084, %v1078
      %v1265 = vpack.c.b16 %v1085, %v1079
      %v1266 = vpack.c.b16 %v1086, %v1080
      %v1267 = vpack.c.b16 %v1087, %v1081
      %v1268 = vpack.c.b16 %v1088, %v1082
      %v1269 = vpack.c.b16 %v1095, %v1089
      %v1270 = vpack.c.b16 %v1096, %v1090
      %v1271 = vpack.c.b16 %v1097, %v1091
      %v1272 = vpack.c.b16 %v1098, %v1092
      %v1273 = vpack.c.b16 %v1099, %v1093
      %v1274 = vpack.c.b16 %v1100, %v1094
      %v1275 = vpack.c.b16 %v1107, %v1101
      %v1276 = vpack.c.b16 %v1108, %v1102
      %v1277 = vpack.c.b16 %v1109, %v1103
      %v1278 = vpack.c.b16 %v1110, %v1104
      %v1279 = vpack.c.b16 %v1111, %v1105
      %v1280 = vpack.c.b16 %v1112, %v1106
      %v1281 = vpack.c.b16 %v1119, %v1113
      %v1282 = vpack.c.b16 %v1120, %v1114
      %v1283 = vpack.c.b16 %v1121, %v1115
      %v1284 = vpack.c.b16 %v1122, %v1116
      %v1285 = vpack.c.b16 %v1123, %v1117
      %v1286 = vpack.c.b16 %v1124, %v1118
      %v1287 = vpack.c.b16 %v1131, %v1125
      %v1288 = vpack.c.b16 %v1132, %v1126
      %v1289 = vpack.c.b16 %v1133, %v1127
      %v1290 = vpack.c.b16 %v1134, %v1128
      %v1291 = vpack.c.b16 %v1135, %v1129
      %v1292 = vpack.c.b16 %v1136, %v1130
      %v1293 = vpack.c.b16 %v1143, %v1137
      %v1294 = vpack.c.b16 %v1144, %v1138
      %v1295 = vpack.c.b16 %v1145, %v1139
      %v1296 = vpack.c.b16 %v1146, %v1140
      %v1297 = vpack.c.b16 %v1147, %v1141
      %v1298 = vpack.c.b16 %v1148, %v1142
      %v1299 = vpack.c.b16 %v1155, %v1149
      %v1300 = vpack.c.b16 %v1156, %v1150
      %v1301 = vpack.c.b16 %v1157, %v1151
      %v1302 = vpack.c.b16 %v1158, %v1152
      %v1303 = vpack.c.b16 %v1159, %v1153
      %v1304 = vpack.c.b16 %v1160, %v1154
      %v1305 = vpack.c.b16 %v1167, %v1161
      %v1306 = vpack.c.b16 %v1168, %v1162
      %v1307 = vpack.c.b16 %v1169, %v1163
      %v1308 = vpack.c.b16 %v1170, %v1164
      %v1309 = vpack.c.b16 %v1171, %v1165
      %v1310 = vpack.c.b16 %v1172, %v1166
      %v1311 = vpack.c.b16 %v1179, %v1173
      %v1312 = vpack.c.b16 %v1180, %v1174
      %v1313 = vpack.c.b16 %v1181, %v1175
      %v1314 = vpack.c.b16 %v1182, %v1176
      %v1315 = vpack.c.b16 %v1183, %v1177
      %v1316 = vpack.c.b16 %v1184, %v1178
      %v1317 = vpack.c.b16 %v1191, %v1185
      %v1318 = vpack.c.b16 %v1192, %v1186
      %v1319 = vpack.c.b16 %v1193, %v1187
      %v1320 = vpack.c.b16 %v1194, %v1188
      %v1321 = vpack.c.b16 %v1195, %v1189
      %v1322 = vpack.c.b16 %v1196, %v1190
      %v1323 = vpack.c.b16 %v1203, %v1197
      %v1324 = vpack.c.b16 %v1204, %v1198
      %v1325 = vpack.c.b16 %v1205, %v1199
      %v1326 = vpack.c.b16 %v1206, %v1200
      %v1327 = vpack.c.b16 %v1207, %v1201
      %v1328 = vpack.c.b16 %v1208, %v1202
      %v1329 = vpack.c.b16 %v1215, %v1209
      %v1330 = vpack.c.b16 %v1216, %v1210
      %v1331 = vpack.c.b16 %v1217, %v1211
      %v1332 = vpack.c.b16 %v1218, %v1212
      %v1333 = vpack.c.b16 %v1219, %v1213
      %v1334 = vpack.c.b16 %v1220, %v1214
      %v1335 = vpack.c.b16 %v1227, %v1221
      %v1336 = vpack.c.b16 %v1228, %v1222
      %v1337 = vpack.c.b16 %v1229, %v1223
      %v1338 = vpack.c.b16 %v1230, %v1224
      %v1339 = vpack.c.b16 %v1231, %v1225
      %v1340 = vpack.c.b16 %v1232, %v1226
      %v1341 = vpack.c.b16 %v1239, %v1233
      %v1342 = vpack.c.b16 %v1240, %v1234
      %v1343 = vpack.c.b16 %v1241, %v1235
      %v1344 = vpack.c.b16 %v1242, %v1236
      %v1345 = vpack.c.b16 %v1243, %v1237
      %v1346 = vpack.c.b16 %v1244, %v1238
      %v1347 = vpack.c.b16 %v1251, %v1245
      %v1348 = vpack.c.b16 %v1252, %v1246
      %v1349 = vpack.c.b16 %v1253, %v1247
      %v1350 = vpack.c.b16 %v1254, %v1248
      %v1351 = vpack.c.b16 %v1255, %v1249
      %v1352 = vpack.c.b16 %v1256, %v1250
      %1449 = vmatprep.subr.bf16.mxu0 %v1258
      %1450 = vmatpush1.bf16.msra.mxu0 %v1257
      %1451 = vmatprep.subr.bf16.mxu0 %v1264
      %1452 = vmatpush1.bf16.msra.mxu0 %v1263
      %1453 = vmatprep.subr.bf16.mxu0 %v1270
      %1454 = vmatpush1.bf16.msra.mxu0 %v1269
      %1455 = vmatprep.subr.bf16.mxu0 %v1276
      %1456 = vmatpush1.bf16.msra.mxu0 %v1275
      %1457 = vmatprep.subr.bf16.mxu0 %v1282
      %1458 = vmatpush1.bf16.msra.mxu0 %v1281
      %1459 = vmatprep.subr.bf16.mxu0 %v1288
      %1460 = vmatpush1.bf16.msra.mxu0 %v1287
      %1461 = vmatprep.subr.bf16.mxu0 %v1294
      %1462 = vmatpush1.bf16.msra.mxu0 %v1293
      %1463 = vmatprep.subr.bf16.mxu0 %v1300
      %1464 = vmatpush1.bf16.msra.mxu0 %v1299
      %1465 = vmatprep.subr.bf16.mxu0 %v1306
      %1466 = vmatpush1.bf16.msra.mxu0 %v1305
      %1467 = vmatprep.subr.bf16.mxu0 %v1312
      %1468 = vmatpush1.bf16.msra.mxu0 %v1311
      %1469 = vmatprep.subr.bf16.mxu0 %v1318
      %1470 = vmatpush1.bf16.msra.mxu0 %v1317
      %1471 = vmatprep.subr.bf16.mxu0 %v1324
      %1472 = vmatpush1.bf16.msra.mxu0 %v1323
      %1473 = vmatprep.subr.bf16.mxu0 %v1330
      %1474 = vmatpush1.bf16.msra.mxu0 %v1329
      %1475 = vmatprep.subr.bf16.mxu0 %v1336
      %1476 = vmatpush1.bf16.msra.mxu0 %v1335
      %1477 = vmatprep.subr.bf16.mxu0 %v1342
      %1478 = vmatpush1.bf16.msra.mxu0 %v1341
      %1479 = vmatprep.subr.bf16.mxu0 %v1348
      %1480 = vmatpush1.bf16.msra.mxu0 %v1347
      %1481 = vmatprep.mubr.bf16.mxu0 %v870
      %1482 = vmatmul.mubr.bf16.gmra.mrb[0].mxu0 %v869
      %v1483 = vpop.f32.mrb[0].mxu0
      %v1484 = vadd.f32 0.0, %v1483
      %v1485 = vpop.f32.mrb[0].mxu0
      %v1486 = vadd.f32 0.0, %v1485
      %v1487 = vpop.f32.mrb[0].mxu0
      %v1488 = vadd.f32 0.0, %v1487
      %v1489 = vpop.f32.mrb[0].mxu0
      %v1490 = vadd.f32 0.0, %v1489
      %1491 = vmatprep.mubr.bf16.mxu0 %v872
      %1492 = vmatmul.mubr.bf16.gmra.mrb[0].mxu0 %v871
      %v1493 = vpop.f32.mrb[0].mxu0
      %v1494 = vadd.f32 0.0, %v1493
      %v1495 = vpop.f32.mrb[0].mxu0
      %v1496 = vadd.f32 0.0, %v1495
      %v1497 = vpop.f32.mrb[0].mxu0
      %v1498 = vadd.f32 0.0, %v1497
      %v1499 = vpop.f32.mrb[0].mxu0
      %v1500 = vadd.f32 0.0, %v1499
      %1501 = vdwg.mxu0
      %1502 = vmatprep.subr.bf16.mxu0 %v1260
      %1503 = vmatpush1.bf16.msra.mxu0 %v1259
      %1504 = vmatprep.subr.bf16.mxu0 %v1266
      %1505 = vmatpush1.bf16.msra.mxu0 %v1265
      %1506 = vmatprep.subr.bf16.mxu0 %v1272
      %1507 = vmatpush1.bf16.msra.mxu0 %v1271
      %1508 = vmatprep.subr.bf16.mxu0 %v1278
      %1509 = vmatpush1.bf16.msra.mxu0 %v1277
      %1510 = vmatprep.subr.bf16.mxu0 %v1284
      %1511 = vmatpush1.bf16.msra.mxu0 %v1283
      %1512 = vmatprep.subr.bf16.mxu0 %v1290
      %1513 = vmatpush1.bf16.msra.mxu0 %v1289
      %1514 = vmatprep.subr.bf16.mxu0 %v1296
      %1515 = vmatpush1.bf16.msra.mxu0 %v1295
      %1516 = vmatprep.subr.bf16.mxu0 %v1302
      %1517 = vmatpush1.bf16.msra.mxu0 %v1301
      %1518 = vmatprep.subr.bf16.mxu0 %v1308
      %1519 = vmatpush1.bf16.msra.mxu0 %v1307
      %1520 = vmatprep.subr.bf16.mxu0 %v1314
      %1521 = vmatpush1.bf16.msra.mxu0 %v1313
      %1522 = vmatprep.subr.bf16.mxu0 %v1320
      %1523 = vmatpush1.bf16.msra.mxu0 %v1319
      %1524 = vmatprep.subr.bf16.mxu0 %v1326
      %1525 = vmatpush1.bf16.msra.mxu0 %v1325
      %1526 = vmatprep.subr.bf16.mxu0 %v1332
      %1527 = vmatpush1.bf16.msra.mxu0 %v1331
      %1528 = vmatprep.subr.bf16.mxu0 %v1338
      %1529 = vmatpush1.bf16.msra.mxu0 %v1337
      %1530 = vmatprep.subr.bf16.mxu0 %v1344
      %1531 = vmatpush1.bf16.msra.mxu0 %v1343
      %1532 = vmatprep.subr.bf16.mxu0 %v1350
      %1533 = vmatpush1.bf16.msra.mxu0 %v1349
      %1534 = vmatprep.mubr.bf16.mxu0 %v870
      %1535 = vmatmul.mubr.bf16.gmra.mrb[0].mxu0 %v869
      %v1536 = vpop.f32.mrb[0].mxu0
      %v1537 = vadd.f32 0.0, %v1536
      %v1538 = vpop.f32.mrb[0].mxu0
      %v1539 = vadd.f32 0.0, %v1538
      %v1540 = vpop.f32.mrb[0].mxu0
      %v1541 = vadd.f32 0.0, %v1540
      %v1542 = vpop.f32.mrb[0].mxu0
      %v1543 = vadd.f32 0.0, %v1542
      %1544 = vmatprep.mubr.bf16.mxu0 %v872
      %1545 = vmatmul.mubr.bf16.gmra.mrb[0].mxu0 %v871
      %v1546 = vpop.f32.mrb[0].mxu0
      %v1547 = vadd.f32 0.0, %v1546
      %v1548 = vpop.f32.mrb[0].mxu0
      %v1549 = vadd.f32 0.0, %v1548
      %v1550 = vpop.f32.mrb[0].mxu0
      %v1551 = vadd.f32 0.0, %v1550
      %v1552 = vpop.f32.mrb[0].mxu0
      %v1553 = vadd.f32 0.0, %v1552
      %1554 = vdwg.mxu0
      %1555 = vmatprep.subr.bf16.mxu0 %v1262
      %1556 = vmatpush1.bf16.msra.mxu0 %v1261
      %1557 = vmatprep.subr.bf16.mxu0 %v1268
      %1558 = vmatpush1.bf16.msra.mxu0 %v1267
      %1559 = vmatprep.subr.bf16.mxu0 %v1274
      %1560 = vmatpush1.bf16.msra.mxu0 %v1273
      %1561 = vmatprep.subr.bf16.mxu0 %v1280
      %1562 = vmatpush1.bf16.msra.mxu0 %v1279
      %1563 = vmatprep.subr.bf16.mxu0 %v1286
      %1564 = vmatpush1.bf16.msra.mxu0 %v1285
      %1565 = vmatprep.subr.bf16.mxu0 %v1292
      %1566 = vmatpush1.bf16.msra.mxu0 %v1291
      %1567 = vmatprep.subr.bf16.mxu0 %v1298
      %1568 = vmatpush1.bf16.msra.mxu0 %v1297
      %1569 = vmatprep.subr.bf16.mxu0 %v1304
      %1570 = vmatpush1.bf16.msra.mxu0 %v1303
      %1571 = vmatprep.subr.bf16.mxu0 %v1310
      %1572 = vmatpush1.bf16.msra.mxu0 %v1309
      %1573 = vmatprep.subr.bf16.mxu0 %v1316
      %1574 = vmatpush1.bf16.msra.mxu0 %v1315
      %1575 = vmatprep.subr.bf16.mxu0 %v1322
      %1576 = vmatpush1.bf16.msra.mxu0 %v1321
      %1577 = vmatprep.subr.bf16.mxu0 %v1328
      %1578 = vmatpush1.bf16.msra.mxu0 %v1327
      %1579 = vmatprep.subr.bf16.mxu0 %v1334
      %1580 = vmatpush1.bf16.msra.mxu0 %v1333
      %1581 = vmatprep.subr.bf16.mxu0 %v1340
      %1582 = vmatpush1.bf16.msra.mxu0 %v1339
      %1583 = vmatprep.subr.bf16.mxu0 %v1346
      %1584 = vmatpush1.bf16.msra.mxu0 %v1345
      %1585 = vmatprep.subr.bf16.mxu0 %v1352
      %1586 = vmatpush1.bf16.msra.mxu0 %v1351
      %1587 = vmatprep.mubr.bf16.mxu0 %v870
      %1588 = vmatmul.mubr.bf16.gmra.mrb[0].mxu0 %v869
      %v1589 = vpop.f32.mrb[0].mxu0
      %v1590 = vadd.f32 0.0, %v1589
      %v1591 = vpop.f32.mrb[0].mxu0
      %v1592 = vadd.f32 0.0, %v1591
      %v1593 = vpop.f32.mrb[0].mxu0
      %v1594 = vadd.f32 0.0, %v1593
      %v1595 = vpop.f32.mrb[0].mxu0
      %v1596 = vadd.f32 0.0, %v1595
      %1597 = vmatprep.mubr.bf16.mxu0 %v872
      %1598 = vmatmul.mubr.bf16.gmra.mrb[0].mxu0 %v871
      %v1599 = vpop.f32.mrb[0].mxu0
      %v1600 = vadd.f32 0.0, %v1599
      %v1601 = vpop.f32.mrb[0].mxu0
      %v1602 = vadd.f32 0.0, %v1601
      %v1603 = vpop.f32.mrb[0].mxu0
      %v1604 = vadd.f32 0.0, %v1603
      %v1605 = vpop.f32.mrb[0].mxu0
      %v1606 = vadd.f32 0.0, %v1605
      %1607 = vdwg.mxu0
      %v1608 = vlaneseq
      %v1609 = vshrl.u32 %v1608, 7
      %v1610 = vadd.s32 %v1609, 8
      %v1611 = vlaneseq
      %v1612 = vand.u32 %v1611, 127
      %vm1613 = vcmp.le.s32.totalorder %v1612, %v1609
      %vm1614 = vcmp.le.s32.totalorder %v1612, %v1610
      %v1615 = vmul.f32 %v1484, %v804
      %v1616 = vmul.f32 %v1488, %v805
      %v1617 = vsub.f32 0.0, %v1484
      %v1618 = vsub.f32 0.0, %v1488
      %1621 = vrot.lane.b32.xlu0 %v1617, 64
      %v1622 = vpop.permute.xlu0 %1621
      %1623 = vrot.lane.b32.xlu0 %v1618, 64
      %v1624 = vpop.permute.xlu0 %1623
      %1629 = vrot.lane.b32.xlu0 %v1484, 64
      %v1630 = vpop.permute.xlu0 %1629
      %1631 = vrot.lane.b32.xlu0 %v1488, 64
      %v1632 = vpop.permute.xlu0 %1631
      %vm1635 = vcmask 523264
      %v1636 = vsel %vm1635, %v1622, %v1630
      %v1637 = vsel %vm1635, %v1624, %v1632
      %v1638 = vmul.f32 %v1636, %v806
      %v1639 = vmul.f32 %v1637, %v807
      %v1640 = vadd.f32 %v1615, %v1638
      %v1641 = vadd.f32 %v1616, %v1639
      %v1642 = vmul.f32 %v1537, %v804
      %v1643 = vmul.f32 %v1541, %v805
      %v1644 = vsub.f32 0.0, %v1537
      %v1645 = vsub.f32 0.0, %v1541
      %1648 = vrot.lane.b32.xlu0 %v1644, 64
      %v1649 = vpop.permute.xlu0 %1648
      %1650 = vrot.lane.b32.xlu0 %v1645, 64
      %v1651 = vpop.permute.xlu0 %1650
      %1656 = vrot.lane.b32.xlu0 %v1537, 64
      %v1657 = vpop.permute.xlu0 %1656
      %1658 = vrot.lane.b32.xlu0 %v1541, 64
      %v1659 = vpop.permute.xlu0 %1658
      %v1662 = vsel %vm1635, %v1649, %v1657
      %v1663 = vsel %vm1635, %v1651, %v1659
      %v1664 = vmul.f32 %v1662, %v806
      %v1665 = vmul.f32 %v1663, %v807
      %v1666 = vadd.f32 %v1642, %v1664
      %v1667 = vadd.f32 %v1643, %v1665
      %v1668 = vpack.c.bf16 %v1641, %v1640
      %v1669 = vpack.c.bf16 %v1667, %v1666
      %1670 = vmatprep.subr.bf16.mxu0 0
      %1671 = vmatpush1.bf16.xpose.msra.mxu0 %v1669
      %1672 = vmatprep.subr.bf16.mxu0 0
      %1673 = vmatpush1.bf16.xpose.msra.mxu0 0
      %1674 = vmatprep.subr.bf16.mxu0 0
      %1675 = vmatpush1.bf16.xpose.msra.mxu0 0
      %1676 = vmatprep.subr.bf16.mxu0 0
      %1677 = vmatpush1.bf16.xpose.msra.mxu0 0
      %1678 = vmatprep.subr.bf16.mxu0 0
      %1679 = vmatpush1.bf16.xpose.msra.mxu0 0
      %1680 = vmatprep.subr.bf16.mxu0 0
      %1681 = vmatpush1.bf16.xpose.msra.mxu0 0
      %1682 = vmatprep.subr.bf16.mxu0 0
      %1683 = vmatpush1.bf16.xpose.msra.mxu0 0
      %1684 = vmatprep.subr.bf16.mxu0 0
      %1685 = vmatpush1.bf16.xpose.msra.mxu0 0
      %1686 = vmatprep.subr.bf16.mxu0 0
      %1687 = vmatpush1.bf16.xpose.msra.mxu0 0
      %1688 = vmatprep.subr.bf16.mxu0 0
      %1689 = vmatpush1.bf16.xpose.msra.mxu0 0
      %1690 = vmatprep.subr.bf16.mxu0 0
      %1691 = vmatpush1.bf16.xpose.msra.mxu0 0
      %1692 = vmatprep.subr.bf16.mxu0 0
      %1693 = vmatpush1.bf16.xpose.msra.mxu0 0
      %1694 = vmatprep.subr.bf16.mxu0 0
      %1695 = vmatpush1.bf16.xpose.msra.mxu0 0
      %1696 = vmatprep.subr.bf16.mxu0 0
      %1697 = vmatpush1.bf16.xpose.msra.mxu0 0
      %1698 = vmatprep.subr.bf16.mxu0 0
      %1699 = vmatpush1.bf16.xpose.msra.mxu0 0
      %1700 = vmatprep.subr.bf16.mxu0 0
      %1701 = vmatpush1.bf16.xpose.msra.mxu0 0
      %1702 = vmatprep.mubr.bf16.mxu0 0
      %1703 = vmatmul.mubr.bf16.gmra.mrb[0].mxu0 %v1668
      %v1704 = vpop.f32.mrb[0].mxu0
      %v1705 = vadd.f32 0.0, %v1704
      %v1706 = vpop.f32.mrb[0].mxu0
      %v1707 = vpop.f32.mrb[0].mxu0
      %v1708 = vadd.f32 0.0, %v1707
      %v1709 = vpop.f32.mrb[0].mxu0
      %1710 = vdwg.mxu0
      %v1711 = vmul.f32 %v1705, 0.088388346
      %v1712 = vmul.f32 %v1708, 0.088388346
      %v1713 = vsel %vm1613, %v1711, -1e+30
      %v1714 = vsel %vm1614, %v1712, -1e+30
      %vm1715 = vcmask 130048
      %v1716 = vsel %vm1715, %v1713, -inf
      %1717 = vmax.xlane.f32.xlu0 %v1716
      %v1718 = vpop.xlane.xlu0 %1717
      %v1719 = vsel %vm1715, %v1714, -inf
      %1720 = vmax.xlane.f32.xlu0 %v1719
      %v1721 = vpop.xlane.xlu0 %1720
      %v1722 = vsub.f32 %v1713, %v1718
      %v1723 = vsub.f32 %v1714, %v1721
      %v1724 = vmul.f32 %v1722, 1.442695
      %v1725 = vpow.pop %v1724
      %v1726 = vmul.f32 %v1723, 1.442695
      %v1727 = vpow.pop %v1726
      %v1728 = vsel %vm1715, %v1725, 0.0
      %1729 = vadd.xlane.f32.xlu0 %v1728
      %v1730 = vpop.xlane.xlu0 %1729
      %v1731 = vsel %vm1715, %v1727, 0.0
      %1732 = vadd.xlane.f32.xlu0 %v1731
      %v1733 = vpop.xlane.xlu0 %1732
      %v1734 = vrcp.pop %v1730
      %v1735 = vmul.f32 %v1725, %v1734
      %v1736 = vrcp.pop %v1733
      %v1737 = vmul.f32 %v1727, %v1736
      %v1738 = vpack.c.bf16 %v1737, %v1735
      %v1739 = vpack.c.bf16 %v1594, %v1590
      %v1741 = vsel %vm1715, %v1738, 0
      %1743 = vmatprep.subr.bf16.mxu0 0
      %1744 = vmatpush1.bf16.msra.mxu0 %v1739
      %1745 = vmatprep.subr.bf16.mxu0 0
      %1746 = vmatpush1.bf16.msra.mxu0 0
      %1747 = vmatprep.subr.bf16.mxu0 0
      %1748 = vmatpush1.bf16.msra.mxu0 0
      %1749 = vmatprep.subr.bf16.mxu0 0
      %1750 = vmatpush1.bf16.msra.mxu0 0
      %1751 = vmatprep.subr.bf16.mxu0 0
      %1752 = vmatpush1.bf16.msra.mxu0 0
      %1753 = vmatprep.subr.bf16.mxu0 0
      %1754 = vmatpush1.bf16.msra.mxu0 0
      %1755 = vmatprep.subr.bf16.mxu0 0
      %1756 = vmatpush1.bf16.msra.mxu0 0
      %1757 = vmatprep.subr.bf16.mxu0 0
      %1758 = vmatpush1.bf16.msra.mxu0 0
      %1759 = vmatprep.subr.bf16.mxu0 0
      %1760 = vmatpush1.bf16.msra.mxu0 0
      %1761 = vmatprep.subr.bf16.mxu0 0
      %1762 = vmatpush1.bf16.msra.mxu0 0
      %1763 = vmatprep.subr.bf16.mxu0 0
      %1764 = vmatpush1.bf16.msra.mxu0 0
      %1765 = vmatprep.subr.bf16.mxu0 0
      %1766 = vmatpush1.bf16.msra.mxu0 0
      %1767 = vmatprep.subr.bf16.mxu0 0
      %1768 = vmatpush1.bf16.msra.mxu0 0
      %1769 = vmatprep.subr.bf16.mxu0 0
      %1770 = vmatpush1.bf16.msra.mxu0 0
      %1771 = vmatprep.subr.bf16.mxu0 0
      %1772 = vmatpush1.bf16.msra.mxu0 0
      %1773 = vmatprep.subr.bf16.mxu0 0
      %1774 = vmatpush1.bf16.msra.mxu0 0
      %1775 = vmatprep.mubr.bf16.mxu0 0
      %1776 = vmatmul.mubr.bf16.gmra.mrb[0].mxu0 %v1741
      %v1777 = vpop.f32.mrb[0].mxu0
      %v1778 = vadd.f32 0.0, %v1777
      %v1779 = vpop.f32.mrb[0].mxu0
      %v1780 = vpop.f32.mrb[0].mxu0
      %v1781 = vadd.f32 0.0, %v1780
      %v1782 = vpop.f32.mrb[0].mxu0
      %1783 = vdwg.mxu0
      %1784 = vst [vmem:[#allocation2] sm:$0xff] %v1778
      %1785 = vst [vmem:[#allocation2 + $0x10] sm:$0xff] %v1781
      %v1786 = vmul.f32 %v1486, %v804
      %v1787 = vmul.f32 %v1490, %v805
      %v1788 = vsub.f32 0.0, %v1486
      %v1789 = vsub.f32 0.0, %v1490
      %1792 = vrot.lane.b32.xlu0 %v1788, 64
      %v1793 = vpop.permute.xlu0 %1792
      %1794 = vrot.lane.b32.xlu0 %v1789, 64
      %v1795 = vpop.permute.xlu0 %1794
      %1800 = vrot.lane.b32.xlu0 %v1486, 64
      %v1801 = vpop.permute.xlu0 %1800
      %1802 = vrot.lane.b32.xlu0 %v1490, 64
      %v1803 = vpop.permute.xlu0 %1802
      %v1806 = vsel %vm1635, %v1793, %v1801
      %v1807 = vsel %vm1635, %v1795, %v1803
      %v1808 = vmul.f32 %v1806, %v806
      %v1809 = vmul.f32 %v1807, %v807
      %v1810 = vadd.f32 %v1786, %v1808
      %v1811 = vadd.f32 %v1787, %v1809
      %v1812 = vmul.f32 %v1539, %v804
      %v1813 = vmul.f32 %v1543, %v805
      %v1814 = vsub.f32 0.0, %v1539
      %v1815 = vsub.f32 0.0, %v1543
      %1818 = vrot.lane.b32.xlu0 %v1814, 64
      %v1819 = vpop.permute.xlu0 %1818
      %1820 = vrot.lane.b32.xlu0 %v1815, 64
      %v1821 = vpop.permute.xlu0 %1820
      %1826 = vrot.lane.b32.xlu0 %v1539, 64
      %v1827 = vpop.permute.xlu0 %1826
      %1828 = vrot.lane.b32.xlu0 %v1543, 64
      %v1829 = vpop.permute.xlu0 %1828
      %v1832 = vsel %vm1635, %v1819, %v1827
      %v1833 = vsel %vm1635, %v1821, %v1829
      %v1834 = vmul.f32 %v1832, %v806
      %v1835 = vmul.f32 %v1833, %v807
      %v1836 = vadd.f32 %v1812, %v1834
      %v1837 = vadd.f32 %v1813, %v1835
      %v1838 = vpack.c.bf16 %v1811, %v1810
      %v1839 = vpack.c.bf16 %v1837, %v1836
      %1840 = vmatprep.subr.bf16.mxu0 0
      %1841 = vmatpush1.bf16.xpose.msra.mxu0 %v1839
      %1842 = vmatprep.subr.bf16.mxu0 0
      %1843 = vmatpush1.bf16.xpose.msra.mxu0 0
      %1844 = vmatprep.subr.bf16.mxu0 0
      %1845 = vmatpush1.bf16.xpose.msra.mxu0 0
      %1846 = vmatprep.subr.bf16.mxu0 0
      %1847 = vmatpush1.bf16.xpose.msra.mxu0 0
      %1848 = vmatprep.subr.bf16.mxu0 0
      %1849 = vmatpush1.bf16.xpose.msra.mxu0 0
      %1850 = vmatprep.subr.bf16.mxu0 0
      %1851 = vmatpush1.bf16.xpose.msra.mxu0 0
      %1852 = vmatprep.subr.bf16.mxu0 0
      %1853 = vmatpush1.bf16.xpose.msra.mxu0 0
      %1854 = vmatprep.subr.bf16.mxu0 0
      %1855 = vmatpush1.bf16.xpose.msra.mxu0 0
      %1856 = vmatprep.subr.bf16.mxu0 0
      %1857 = vmatpush1.bf16.xpose.msra.mxu0 0
      %1858 = vmatprep.subr.bf16.mxu0 0
      %1859 = vmatpush1.bf16.xpose.msra.mxu0 0
      %1860 = vmatprep.subr.bf16.mxu0 0
      %1861 = vmatpush1.bf16.xpose.msra.mxu0 0
      %1862 = vmatprep.subr.bf16.mxu0 0
      %1863 = vmatpush1.bf16.xpose.msra.mxu0 0
      %1864 = vmatprep.subr.bf16.mxu0 0
      %1865 = vmatpush1.bf16.xpose.msra.mxu0 0
      %1866 = vmatprep.subr.bf16.mxu0 0
      %1867 = vmatpush1.bf16.xpose.msra.mxu0 0
      %1868 = vmatprep.subr.bf16.mxu0 0
      %1869 = vmatpush1.bf16.xpose.msra.mxu0 0
      %1870 = vmatprep.subr.bf16.mxu0 0
      %1871 = vmatpush1.bf16.xpose.msra.mxu0 0
      %1872 = vmatprep.mubr.bf16.mxu0 0
      %1873 = vmatmul.mubr.bf16.gmra.mrb[0].mxu0 %v1838
      %v1874 = vpop.f32.mrb[0].mxu0
      %v1875 = vadd.f32 0.0, %v1874
      %v1876 = vpop.f32.mrb[0].mxu0
      %v1877 = vpop.f32.mrb[0].mxu0
      %v1878 = vadd.f32 0.0, %v1877
      %v1879 = vpop.f32.mrb[0].mxu0
      %1880 = vdwg.mxu0
      %v1881 = vmul.f32 %v1875, 0.088388346
      %v1882 = vmul.f32 %v1878, 0.088388346
      %v1883 = vsel %vm1613, %v1881, -1e+30
      %v1884 = vsel %vm1614, %v1882, -1e+30
      %v1885 = vsel %vm1715, %v1883, -inf
      %1886 = vmax.xlane.f32.xlu0 %v1885
      %v1887 = vpop.xlane.xlu0 %1886
      %v1888 = vsel %vm1715, %v1884, -inf
      %1889 = vmax.xlane.f32.xlu0 %v1888
      %v1890 = vpop.xlane.xlu0 %1889
      %v1891 = vsub.f32 %v1883, %v1887
      %v1892 = vsub.f32 %v1884, %v1890
      %v1893 = vmul.f32 %v1891, 1.442695
      %v1894 = vpow.pop %v1893
      %v1895 = vmul.f32 %v1892, 1.442695
      %v1896 = vpow.pop %v1895
      %v1897 = vsel %vm1715, %v1894, 0.0
      %1898 = vadd.xlane.f32.xlu0 %v1897
      %v1899 = vpop.xlane.xlu0 %1898
      %v1900 = vsel %vm1715, %v1896, 0.0
      %1901 = vadd.xlane.f32.xlu0 %v1900
      %v1902 = vpop.xlane.xlu0 %1901
      %v1903 = vrcp.pop %v1899
      %v1904 = vmul.f32 %v1894, %v1903
      %v1905 = vrcp.pop %v1902
      %v1906 = vmul.f32 %v1896, %v1905
      %v1907 = vpack.c.bf16 %v1906, %v1904
      %v1908 = vpack.c.bf16 %v1596, %v1592
      %v1910 = vsel %vm1715, %v1907, 0
      %1912 = vmatprep.subr.bf16.mxu0 0
      %1913 = vmatpush1.bf16.msra.mxu0 %v1908
      %1914 = vmatprep.subr.bf16.mxu0 0
      %1915 = vmatpush1.bf16.msra.mxu0 0
      %1916 = vmatprep.subr.bf16.mxu0 0
      %1917 = vmatpush1.bf16.msra.mxu0 0
      %1918 = vmatprep.subr.bf16.mxu0 0
      %1919 = vmatpush1.bf16.msra.mxu0 0
      %1920 = vmatprep.subr.bf16.mxu0 0
      %1921 = vmatpush1.bf16.msra.mxu0 0
      %1922 = vmatprep.subr.bf16.mxu0 0
      %1923 = vmatpush1.bf16.msra.mxu0 0
      %1924 = vmatprep.subr.bf16.mxu0 0
      %1925 = vmatpush1.bf16.msra.mxu0 0
      %1926 = vmatprep.subr.bf16.mxu0 0
      %1927 = vmatpush1.bf16.msra.mxu0 0
      %1928 = vmatprep.subr.bf16.mxu0 0
      %1929 = vmatpush1.bf16.msra.mxu0 0
      %1930 = vmatprep.subr.bf16.mxu0 0
      %1931 = vmatpush1.bf16.msra.mxu0 0
      %1932 = vmatprep.subr.bf16.mxu0 0
      %1933 = vmatpush1.bf16.msra.mxu0 0
      %1934 = vmatprep.subr.bf16.mxu0 0
      %1935 = vmatpush1.bf16.msra.mxu0 0
      %1936 = vmatprep.subr.bf16.mxu0 0
      %1937 = vmatpush1.bf16.msra.mxu0 0
      %1938 = vmatprep.subr.bf16.mxu0 0
      %1939 = vmatpush1.bf16.msra.mxu0 0
      %1940 = vmatprep.subr.bf16.mxu0 0
      %1941 = vmatpush1.bf16.msra.mxu0 0
      %1942 = vmatprep.subr.bf16.mxu0 0
      %1943 = vmatpush1.bf16.msra.mxu0 0
      %1944 = vmatprep.mubr.bf16.mxu0 0
      %1945 = vmatmul.mubr.bf16.gmra.mrb[0].mxu0 %v1910
      %v1946 = vpop.f32.mrb[0].mxu0
      %v1947 = vadd.f32 0.0, %v1946
      %v1948 = vpop.f32.mrb[0].mxu0
      %v1949 = vpop.f32.mrb[0].mxu0
      %v1950 = vadd.f32 0.0, %v1949
      %v1951 = vpop.f32.mrb[0].mxu0
      %1952 = vdwg.mxu0
      %1953 = vst [vmem:[#allocation2 + $0x8] sm:$0xff] %v1947
      %1954 = vst [vmem:[#allocation2 + $0x18] sm:$0xff] %v1950
      %v1955 = vmul.f32 %v1494, %v804
      %v1956 = vmul.f32 %v1498, %v805
      %v1957 = vsub.f32 0.0, %v1494
      %v1958 = vsub.f32 0.0, %v1498
      %1961 = vrot.lane.b32.xlu0 %v1957, 64
      %v1962 = vpop.permute.xlu0 %1961
      %1963 = vrot.lane.b32.xlu0 %v1958, 64
      %v1964 = vpop.permute.xlu0 %1963
      %1969 = vrot.lane.b32.xlu0 %v1494, 64
      %v1970 = vpop.permute.xlu0 %1969
      %1971 = vrot.lane.b32.xlu0 %v1498, 64
      %v1972 = vpop.permute.xlu0 %1971
      %v1975 = vsel %vm1635, %v1962, %v1970
      %v1976 = vsel %vm1635, %v1964, %v1972
      %v1977 = vmul.f32 %v1975, %v806
      %v1978 = vmul.f32 %v1976, %v807
      %v1979 = vadd.f32 %v1955, %v1977
      %v1980 = vadd.f32 %v1956, %v1978
      %v1981 = vmul.f32 %v1547, %v804
      %v1982 = vmul.f32 %v1551, %v805
      %v1983 = vsub.f32 0.0, %v1547
      %v1984 = vsub.f32 0.0, %v1551
      %1987 = vrot.lane.b32.xlu0 %v1983, 64
      %v1988 = vpop.permute.xlu0 %1987
      %1989 = vrot.lane.b32.xlu0 %v1984, 64
      %v1990 = vpop.permute.xlu0 %1989
      %1995 = vrot.lane.b32.xlu0 %v1547, 64
      %v1996 = vpop.permute.xlu0 %1995
      %1997 = vrot.lane.b32.xlu0 %v1551, 64
      %v1998 = vpop.permute.xlu0 %1997
      %v2001 = vsel %vm1635, %v1988, %v1996
      %v2002 = vsel %vm1635, %v1990, %v1998
      %v2003 = vmul.f32 %v2001, %v806
      %v2004 = vmul.f32 %v2002, %v807
      %v2005 = vadd.f32 %v1981, %v2003
      %v2006 = vadd.f32 %v1982, %v2004
      %v2007 = vpack.c.bf16 %v1980, %v1979
      %v2008 = vpack.c.bf16 %v2006, %v2005
      %2009 = vmatprep.subr.bf16.mxu0 0
      %2010 = vmatpush1.bf16.xpose.msra.mxu0 %v2008
      %2011 = vmatprep.subr.bf16.mxu0 0
      %2012 = vmatpush1.bf16.xpose.msra.mxu0 0
      %2013 = vmatprep.subr.bf16.mxu0 0
      %2014 = vmatpush1.bf16.xpose.msra.mxu0 0
      %2015 = vmatprep.subr.bf16.mxu0 0
      %2016 = vmatpush1.bf16.xpose.msra.mxu0 0
      %2017 = vmatprep.subr.bf16.mxu0 0
      %2018 = vmatpush1.bf16.xpose.msra.mxu0 0
      %2019 = vmatprep.subr.bf16.mxu0 0
      %2020 = vmatpush1.bf16.xpose.msra.mxu0 0
      %2021 = vmatprep.subr.bf16.mxu0 0
      %2022 = vmatpush1.bf16.xpose.msra.mxu0 0
      %2023 = vmatprep.subr.bf16.mxu0 0
      %2024 = vmatpush1.bf16.xpose.msra.mxu0 0
      %2025 = vmatprep.subr.bf16.mxu0 0
      %2026 = vmatpush1.bf16.xpose.msra.mxu0 0
      %2027 = vmatprep.subr.bf16.mxu0 0
      %2028 = vmatpush1.bf16.xpose.msra.mxu0 0
      %2029 = vmatprep.subr.bf16.mxu0 0
      %2030 = vmatpush1.bf16.xpose.msra.mxu0 0
      %2031 = vmatprep.subr.bf16.mxu0 0
      %2032 = vmatpush1.bf16.xpose.msra.mxu0 0
      %2033 = vmatprep.subr.bf16.mxu0 0
      %2034 = vmatpush1.bf16.xpose.msra.mxu0 0
      %2035 = vmatprep.subr.bf16.mxu0 0
      %2036 = vmatpush1.bf16.xpose.msra.mxu0 0
      %2037 = vmatprep.subr.bf16.mxu0 0
      %2038 = vmatpush1.bf16.xpose.msra.mxu0 0
      %2039 = vmatprep.subr.bf16.mxu0 0
      %2040 = vmatpush1.bf16.xpose.msra.mxu0 0
      %2041 = vmatprep.mubr.bf16.mxu0 0
      %2042 = vmatmul.mubr.bf16.gmra.mrb[0].mxu0 %v2007
      %v2043 = vpop.f32.mrb[0].mxu0
      %v2044 = vadd.f32 0.0, %v2043
      %v2045 = vpop.f32.mrb[0].mxu0
      %v2046 = vpop.f32.mrb[0].mxu0
      %v2047 = vadd.f32 0.0, %v2046
      %v2048 = vpop.f32.mrb[0].mxu0
      %2049 = vdwg.mxu0
      %v2050 = vmul.f32 %v2044, 0.088388346
      %v2051 = vmul.f32 %v2047, 0.088388346
      %v2052 = vsel %vm1613, %v2050, -1e+30
      %v2053 = vsel %vm1614, %v2051, -1e+30
      %v2054 = vsel %vm1715, %v2052, -inf
      %2055 = vmax.xlane.f32.xlu0 %v2054
      %v2056 = vpop.xlane.xlu0 %2055
      %v2057 = vsel %vm1715, %v2053, -inf
      %2058 = vmax.xlane.f32.xlu0 %v2057
      %v2059 = vpop.xlane.xlu0 %2058
      %v2060 = vsub.f32 %v2052, %v2056
      %v2061 = vsub.f32 %v2053, %v2059
      %v2062 = vmul.f32 %v2060, 1.442695
      %v2063 = vpow.pop %v2062
      %v2064 = vmul.f32 %v2061, 1.442695
      %v2065 = vpow.pop %v2064
      %v2066 = vsel %vm1715, %v2063, 0.0
      %2067 = vadd.xlane.f32.xlu0 %v2066
      %v2068 = vpop.xlane.xlu0 %2067
      %v2069 = vsel %vm1715, %v2065, 0.0
      %2070 = vadd.xlane.f32.xlu0 %v2069
      %v2071 = vpop.xlane.xlu0 %2070
      %v2072 = vrcp.pop %v2068
      %v2073 = vmul.f32 %v2063, %v2072
      %v2074 = vrcp.pop %v2071
      %v2075 = vmul.f32 %v2065, %v2074
      %v2076 = vpack.c.bf16 %v2075, %v2073
      %v2077 = vpack.c.bf16 %v1604, %v1600
      %v2079 = vsel %vm1715, %v2076, 0
      %2081 = vmatprep.subr.bf16.mxu0 0
      %2082 = vmatpush1.bf16.msra.mxu0 %v2077
      %2083 = vmatprep.subr.bf16.mxu0 0
      %2084 = vmatpush1.bf16.msra.mxu0 0
      %2085 = vmatprep.subr.bf16.mxu0 0
      %2086 = vmatpush1.bf16.msra.mxu0 0
      %2087 = vmatprep.subr.bf16.mxu0 0
      %2088 = vmatpush1.bf16.msra.mxu0 0
      %2089 = vmatprep.subr.bf16.mxu0 0
      %2090 = vmatpush1.bf16.msra.mxu0 0
      %2091 = vmatprep.subr.bf16.mxu0 0
      %2092 = vmatpush1.bf16.msra.mxu0 0
      %2093 = vmatprep.subr.bf16.mxu0 0
      %2094 = vmatpush1.bf16.msra.mxu0 0
      %2095 = vmatprep.subr.bf16.mxu0 0
      %2096 = vmatpush1.bf16.msra.mxu0 0
      %2097 = vmatprep.subr.bf16.mxu0 0
      %2098 = vmatpush1.bf16.msra.mxu0 0
      %2099 = vmatprep.subr.bf16.mxu0 0
      %2100 = vmatpush1.bf16.msra.mxu0 0
      %2101 = vmatprep.subr.bf16.mxu0 0
      %2102 = vmatpush1.bf16.msra.mxu0 0
      %2103 = vmatprep.subr.bf16.mxu0 0
      %2104 = vmatpush1.bf16.msra.mxu0 0
      %2105 = vmatprep.subr.bf16.mxu0 0
      %2106 = vmatpush1.bf16.msra.mxu0 0
      %2107 = vmatprep.subr.bf16.mxu0 0
      %2108 = vmatpush1.bf16.msra.mxu0 0
      %2109 = vmatprep.subr.bf16.mxu0 0
      %2110 = vmatpush1.bf16.msra.mxu0 0
      %2111 = vmatprep.subr.bf16.mxu0 0
      %2112 = vmatpush1.bf16.msra.mxu0 0
      %2113 = vmatprep.mubr.bf16.mxu0 0
      %2114 = vmatmul.mubr.bf16.gmra.mrb[0].mxu0 %v2079
      %v2115 = vpop.f32.mrb[0].mxu0
      %v2116 = vadd.f32 0.0, %v2115
      %v2117 = vpop.f32.mrb[0].mxu0
      %v2118 = vpop.f32.mrb[0].mxu0
      %v2119 = vadd.f32 0.0, %v2118
      %v2120 = vpop.f32.mrb[0].mxu0
      %2121 = vdwg.mxu0
      %2122 = vst [vmem:[#allocation2 + $0x20] sm:$0xff] %v2116
      %2123 = vst [vmem:[#allocation2 + $0x30] sm:$0xff] %v2119
      %v2124 = vmul.f32 %v1496, %v804
      %v2125 = vmul.f32 %v1500, %v805
      %v2126 = vsub.f32 0.0, %v1496
      %v2127 = vsub.f32 0.0, %v1500
      %2130 = vrot.lane.b32.xlu0 %v2126, 64
      %v2131 = vpop.permute.xlu0 %2130
      %2132 = vrot.lane.b32.xlu0 %v2127, 64
      %v2133 = vpop.permute.xlu0 %2132
      %2138 = vrot.lane.b32.xlu0 %v1496, 64
      %v2139 = vpop.permute.xlu0 %2138
      %2140 = vrot.lane.b32.xlu0 %v1500, 64
      %v2141 = vpop.permute.xlu0 %2140
      %v2144 = vsel %vm1635, %v2131, %v2139
      %v2145 = vsel %vm1635, %v2133, %v2141
      %v2146 = vmul.f32 %v2144, %v806
      %v2147 = vmul.f32 %v2145, %v807
      %v2148 = vadd.f32 %v2124, %v2146
      %v2149 = vadd.f32 %v2125, %v2147
      %v2150 = vmul.f32 %v1549, %v804
      %v2151 = vmul.f32 %v1553, %v805
      %v2152 = vsub.f32 0.0, %v1549
      %v2153 = vsub.f32 0.0, %v1553
      %2156 = vrot.lane.b32.xlu0 %v2152, 64
      %v2157 = vpop.permute.xlu0 %2156
      %2158 = vrot.lane.b32.xlu0 %v2153, 64
      %v2159 = vpop.permute.xlu0 %2158
      %2164 = vrot.lane.b32.xlu0 %v1549, 64
      %v2165 = vpop.permute.xlu0 %2164
      %2166 = vrot.lane.b32.xlu0 %v1553, 64
      %v2167 = vpop.permute.xlu0 %2166
      %v2170 = vsel %vm1635, %v2157, %v2165
      %v2171 = vsel %vm1635, %v2159, %v2167
      %v2172 = vmul.f32 %v2170, %v806
      %v2173 = vmul.f32 %v2171, %v807
      %v2174 = vadd.f32 %v2150, %v2172
      %v2175 = vadd.f32 %v2151, %v2173
      %v2176 = vpack.c.bf16 %v2149, %v2148
      %v2177 = vpack.c.bf16 %v2175, %v2174
      %2178 = vmatprep.subr.bf16.mxu0 0
      %2179 = vmatpush1.bf16.xpose.msra.mxu0 %v2177
      %2180 = vmatprep.subr.bf16.mxu0 0
      %2181 = vmatpush1.bf16.xpose.msra.mxu0 0
      %2182 = vmatprep.subr.bf16.mxu0 0
      %2183 = vmatpush1.bf16.xpose.msra.mxu0 0
      %2184 = vmatprep.subr.bf16.mxu0 0
      %2185 = vmatpush1.bf16.xpose.msra.mxu0 0
      %2186 = vmatprep.subr.bf16.mxu0 0
      %2187 = vmatpush1.bf16.xpose.msra.mxu0 0
      %2188 = vmatprep.subr.bf16.mxu0 0
      %2189 = vmatpush1.bf16.xpose.msra.mxu0 0
      %2190 = vmatprep.subr.bf16.mxu0 0
      %2191 = vmatpush1.bf16.xpose.msra.mxu0 0
      %2192 = vmatprep.subr.bf16.mxu0 0
      %2193 = vmatpush1.bf16.xpose.msra.mxu0 0
      %2194 = vmatprep.subr.bf16.mxu0 0
      %2195 = vmatpush1.bf16.xpose.msra.mxu0 0
      %2196 = vmatprep.subr.bf16.mxu0 0
      %2197 = vmatpush1.bf16.xpose.msra.mxu0 0
      %2198 = vmatprep.subr.bf16.mxu0 0
      %2199 = vmatpush1.bf16.xpose.msra.mxu0 0
      %2200 = vmatprep.subr.bf16.mxu0 0
      %2201 = vmatpush1.bf16.xpose.msra.mxu0 0
      %2202 = vmatprep.subr.bf16.mxu0 0
      %2203 = vmatpush1.bf16.xpose.msra.mxu0 0
      %2204 = vmatprep.subr.bf16.mxu0 0
      %2205 = vmatpush1.bf16.xpose.msra.mxu0 0
      %2206 = vmatprep.subr.bf16.mxu0 0
      %2207 = vmatpush1.bf16.xpose.msra.mxu0 0
      %2208 = vmatprep.subr.bf16.mxu0 0
      %2209 = vmatpush1.bf16.xpose.msra.mxu0 0
      %2210 = vmatprep.mubr.bf16.mxu0 0
      %2211 = vmatmul.mubr.bf16.gmra.mrb[0].mxu0 %v2176
      %v2212 = vpop.f32.mrb[0].mxu0
      %v2213 = vadd.f32 0.0, %v2212
      %v2214 = vpop.f32.mrb[0].mxu0
      %v2215 = vpop.f32.mrb[0].mxu0
      %v2216 = vadd.f32 0.0, %v2215
      %v2217 = vpop.f32.mrb[0].mxu0
      %2218 = vdwg.mxu0
      %v2219 = vmul.f32 %v2213, 0.088388346
      %v2220 = vmul.f32 %v2216, 0.088388346
      %v2221 = vsel %vm1613, %v2219, -1e+30
      %v2222 = vsel %vm1614, %v2220, -1e+30
      %v2223 = vsel %vm1715, %v2221, -inf
      %2224 = vmax.xlane.f32.xlu0 %v2223
      %v2225 = vpop.xlane.xlu0 %2224
      %v2226 = vsel %vm1715, %v2222, -inf
      %2227 = vmax.xlane.f32.xlu0 %v2226
      %v2228 = vpop.xlane.xlu0 %2227
      %v2229 = vsub.f32 %v2221, %v2225
      %v2230 = vsub.f32 %v2222, %v2228
      %v2231 = vmul.f32 %v2229, 1.442695
      %v2232 = vpow.pop %v2231
      %v2233 = vmul.f32 %v2230, 1.442695
      %v2234 = vpow.pop %v2233
      %v2235 = vsel %vm1715, %v2232, 0.0
      %2236 = vadd.xlane.f32.xlu0 %v2235
      %v2237 = vpop.xlane.xlu0 %2236
      %v2238 = vsel %vm1715, %v2234, 0.0
      %2239 = vadd.xlane.f32.xlu0 %v2238
      %v2240 = vpop.xlane.xlu0 %2239
      %v2241 = vrcp.pop %v2237
      %v2242 = vmul.f32 %v2232, %v2241
      %v2243 = vrcp.pop %v2240
      %v2244 = vmul.f32 %v2234, %v2243
      %v2245 = vpack.c.bf16 %v2244, %v2242
      %v2246 = vpack.c.bf16 %v1606, %v1602
      %v2248 = vsel %vm1715, %v2245, 0
      %2250 = vmatprep.subr.bf16.mxu0 0
      %2251 = vmatpush1.bf16.msra.mxu0 %v2246
      %2252 = vmatprep.subr.bf16.mxu0 0
      %2253 = vmatpush1.bf16.msra.mxu0 0
      %2254 = vmatprep.subr.bf16.mxu0 0
      %2255 = vmatpush1.bf16.msra.mxu0 0
      %2256 = vmatprep.subr.bf16.mxu0 0
      %2257 = vmatpush1.bf16.msra.mxu0 0
      %2258 = vmatprep.subr.bf16.mxu0 0
      %2259 = vmatpush1.bf16.msra.mxu0 0
      %2260 = vmatprep.subr.bf16.mxu0 0
      %2261 = vmatpush1.bf16.msra.mxu0 0
      %2262 = vmatprep.subr.bf16.mxu0 0
      %2263 = vmatpush1.bf16.msra.mxu0 0
      %2264 = vmatprep.subr.bf16.mxu0 0
      %2265 = vmatpush1.bf16.msra.mxu0 0
      %2266 = vmatprep.subr.bf16.mxu0 0
      %2267 = vmatpush1.bf16.msra.mxu0 0
      %2268 = vmatprep.subr.bf16.mxu0 0
      %2269 = vmatpush1.bf16.msra.mxu0 0
      %2270 = vmatprep.subr.bf16.mxu0 0
      %2271 = vmatpush1.bf16.msra.mxu0 0
      %2272 = vmatprep.subr.bf16.mxu0 0
      %2273 = vmatpush1.bf16.msra.mxu0 0
      %2274 = vmatprep.subr.bf16.mxu0 0
      %2275 = vmatpush1.bf16.msra.mxu0 0
      %2276 = vmatprep.subr.bf16.mxu0 0
      %2277 = vmatpush1.bf16.msra.mxu0 0
      %2278 = vmatprep.subr.bf16.mxu0 0
      %2279 = vmatpush1.bf16.msra.mxu0 0
      %2280 = vmatprep.subr.bf16.mxu0 0
      %2281 = vmatpush1.bf16.msra.mxu0 0
      %2282 = vmatprep.mubr.bf16.mxu0 0
      %2283 = vmatmul.mubr.bf16.gmra.mrb[0].mxu0 %v2248
      %v2284 = vpop.f32.mrb[0].mxu0
      %v2285 = vadd.f32 0.0, %v2284
      %v2286 = vpop.f32.mrb[0].mxu0
      %v2287 = vpop.f32.mrb[0].mxu0
      %v2288 = vadd.f32 0.0, %v2287
      %v2289 = vpop.f32.mrb[0].mxu0
      %2290 = vdwg.mxu0
      %2291 = vst [vmem:[#allocation2 + $0x28] sm:$0xff] %v2285
      %2292 = vst [vmem:[#allocation2 + $0x38] sm:$0xff] %v2288
      %v2293 = vld [vmem:[#allocation2] sm:$0xff]
      %v2294 = vld [vmem:[#allocation2 + $0x8] sm:$0xff]
      %v2295 = vld [vmem:[#allocation2 + $0x10] sm:$0xff]
      %v2296 = vld [vmem:[#allocation2 + $0x18] sm:$0xff]
      %v2297 = vld [vmem:[#allocation2 + $0x20] sm:$0xff]
      %v2298 = vld [vmem:[#allocation2 + $0x28] sm:$0xff]
      %v2299 = vld [vmem:[#allocation2 + $0x30] sm:$0xff]
      %v2300 = vld [vmem:[#allocation2 + $0x38] sm:$0xff]
      %v2301 = vpack.c.bf16 %v2295, %v2293
      %v2302 = vpack.c.bf16 %v2296, %v2294
      %v2303 = vpack.c.bf16 %v2299, %v2297
      %v2304 = vpack.c.bf16 %v2300, %v2298
      %v2305 = vld [vmem:[%s469] sm:$0xff]
      %v2306 = vld [vmem:[%s469 + $0x8] sm:$0xff]
      %v2307 = vld [vmem:[%s469 + $0x10] sm:$0xff]
      %v2308 = vld [vmem:[%s469 + $0x18] sm:$0xff]
      %v2309 = vld [vmem:[%s469 + $0x20] sm:$0xff]
      %v2310 = vld [vmem:[%s469 + $0x28] sm:$0xff]
      %v2311 = vld [vmem:[%s469 + $0x30] sm:$0xff]
      %v2312 = vld [vmem:[%s469 + $0x38] sm:$0xff]
      %v2313 = vld [vmem:[%s469 + $0x40] sm:$0xff]
      %v2314 = vld [vmem:[%s469 + $0x48] sm:$0xff]
      %v2315 = vld [vmem:[%s469 + $0x50] sm:$0xff]
      %v2316 = vld [vmem:[%s469 + $0x58] sm:$0xff]
      %v2317 = vld [vmem:[%s469 + $0x60] sm:$0xff]
      %v2318 = vld [vmem:[%s469 + $0x68] sm:$0xff]
      %v2319 = vld [vmem:[%s469 + $0x70] sm:$0xff]
      %v2320 = vld [vmem:[%s469 + $0x78] sm:$0xff]
      %v2321 = vld [vmem:[%s469 + $0x80] sm:$0xff]
      %v2322 = vld [vmem:[%s469 + $0x88] sm:$0xff]
      %v2323 = vld [vmem:[%s469 + $0x90] sm:$0xff]
      %v2324 = vld [vmem:[%s469 + $0x98] sm:$0xff]
      %v2325 = vld [vmem:[%s469 + $0xa0] sm:$0xff]
      %v2326 = vld [vmem:[%s469 + $0xa8] sm:$0xff]
      %v2327 = vld [vmem:[%s469 + $0xb0] sm:$0xff]
      %v2328 = vld [vmem:[%s469 + $0xb8] sm:$0xff]
      %v2329 = vld [vmem:[%s469 + $0xc0] sm:$0xff]
      %v2330 = vld [vmem:[%s469 + $0xc8] sm:$0xff]
      %v2331 = vld [vmem:[%s469 + $0xd0] sm:$0xff]
      %v2332 = vld [vmem:[%s469 + $0xd8] sm:$0xff]
      %v2333 = vld [vmem:[%s469 + $0xe0] sm:$0xff]
      %v2334 = vld [vmem:[%s469 + $0xe8] sm:$0xff]
      %v2335 = vld [vmem:[%s469 + $0xf0] sm:$0xff]
      %v2336 = vld [vmem:[%s469 + $0xf8] sm:$0xff]
      %v2369 = vunpack.c.l.b16 %v2305
      %v2370 = vunpack.c.h.b16 %v2305
      %v2371 = vunpack.c.l.b16 %v2306
      %v2372 = vunpack.c.h.b16 %v2306
      %v2373 = vunpack.c.l.b16 %v2307
      %v2374 = vunpack.c.h.b16 %v2307
      %v2375 = vunpack.c.l.b16 %v2308
      %v2376 = vunpack.c.h.b16 %v2308
      %v2377 = vunpack.c.l.b16 %v2309
      %v2378 = vunpack.c.h.b16 %v2309
      %v2379 = vunpack.c.l.b16 %v2310
      %v2380 = vunpack.c.h.b16 %v2310
      %v2381 = vunpack.c.l.b16 %v2311
      %v2382 = vunpack.c.h.b16 %v2311
      %v2383 = vunpack.c.l.b16 %v2312
      %v2384 = vunpack.c.h.b16 %v2312
      %v2385 = vunpack.c.l.b16 %v2313
      %v2386 = vunpack.c.h.b16 %v2313
      %v2387 = vunpack.c.l.b16 %v2314
      %v2388 = vunpack.c.h.b16 %v2314
      %v2389 = vunpack.c.l.b16 %v2315
      %v2390 = vunpack.c.h.b16 %v2315
      %v2391 = vunpack.c.l.b16 %v2316
      %v2392 = vunpack.c.h.b16 %v2316
      %v2393 = vunpack.c.l.b16 %v2317
      %v2394 = vunpack.c.h.b16 %v2317
      %v2395 = vunpack.c.l.b16 %v2318
      %v2396 = vunpack.c.h.b16 %v2318
      %v2397 = vunpack.c.l.b16 %v2319
      %v2398 = vunpack.c.h.b16 %v2319
      %v2399 = vunpack.c.l.b16 %v2320
      %v2400 = vunpack.c.h.b16 %v2320
      %v2401 = vunpack.c.l.b16 %v2321
      %v2402 = vunpack.c.h.b16 %v2321
      %v2403 = vunpack.c.l.b16 %v2322
      %v2404 = vunpack.c.h.b16 %v2322
      %v2405 = vunpack.c.l.b16 %v2323
      %v2406 = vunpack.c.h.b16 %v2323
      %v2407 = vunpack.c.l.b16 %v2324
      %v2408 = vunpack.c.h.b16 %v2324
      %v2409 = vunpack.c.l.b16 %v2325
      %v2410 = vunpack.c.h.b16 %v2325
      %v2411 = vunpack.c.l.b16 %v2326
      %v2412 = vunpack.c.h.b16 %v2326
      %v2413 = vunpack.c.l.b16 %v2327
      %v2414 = vunpack.c.h.b16 %v2327
      %v2415 = vunpack.c.l.b16 %v2328
      %v2416 = vunpack.c.h.b16 %v2328
      %v2417 = vunpack.c.l.b16 %v2329
      %v2418 = vunpack.c.h.b16 %v2329
      %v2419 = vunpack.c.l.b16 %v2330
      %v2420 = vunpack.c.h.b16 %v2330
      %v2421 = vunpack.c.l.b16 %v2331
      %v2422 = vunpack.c.h.b16 %v2331
      %v2423 = vunpack.c.l.b16 %v2332
      %v2424 = vunpack.c.h.b16 %v2332
      %v2425 = vunpack.c.l.b16 %v2333
      %v2426 = vunpack.c.h.b16 %v2333
      %v2427 = vunpack.c.l.b16 %v2334
      %v2428 = vunpack.c.h.b16 %v2334
      %v2429 = vunpack.c.l.b16 %v2335
      %v2430 = vunpack.c.h.b16 %v2335
      %v2431 = vunpack.c.l.b16 %v2336
      %v2432 = vunpack.c.h.b16 %v2336
      %v2433 = vpack.c.b16 %v2371, %v2369
      %v2434 = vpack.c.b16 %v2372, %v2370
      %v2435 = vpack.c.b16 %v2375, %v2373
      %v2436 = vpack.c.b16 %v2376, %v2374
      %v2437 = vpack.c.b16 %v2379, %v2377
      %v2438 = vpack.c.b16 %v2380, %v2378
      %v2439 = vpack.c.b16 %v2383, %v2381
      %v2440 = vpack.c.b16 %v2384, %v2382
      %v2441 = vpack.c.b16 %v2387, %v2385
      %v2442 = vpack.c.b16 %v2388, %v2386
      %v2443 = vpack.c.b16 %v2391, %v2389
      %v2444 = vpack.c.b16 %v2392, %v2390
      %v2445 = vpack.c.b16 %v2395, %v2393
      %v2446 = vpack.c.b16 %v2396, %v2394
      %v2447 = vpack.c.b16 %v2399, %v2397
      %v2448 = vpack.c.b16 %v2400, %v2398
      %v2449 = vpack.c.b16 %v2403, %v2401
      %v2450 = vpack.c.b16 %v2404, %v2402
      %v2451 = vpack.c.b16 %v2407, %v2405
      %v2452 = vpack.c.b16 %v2408, %v2406
      %v2453 = vpack.c.b16 %v2411, %v2409
      %v2454 = vpack.c.b16 %v2412, %v2410
      %v2455 = vpack.c.b16 %v2415, %v2413
      %v2456 = vpack.c.b16 %v2416, %v2414
      %v2457 = vpack.c.b16 %v2419, %v2417
      %v2458 = vpack.c.b16 %v2420, %v2418
      %v2459 = vpack.c.b16 %v2423, %v2421
      %v2460 = vpack.c.b16 %v2424, %v2422
      %v2461 = vpack.c.b16 %v2427, %v2425
      %v2462 = vpack.c.b16 %v2428, %v2426
      %v2463 = vpack.c.b16 %v2431, %v2429
      %v2464 = vpack.c.b16 %v2432, %v2430
      %2497 = vmatprep.subr.bf16.mxu0 %v2434
      %2498 = vmatpush1.bf16.msra.mxu0 %v2433
      %2499 = vmatprep.subr.bf16.mxu0 %v2436
      %2500 = vmatpush1.bf16.msra.mxu0 %v2435
      %2501 = vmatprep.subr.bf16.mxu0 %v2438
      %2502 = vmatpush1.bf16.msra.mxu0 %v2437
      %2503 = vmatprep.subr.bf16.mxu0 %v2440
      %2504 = vmatpush1.bf16.msra.mxu0 %v2439
      %2505 = vmatprep.subr.bf16.mxu0 %v2442
      %2506 = vmatpush1.bf16.msra.mxu0 %v2441
      %2507 = vmatprep.subr.bf16.mxu0 %v2444
      %2508 = vmatpush1.bf16.msra.mxu0 %v2443
      %2509 = vmatprep.subr.bf16.mxu0 %v2446
      %2510 = vmatpush1.bf16.msra.mxu0 %v2445
      %2511 = vmatprep.subr.bf16.mxu0 %v2448
      %2512 = vmatpush1.bf16.msra.mxu0 %v2447
      %2513 = vmatprep.subr.bf16.mxu0 %v2450
      %2514 = vmatpush1.bf16.msra.mxu0 %v2449
      %2515 = vmatprep.subr.bf16.mxu0 %v2452
      %2516 = vmatpush1.bf16.msra.mxu0 %v2451
      %2517 = vmatprep.subr.bf16.mxu0 %v2454
      %2518 = vmatpush1.bf16.msra.mxu0 %v2453
      %2519 = vmatprep.subr.bf16.mxu0 %v2456
      %2520 = vmatpush1.bf16.msra.mxu0 %v2455
      %2521 = vmatprep.subr.bf16.mxu0 %v2458
      %2522 = vmatpush1.bf16.msra.mxu0 %v2457
      %2523 = vmatprep.subr.bf16.mxu0 %v2460
      %2524 = vmatpush1.bf16.msra.mxu0 %v2459
      %2525 = vmatprep.subr.bf16.mxu0 %v2462
      %2526 = vmatpush1.bf16.msra.mxu0 %v2461
      %2527 = vmatprep.subr.bf16.mxu0 %v2464
      %2528 = vmatpush1.bf16.msra.mxu0 %v2463
      %2529 = vmatprep.mubr.bf16.mxu0 %v2302
      %2530 = vmatmul.mubr.bf16.gmra.mrb[0].mxu0 %v2301
      %v2531 = vpop.f32.mrb[0].mxu0
      %v2532 = vadd.f32 0.0, %v2531
      %v2533 = vpop.f32.mrb[0].mxu0
      %v2534 = vadd.f32 0.0, %v2533
      %v2535 = vpop.f32.mrb[0].mxu0
      %v2536 = vadd.f32 0.0, %v2535
      %v2537 = vpop.f32.mrb[0].mxu0
      %v2538 = vadd.f32 0.0, %v2537
      %2539 = vmatprep.mubr.bf16.mxu0 %v2304
      %2540 = vmatmul.mubr.bf16.gmra.mrb[0].mxu0 %v2303
      %v2541 = vpop.f32.mrb[0].mxu0
      %v2542 = vadd.f32 0.0, %v2541
      %v2543 = vpop.f32.mrb[0].mxu0
      %v2544 = vadd.f32 0.0, %v2543
      %v2545 = vpop.f32.mrb[0].mxu0
      %v2546 = vadd.f32 0.0, %v2545
      %v2547 = vpop.f32.mrb[0].mxu0
      %v2548 = vadd.f32 0.0, %v2547
      %2549 = vdwg.mxu0
      %v2550 = vadd.f32 %v796, %v2532
      %v2551 = vadd.f32 %v797, %v2534
      %v2552 = vadd.f32 %v798, %v2536
      %v2553 = vadd.f32 %v799, %v2538
      %v2554 = vadd.f32 %v800, %v2542
      %v2555 = vadd.f32 %v801, %v2544
      %v2556 = vadd.f32 %v802, %v2546
      %v2557 = vadd.f32 %v803, %v2548
      %v2558 = vld [vmem:[%s473] sm:$0x3]
      %v2559 = vmul.f32 %v2550, %v2550
      %v2560 = vmul.f32 %v2551, %v2551
      %v2561 = vmul.f32 %v2552, %v2552
      %v2562 = vmul.f32 %v2553, %v2553
      %v2563 = vmul.f32 %v2554, %v2554
      %v2564 = vmul.f32 %v2555, %v2555
      %v2565 = vmul.f32 %v2556, %v2556
      %v2566 = vmul.f32 %v2557, %v2557
      %v2567 = vadd.f32 %v2559, %v2560
      %2568 = vadd.xlane.f32.xlu0 %v2567
      %v2569 = vpop.xlane.xlu0 %2568
      %v2570 = vadd.f32 %v2561, %v2562
      %2571 = vadd.xlane.f32.xlu0 %v2570
      %v2572 = vpop.xlane.xlu0 %2571
      %v2573 = vadd.f32 %v2563, %v2564
      %2574 = vadd.xlane.f32.xlu0 %v2573
      %v2575 = vpop.xlane.xlu0 %2574
      %v2576 = vadd.f32 %v2565, %v2566
      %2577 = vadd.xlane.f32.xlu0 %v2576
      %v2578 = vpop.xlane.xlu0 %2577
      %v2579 = vmul.f32 %v2569, %v829
      %v2580 = vmul.f32 %v2572, %v829
      %v2581 = vmul.f32 %v2575, %v829
      %v2582 = vmul.f32 %v2578, %v829
      %v2583 = vadd.f32 %v2579, 1e-06
      %v2584 = vadd.f32 %v2580, 1e-06
      %v2585 = vadd.f32 %v2581, 1e-06
      %v2586 = vadd.f32 %v2582, 1e-06
      %v2587 = vrsqrt.pop %v2583
      %v2588 = vrsqrt.pop %v2584
      %v2589 = vrsqrt.pop %v2585
      %v2590 = vrsqrt.pop %v2586
      %v2591 = vmul.f32 %v2550, %v2587
      %v2592 = vmul.f32 %v2551, %v2587
      %v2593 = vmul.f32 %v2552, %v2588
      %v2594 = vmul.f32 %v2553, %v2588
      %v2595 = vmul.f32 %v2554, %v2589
      %v2596 = vmul.f32 %v2555, %v2589
      %v2597 = vmul.f32 %v2556, %v2590
      %v2598 = vmul.f32 %v2557, %v2590
      %v2600 = vlaneseq
      %v2601 = vshrl.u32 %v2600, 7
      %v2602 = vsub.s32 0, %v2601
      %v2603 = vrot.slane %v2558, %v2602
      %v2604 = vlaneseq
      %v2605 = vshrl.u32 %v2604, 7
      %v2606 = vsub.s32 1, %v2605
      %v2607 = vrot.slane %v2558, %v2606
      %v2610 = vmul.f32 %v2591, %v2603
      %v2611 = vmul.f32 %v2592, %v2607
      %v2612 = vmul.f32 %v2593, %v2603
      %v2613 = vmul.f32 %v2594, %v2607
      %v2614 = vmul.f32 %v2595, %v2603
      %v2615 = vmul.f32 %v2596, %v2607
      %v2616 = vmul.f32 %v2597, %v2603
      %v2617 = vmul.f32 %v2598, %v2607
      %v2618 = vpack.c.bf16 %v2612, %v2610
      %v2619 = vpack.c.bf16 %v2613, %v2611
      %v2620 = vpack.c.bf16 %v2616, %v2614
      %v2621 = vpack.c.bf16 %v2617, %v2615
      %v2622 = vld [vmem:[%s478] sm:$0xff]
      %v2623 = vld [vmem:[%s478 + $0x8] sm:$0xff]
      %v2624 = vld [vmem:[%s478 + $0x10] sm:$0xff]
      %v2625 = vld [vmem:[%s478 + $0x18] sm:$0xff]
      %v2626 = vld [vmem:[%s478 + $0x20] sm:$0xff]
      %v2627 = vld [vmem:[%s478 + $0x28] sm:$0xff]
      %v2628 = vld [vmem:[%s478 + $0x30] sm:$0xff]
      %v2629 = vld [vmem:[%s478 + $0x38] sm:$0xff]
      %v2630 = vld [vmem:[%s478 + $0x40] sm:$0xff]
      %v2631 = vld [vmem:[%s478 + $0x48] sm:$0xff]
      %v2632 = vld [vmem:[%s478 + $0x50] sm:$0xff]
      %v2633 = vld [vmem:[%s478 + $0x58] sm:$0xff]
      %v2634 = vld [vmem:[%s478 + $0x60] sm:$0xff]
      %v2635 = vld [vmem:[%s478 + $0x68] sm:$0xff]
      %v2636 = vld [vmem:[%s478 + $0x70] sm:$0xff]
      %v2637 = vld [vmem:[%s478 + $0x78] sm:$0xff]
      %v2638 = vld [vmem:[%s478 + $0x80] sm:$0xff]
      %v2639 = vld [vmem:[%s478 + $0x88] sm:$0xff]
      %v2640 = vld [vmem:[%s478 + $0x90] sm:$0xff]
      %v2641 = vld [vmem:[%s478 + $0x98] sm:$0xff]
      %v2642 = vld [vmem:[%s478 + $0xa0] sm:$0xff]
      %v2643 = vld [vmem:[%s478 + $0xa8] sm:$0xff]
      %v2644 = vld [vmem:[%s478 + $0xb0] sm:$0xff]
      %v2645 = vld [vmem:[%s478 + $0xb8] sm:$0xff]
      %v2646 = vld [vmem:[%s478 + $0xc0] sm:$0xff]
      %v2647 = vld [vmem:[%s478 + $0xc8] sm:$0xff]
      %v2648 = vld [vmem:[%s478 + $0xd0] sm:$0xff]
      %v2649 = vld [vmem:[%s478 + $0xd8] sm:$0xff]
      %v2650 = vld [vmem:[%s478 + $0xe0] sm:$0xff]
      %v2651 = vld [vmem:[%s478 + $0xe8] sm:$0xff]
      %v2652 = vld [vmem:[%s478 + $0xf0] sm:$0xff]
      %v2653 = vld [vmem:[%s478 + $0xf8] sm:$0xff]
      %v2654 = vld [vmem:[%s478 + $0x100] sm:$0xff]
      %v2655 = vld [vmem:[%s478 + $0x108] sm:$0xff]
      %v2656 = vld [vmem:[%s478 + $0x110] sm:$0xff]
      %v2657 = vld [vmem:[%s478 + $0x118] sm:$0xff]
      %v2658 = vld [vmem:[%s478 + $0x120] sm:$0xff]
      %v2659 = vld [vmem:[%s478 + $0x128] sm:$0xff]
      %v2660 = vld [vmem:[%s478 + $0x130] sm:$0xff]
      %v2661 = vld [vmem:[%s478 + $0x138] sm:$0xff]
      %v2662 = vld [vmem:[%s478 + $0x140] sm:$0xff]
      %v2663 = vld [vmem:[%s478 + $0x148] sm:$0xff]
      %v2664 = vld [vmem:[%s478 + $0x150] sm:$0xff]
      %v2665 = vld [vmem:[%s478 + $0x158] sm:$0xff]
      %v2666 = vld [vmem:[%s478 + $0x160] sm:$0xff]
      %v2667 = vld [vmem:[%s478 + $0x168] sm:$0xff]
      %v2668 = vld [vmem:[%s478 + $0x170] sm:$0xff]
      %v2669 = vld [vmem:[%s478 + $0x178] sm:$0xff]
      %v2670 = vld [vmem:[%s478 + $0x180] sm:$0xff]
      %v2671 = vld [vmem:[%s478 + $0x188] sm:$0xff]
      %v2672 = vld [vmem:[%s478 + $0x190] sm:$0xff]
      %v2673 = vld [vmem:[%s478 + $0x198] sm:$0xff]
      %v2674 = vld [vmem:[%s478 + $0x1a0] sm:$0xff]
      %v2675 = vld [vmem:[%s478 + $0x1a8] sm:$0xff]
      %v2676 = vld [vmem:[%s478 + $0x1b0] sm:$0xff]
      %v2677 = vld [vmem:[%s478 + $0x1b8] sm:$0xff]
      %v2678 = vld [vmem:[%s478 + $0x1c0] sm:$0xff]
      %v2679 = vld [vmem:[%s478 + $0x1c8] sm:$0xff]
      %v2680 = vld [vmem:[%s478 + $0x1d0] sm:$0xff]
      %v2681 = vld [vmem:[%s478 + $0x1d8] sm:$0xff]
      %v2682 = vld [vmem:[%s478 + $0x1e0] sm:$0xff]
      %v2683 = vld [vmem:[%s478 + $0x1e8] sm:$0xff]
      %v2684 = vld [vmem:[%s478 + $0x1f0] sm:$0xff]
      %v2685 = vld [vmem:[%s478 + $0x1f8] sm:$0xff]
      %v2686 = vld [vmem:[%s478 + $0x200] sm:$0xff]
      %v2687 = vld [vmem:[%s478 + $0x208] sm:$0xff]
      %v2688 = vld [vmem:[%s478 + $0x210] sm:$0xff]
      %v2689 = vld [vmem:[%s478 + $0x218] sm:$0xff]
      %v2690 = vld [vmem:[%s478 + $0x220] sm:$0xff]
      %v2691 = vld [vmem:[%s478 + $0x228] sm:$0xff]
      %v2692 = vld [vmem:[%s478 + $0x230] sm:$0xff]
      %v2693 = vld [vmem:[%s478 + $0x238] sm:$0xff]
      %v2694 = vld [vmem:[%s478 + $0x240] sm:$0xff]
      %v2695 = vld [vmem:[%s478 + $0x248] sm:$0xff]
      %v2696 = vld [vmem:[%s478 + $0x250] sm:$0xff]
      %v2697 = vld [vmem:[%s478 + $0x258] sm:$0xff]
      %v2698 = vld [vmem:[%s478 + $0x260] sm:$0xff]
      %v2699 = vld [vmem:[%s478 + $0x268] sm:$0xff]
      %v2700 = vld [vmem:[%s478 + $0x270] sm:$0xff]
      %v2701 = vld [vmem:[%s478 + $0x278] sm:$0xff]
      %v2702 = vld [vmem:[%s478 + $0x280] sm:$0xff]
      %v2703 = vld [vmem:[%s478 + $0x288] sm:$0xff]
      %v2704 = vld [vmem:[%s478 + $0x290] sm:$0xff]
      %v2705 = vld [vmem:[%s478 + $0x298] sm:$0xff]
      %v2706 = vld [vmem:[%s478 + $0x2a0] sm:$0xff]
      %v2707 = vld [vmem:[%s478 + $0x2a8] sm:$0xff]
      %v2708 = vld [vmem:[%s478 + $0x2b0] sm:$0xff]
      %v2709 = vld [vmem:[%s478 + $0x2b8] sm:$0xff]
      %v2710 = vld [vmem:[%s478 + $0x2c0] sm:$0xff]
      %v2711 = vld [vmem:[%s478 + $0x2c8] sm:$0xff]
      %v2712 = vld [vmem:[%s478 + $0x2d0] sm:$0xff]
      %v2713 = vld [vmem:[%s478 + $0x2d8] sm:$0xff]
      %v2714 = vld [vmem:[%s478 + $0x2e0] sm:$0xff]
      %v2715 = vld [vmem:[%s478 + $0x2e8] sm:$0xff]
      %v2716 = vld [vmem:[%s478 + $0x2f0] sm:$0xff]
      %v2717 = vld [vmem:[%s478 + $0x2f8] sm:$0xff]
      %v2718 = vld [vmem:[%s478 + $0x300] sm:$0xff]
      %v2719 = vld [vmem:[%s478 + $0x308] sm:$0xff]
      %v2720 = vld [vmem:[%s478 + $0x310] sm:$0xff]
      %v2721 = vld [vmem:[%s478 + $0x318] sm:$0xff]
      %v2722 = vld [vmem:[%s478 + $0x320] sm:$0xff]
      %v2723 = vld [vmem:[%s478 + $0x328] sm:$0xff]
      %v2724 = vld [vmem:[%s478 + $0x330] sm:$0xff]
      %v2725 = vld [vmem:[%s478 + $0x338] sm:$0xff]
      %v2726 = vld [vmem:[%s478 + $0x340] sm:$0xff]
      %v2727 = vld [vmem:[%s478 + $0x348] sm:$0xff]
      %v2728 = vld [vmem:[%s478 + $0x350] sm:$0xff]
      %v2729 = vld [vmem:[%s478 + $0x358] sm:$0xff]
      %v2730 = vld [vmem:[%s478 + $0x360] sm:$0xff]
      %v2731 = vld [vmem:[%s478 + $0x368] sm:$0xff]
      %v2732 = vld [vmem:[%s478 + $0x370] sm:$0xff]
      %v2733 = vld [vmem:[%s478 + $0x378] sm:$0xff]
      %v2734 = vld [vmem:[%s478 + $0x380] sm:$0xff]
      %v2735 = vld [vmem:[%s478 + $0x388] sm:$0xff]
      %v2736 = vld [vmem:[%s478 + $0x390] sm:$0xff]
      %v2737 = vld [vmem:[%s478 + $0x398] sm:$0xff]
      %v2738 = vld [vmem:[%s478 + $0x3a0] sm:$0xff]
      %v2739 = vld [vmem:[%s478 + $0x3a8] sm:$0xff]
      %v2740 = vld [vmem:[%s478 + $0x3b0] sm:$0xff]
      %v2741 = vld [vmem:[%s478 + $0x3b8] sm:$0xff]
      %v2742 = vld [vmem:[%s478 + $0x3c0] sm:$0xff]
      %v2743 = vld [vmem:[%s478 + $0x3c8] sm:$0xff]
      %v2744 = vld [vmem:[%s478 + $0x3d0] sm:$0xff]
      %v2745 = vld [vmem:[%s478 + $0x3d8] sm:$0xff]
      %v2746 = vld [vmem:[%s478 + $0x3e0] sm:$0xff]
      %v2747 = vld [vmem:[%s478 + $0x3e8] sm:$0xff]
      %v2748 = vld [vmem:[%s478 + $0x3f0] sm:$0xff]
      %v2749 = vld [vmem:[%s478 + $0x3f8] sm:$0xff]
      %v2878 = vunpack.c.l.b16 %v2622
      %v2879 = vunpack.c.h.b16 %v2622
      %v2880 = vunpack.c.l.b16 %v2623
      %v2881 = vunpack.c.h.b16 %v2623
      %v2882 = vunpack.c.l.b16 %v2624
      %v2883 = vunpack.c.h.b16 %v2624
      %v2884 = vunpack.c.l.b16 %v2625
      %v2885 = vunpack.c.h.b16 %v2625
      %v2886 = vunpack.c.l.b16 %v2626
      %v2887 = vunpack.c.h.b16 %v2626
      %v2888 = vunpack.c.l.b16 %v2627
      %v2889 = vunpack.c.h.b16 %v2627
      %v2890 = vunpack.c.l.b16 %v2628
      %v2891 = vunpack.c.h.b16 %v2628
      %v2892 = vunpack.c.l.b16 %v2629
      %v2893 = vunpack.c.h.b16 %v2629
      %v2894 = vunpack.c.l.b16 %v2630
      %v2895 = vunpack.c.h.b16 %v2630
      %v2896 = vunpack.c.l.b16 %v2631
      %v2897 = vunpack.c.h.b16 %v2631
      %v2898 = vunpack.c.l.b16 %v2632
      %v2899 = vunpack.c.h.b16 %v2632
      %v2900 = vunpack.c.l.b16 %v2633
      %v2901 = vunpack.c.h.b16 %v2633
      %v2902 = vunpack.c.l.b16 %v2634
      %v2903 = vunpack.c.h.b16 %v2634
      %v2904 = vunpack.c.l.b16 %v2635
      %v2905 = vunpack.c.h.b16 %v2635
      %v2906 = vunpack.c.l.b16 %v2636
      %v2907 = vunpack.c.h.b16 %v2636
      %v2908 = vunpack.c.l.b16 %v2637
      %v2909 = vunpack.c.h.b16 %v2637
      %v2910 = vunpack.c.l.b16 %v2638
      %v2911 = vunpack.c.h.b16 %v2638
      %v2912 = vunpack.c.l.b16 %v2639
      %v2913 = vunpack.c.h.b16 %v2639
      %v2914 = vunpack.c.l.b16 %v2640
      %v2915 = vunpack.c.h.b16 %v2640
      %v2916 = vunpack.c.l.b16 %v2641
      %v2917 = vunpack.c.h.b16 %v2641
      %v2918 = vunpack.c.l.b16 %v2642
      %v2919 = vunpack.c.h.b16 %v2642
      %v2920 = vunpack.c.l.b16 %v2643
      %v2921 = vunpack.c.h.b16 %v2643
      %v2922 = vunpack.c.l.b16 %v2644
      %v2923 = vunpack.c.h.b16 %v2644
      %v2924 = vunpack.c.l.b16 %v2645
      %v2925 = vunpack.c.h.b16 %v2645
      %v2926 = vunpack.c.l.b16 %v2646
      %v2927 = vunpack.c.h.b16 %v2646
      %v2928 = vunpack.c.l.b16 %v2647
      %v2929 = vunpack.c.h.b16 %v2647
      %v2930 = vunpack.c.l.b16 %v2648
      %v2931 = vunpack.c.h.b16 %v2648
      %v2932 = vunpack.c.l.b16 %v2649
      %v2933 = vunpack.c.h.b16 %v2649
      %v2934 = vunpack.c.l.b16 %v2650
      %v2935 = vunpack.c.h.b16 %v2650
      %v2936 = vunpack.c.l.b16 %v2651
      %v2937 = vunpack.c.h.b16 %v2651
      %v2938 = vunpack.c.l.b16 %v2652
      %v2939 = vunpack.c.h.b16 %v2652
      %v2940 = vunpack.c.l.b16 %v2653
      %v2941 = vunpack.c.h.b16 %v2653
      %v2942 = vunpack.c.l.b16 %v2654
      %v2943 = vunpack.c.h.b16 %v2654
      %v2944 = vunpack.c.l.b16 %v2655
      %v2945 = vunpack.c.h.b16 %v2655
      %v2946 = vunpack.c.l.b16 %v2656
      %v2947 = vunpack.c.h.b16 %v2656
      %v2948 = vunpack.c.l.b16 %v2657
      %v2949 = vunpack.c.h.b16 %v2657
      %v2950 = vunpack.c.l.b16 %v2658
      %v2951 = vunpack.c.h.b16 %v2658
      %v2952 = vunpack.c.l.b16 %v2659
      %v2953 = vunpack.c.h.b16 %v2659
      %v2954 = vunpack.c.l.b16 %v2660
      %v2955 = vunpack.c.h.b16 %v2660
      %v2956 = vunpack.c.l.b16 %v2661
      %v2957 = vunpack.c.h.b16 %v2661
      %v2958 = vunpack.c.l.b16 %v2662
      %v2959 = vunpack.c.h.b16 %v2662
      %v2960 = vunpack.c.l.b16 %v2663
      %v2961 = vunpack.c.h.b16 %v2663
      %v2962 = vunpack.c.l.b16 %v2664
      %v2963 = vunpack.c.h.b16 %v2664
      %v2964 = vunpack.c.l.b16 %v2665
      %v2965 = vunpack.c.h.b16 %v2665
      %v2966 = vunpack.c.l.b16 %v2666
      %v2967 = vunpack.c.h.b16 %v2666
      %v2968 = vunpack.c.l.b16 %v2667
      %v2969 = vunpack.c.h.b16 %v2667
      %v2970 = vunpack.c.l.b16 %v2668
      %v2971 = vunpack.c.h.b16 %v2668
      %v2972 = vunpack.c.l.b16 %v2669
      %v2973 = vunpack.c.h.b16 %v2669
      %v2974 = vunpack.c.l.b16 %v2670
      %v2975 = vunpack.c.h.b16 %v2670
      %v2976 = vunpack.c.l.b16 %v2671
      %v2977 = vunpack.c.h.b16 %v2671
      %v2978 = vunpack.c.l.b16 %v2672
      %v2979 = vunpack.c.h.b16 %v2672
      %v2980 = vunpack.c.l.b16 %v2673
      %v2981 = vunpack.c.h.b16 %v2673
      %v2982 = vunpack.c.l.b16 %v2674
      %v2983 = vunpack.c.h.b16 %v2674
      %v2984 = vunpack.c.l.b16 %v2675
      %v2985 = vunpack.c.h.b16 %v2675
      %v2986 = vunpack.c.l.b16 %v2676
      %v2987 = vunpack.c.h.b16 %v2676
      %v2988 = vunpack.c.l.b16 %v2677
      %v2989 = vunpack.c.h.b16 %v2677
      %v2990 = vunpack.c.l.b16 %v2678
      %v2991 = vunpack.c.h.b16 %v2678
      %v2992 = vunpack.c.l.b16 %v2679
      %v2993 = vunpack.c.h.b16 %v2679
      %v2994 = vunpack.c.l.b16 %v2680
      %v2995 = vunpack.c.h.b16 %v2680
      %v2996 = vunpack.c.l.b16 %v2681
      %v2997 = vunpack.c.h.b16 %v2681
      %v2998 = vunpack.c.l.b16 %v2682
      %v2999 = vunpack.c.h.b16 %v2682
      %v3000 = vunpack.c.l.b16 %v2683
      %v3001 = vunpack.c.h.b16 %v2683
      %v3002 = vunpack.c.l.b16 %v2684
      %v3003 = vunpack.c.h.b16 %v2684
      %v3004 = vunpack.c.l.b16 %v2685
      %v3005 = vunpack.c.h.b16 %v2685
      %v3006 = vunpack.c.l.b16 %v2686
      %v3007 = vunpack.c.h.b16 %v2686
      %v3008 = vunpack.c.l.b16 %v2687
      %v3009 = vunpack.c.h.b16 %v2687
      %v3010 = vunpack.c.l.b16 %v2688
      %v3011 = vunpack.c.h.b16 %v2688
      %v3012 = vunpack.c.l.b16 %v2689
      %v3013 = vunpack.c.h.b16 %v2689
      %v3014 = vunpack.c.l.b16 %v2690
      %v3015 = vunpack.c.h.b16 %v2690
      %v3016 = vunpack.c.l.b16 %v2691
      %v3017 = vunpack.c.h.b16 %v2691
      %v3018 = vunpack.c.l.b16 %v2692
      %v3019 = vunpack.c.h.b16 %v2692
      %v3020 = vunpack.c.l.b16 %v2693
      %v3021 = vunpack.c.h.b16 %v2693
      %v3022 = vunpack.c.l.b16 %v2694
      %v3023 = vunpack.c.h.b16 %v2694
      %v3024 = vunpack.c.l.b16 %v2695
      %v3025 = vunpack.c.h.b16 %v2695
      %v3026 = vunpack.c.l.b16 %v2696
      %v3027 = vunpack.c.h.b16 %v2696
      %v3028 = vunpack.c.l.b16 %v2697
      %v3029 = vunpack.c.h.b16 %v2697
      %v3030 = vunpack.c.l.b16 %v2698
      %v3031 = vunpack.c.h.b16 %v2698
      %v3032 = vunpack.c.l.b16 %v2699
      %v3033 = vunpack.c.h.b16 %v2699
      %v3034 = vunpack.c.l.b16 %v2700
      %v3035 = vunpack.c.h.b16 %v2700
      %v3036 = vunpack.c.l.b16 %v2701
      %v3037 = vunpack.c.h.b16 %v2701
      %v3038 = vunpack.c.l.b16 %v2702
      %v3039 = vunpack.c.h.b16 %v2702
      %v3040 = vunpack.c.l.b16 %v2703
      %v3041 = vunpack.c.h.b16 %v2703
      %v3042 = vunpack.c.l.b16 %v2704
      %v3043 = vunpack.c.h.b16 %v2704
      %v3044 = vunpack.c.l.b16 %v2705
      %v3045 = vunpack.c.h.b16 %v2705
      %v3046 = vunpack.c.l.b16 %v2706
      %v3047 = vunpack.c.h.b16 %v2706
      %v3048 = vunpack.c.l.b16 %v2707
      %v3049 = vunpack.c.h.b16 %v2707
      %v3050 = vunpack.c.l.b16 %v2708
      %v3051 = vunpack.c.h.b16 %v2708
      %v3052 = vunpack.c.l.b16 %v2709
      %v3053 = vunpack.c.h.b16 %v2709
      %v3054 = vunpack.c.l.b16 %v2710
      %v3055 = vunpack.c.h.b16 %v2710
      %v3056 = vunpack.c.l.b16 %v2711
      %v3057 = vunpack.c.h.b16 %v2711
      %v3058 = vunpack.c.l.b16 %v2712
      %v3059 = vunpack.c.h.b16 %v2712
      %v3060 = vunpack.c.l.b16 %v2713
      %v3061 = vunpack.c.h.b16 %v2713
      %v3062 = vunpack.c.l.b16 %v2714
      %v3063 = vunpack.c.h.b16 %v2714
      %v3064 = vunpack.c.l.b16 %v2715
      %v3065 = vunpack.c.h.b16 %v2715
      %v3066 = vunpack.c.l.b16 %v2716
      %v3067 = vunpack.c.h.b16 %v2716
      %v3068 = vunpack.c.l.b16 %v2717
      %v3069 = vunpack.c.h.b16 %v2717
      %v3070 = vunpack.c.l.b16 %v2718
      %v3071 = vunpack.c.h.b16 %v2718
      %v3072 = vunpack.c.l.b16 %v2719
      %v3073 = vunpack.c.h.b16 %v2719
      %v3074 = vunpack.c.l.b16 %v2720
      %v3075 = vunpack.c.h.b16 %v2720
      %v3076 = vunpack.c.l.b16 %v2721
      %v3077 = vunpack.c.h.b16 %v2721
      %v3078 = vunpack.c.l.b16 %v2722
      %v3079 = vunpack.c.h.b16 %v2722
      %v3080 = vunpack.c.l.b16 %v2723
      %v3081 = vunpack.c.h.b16 %v2723
      %v3082 = vunpack.c.l.b16 %v2724
      %v3083 = vunpack.c.h.b16 %v2724
      %v3084 = vunpack.c.l.b16 %v2725
      %v3085 = vunpack.c.h.b16 %v2725
      %v3086 = vunpack.c.l.b16 %v2726
      %v3087 = vunpack.c.h.b16 %v2726
      %v3088 = vunpack.c.l.b16 %v2727
      %v3089 = vunpack.c.h.b16 %v2727
      %v3090 = vunpack.c.l.b16 %v2728
      %v3091 = vunpack.c.h.b16 %v2728
      %v3092 = vunpack.c.l.b16 %v2729
      %v3093 = vunpack.c.h.b16 %v2729
      %v3094 = vunpack.c.l.b16 %v2730
      %v3095 = vunpack.c.h.b16 %v2730
      %v3096 = vunpack.c.l.b16 %v2731
      %v3097 = vunpack.c.h.b16 %v2731
      %v3098 = vunpack.c.l.b16 %v2732
      %v3099 = vunpack.c.h.b16 %v2732
      %v3100 = vunpack.c.l.b16 %v2733
      %v3101 = vunpack.c.h.b16 %v2733
      %v3102 = vunpack.c.l.b16 %v2734
      %v3103 = vunpack.c.h.b16 %v2734
      %v3104 = vunpack.c.l.b16 %v2735
      %v3105 = vunpack.c.h.b16 %v2735
      %v3106 = vunpack.c.l.b16 %v2736
      %v3107 = vunpack.c.h.b16 %v2736
      %v3108 = vunpack.c.l.b16 %v2737
      %v3109 = vunpack.c.h.b16 %v2737
      %v3110 = vunpack.c.l.b16 %v2738
      %v3111 = vunpack.c.h.b16 %v2738
      %v3112 = vunpack.c.l.b16 %v2739
      %v3113 = vunpack.c.h.b16 %v2739
      %v3114 = vunpack.c.l.b16 %v2740
      %v3115 = vunpack.c.h.b16 %v2740
      %v3116 = vunpack.c.l.b16 %v2741
      %v3117 = vunpack.c.h.b16 %v2741
      %v3118 = vunpack.c.l.b16 %v2742
      %v3119 = vunpack.c.h.b16 %v2742
      %v3120 = vunpack.c.l.b16 %v2743
      %v3121 = vunpack.c.h.b16 %v2743
      %v3122 = vunpack.c.l.b16 %v2744
      %v3123 = vunpack.c.h.b16 %v2744
      %v3124 = vunpack.c.l.b16 %v2745
      %v3125 = vunpack.c.h.b16 %v2745
      %v3126 = vunpack.c.l.b16 %v2746
      %v3127 = vunpack.c.h.b16 %v2746
      %v3128 = vunpack.c.l.b16 %v2747
      %v3129 = vunpack.c.h.b16 %v2747
      %v3130 = vunpack.c.l.b16 %v2748
      %v3131 = vunpack.c.h.b16 %v2748
      %v3132 = vunpack.c.l.b16 %v2749
      %v3133 = vunpack.c.h.b16 %v2749
      %v3134 = vpack.c.b16 %v2886, %v2878
      %v3135 = vpack.c.b16 %v2887, %v2879
      %v3136 = vpack.c.b16 %v2888, %v2880
      %v3137 = vpack.c.b16 %v2889, %v2881
      %v3138 = vpack.c.b16 %v2890, %v2882
      %v3139 = vpack.c.b16 %v2891, %v2883
      %v3140 = vpack.c.b16 %v2892, %v2884
      %v3141 = vpack.c.b16 %v2893, %v2885
      %v3142 = vpack.c.b16 %v2902, %v2894
      %v3143 = vpack.c.b16 %v2903, %v2895
      %v3144 = vpack.c.b16 %v2904, %v2896
      %v3145 = vpack.c.b16 %v2905, %v2897
      %v3146 = vpack.c.b16 %v2906, %v2898
      %v3147 = vpack.c.b16 %v2907, %v2899
      %v3148 = vpack.c.b16 %v2908, %v2900
      %v3149 = vpack.c.b16 %v2909, %v2901
      %v3150 = vpack.c.b16 %v2918, %v2910
      %v3151 = vpack.c.b16 %v2919, %v2911
      %v3152 = vpack.c.b16 %v2920, %v2912
      %v3153 = vpack.c.b16 %v2921, %v2913
      %v3154 = vpack.c.b16 %v2922, %v2914
      %v3155 = vpack.c.b16 %v2923, %v2915
      %v3156 = vpack.c.b16 %v2924, %v2916
      %v3157 = vpack.c.b16 %v2925, %v2917
      %v3158 = vpack.c.b16 %v2934, %v2926
      %v3159 = vpack.c.b16 %v2935, %v2927
      %v3160 = vpack.c.b16 %v2936, %v2928
      %v3161 = vpack.c.b16 %v2937, %v2929
      %v3162 = vpack.c.b16 %v2938, %v2930
      %v3163 = vpack.c.b16 %v2939, %v2931
      %v3164 = vpack.c.b16 %v2940, %v2932
      %v3165 = vpack.c.b16 %v2941, %v2933
      %v3166 = vpack.c.b16 %v2950, %v2942
      %v3167 = vpack.c.b16 %v2951, %v2943
      %v3168 = vpack.c.b16 %v2952, %v2944
      %v3169 = vpack.c.b16 %v2953, %v2945
      %v3170 = vpack.c.b16 %v2954, %v2946
      %v3171 = vpack.c.b16 %v2955, %v2947
      %v3172 = vpack.c.b16 %v2956, %v2948
      %v3173 = vpack.c.b16 %v2957, %v2949
      %v3174 = vpack.c.b16 %v2966, %v2958
      %v3175 = vpack.c.b16 %v2967, %v2959
      %v3176 = vpack.c.b16 %v2968, %v2960
      %v3177 = vpack.c.b16 %v2969, %v2961
      %v3178 = vpack.c.b16 %v2970, %v2962
      %v3179 = vpack.c.b16 %v2971, %v2963
      %v3180 = vpack.c.b16 %v2972, %v2964
      %v3181 = vpack.c.b16 %v2973, %v2965
      %v3182 = vpack.c.b16 %v2982, %v2974
      %v3183 = vpack.c.b16 %v2983, %v2975
      %v3184 = vpack.c.b16 %v2984, %v2976
      %v3185 = vpack.c.b16 %v2985, %v2977
      %v3186 = vpack.c.b16 %v2986, %v2978
      %v3187 = vpack.c.b16 %v2987, %v2979
      %v3188 = vpack.c.b16 %v2988, %v2980
      %v3189 = vpack.c.b16 %v2989, %v2981
      %v3190 = vpack.c.b16 %v2998, %v2990
      %v3191 = vpack.c.b16 %v2999, %v2991
      %v3192 = vpack.c.b16 %v3000, %v2992
      %v3193 = vpack.c.b16 %v3001, %v2993
      %v3194 = vpack.c.b16 %v3002, %v2994
      %v3195 = vpack.c.b16 %v3003, %v2995
      %v3196 = vpack.c.b16 %v3004, %v2996
      %v3197 = vpack.c.b16 %v3005, %v2997
      %v3198 = vpack.c.b16 %v3014, %v3006
      %v3199 = vpack.c.b16 %v3015, %v3007
      %v3200 = vpack.c.b16 %v3016, %v3008
      %v3201 = vpack.c.b16 %v3017, %v3009
      %v3202 = vpack.c.b16 %v3018, %v3010
      %v3203 = vpack.c.b16 %v3019, %v3011
      %v3204 = vpack.c.b16 %v3020, %v3012
      %v3205 = vpack.c.b16 %v3021, %v3013
      %v3206 = vpack.c.b16 %v3030, %v3022
      %v3207 = vpack.c.b16 %v3031, %v3023
      %v3208 = vpack.c.b16 %v3032, %v3024
      %v3209 = vpack.c.b16 %v3033, %v3025
      %v3210 = vpack.c.b16 %v3034, %v3026
      %v3211 = vpack.c.b16 %v3035, %v3027
      %v3212 = vpack.c.b16 %v3036, %v3028
      %v3213 = vpack.c.b16 %v3037, %v3029
      %v3214 = vpack.c.b16 %v3046, %v3038
      %v3215 = vpack.c.b16 %v3047, %v3039
      %v3216 = vpack.c.b16 %v3048, %v3040
      %v3217 = vpack.c.b16 %v3049, %v3041
      %v3218 = vpack.c.b16 %v3050, %v3042
      %v3219 = vpack.c.b16 %v3051, %v3043
      %v3220 = vpack.c.b16 %v3052, %v3044
      %v3221 = vpack.c.b16 %v3053, %v3045
      %v3222 = vpack.c.b16 %v3062, %v3054
      %v3223 = vpack.c.b16 %v3063, %v3055
      %v3224 = vpack.c.b16 %v3064, %v3056
      %v3225 = vpack.c.b16 %v3065, %v3057
      %v3226 = vpack.c.b16 %v3066, %v3058
      %v3227 = vpack.c.b16 %v3067, %v3059
      %v3228 = vpack.c.b16 %v3068, %v3060
      %v3229 = vpack.c.b16 %v3069, %v3061
      %v3230 = vpack.c.b16 %v3078, %v3070
      %v3231 = vpack.c.b16 %v3079, %v3071
      %v3232 = vpack.c.b16 %v3080, %v3072
      %v3233 = vpack.c.b16 %v3081, %v3073
      %v3234 = vpack.c.b16 %v3082, %v3074
      %v3235 = vpack.c.b16 %v3083, %v3075
      %v3236 = vpack.c.b16 %v3084, %v3076
      %v3237 = vpack.c.b16 %v3085, %v3077
      %v3238 = vpack.c.b16 %v3094, %v3086
      %v3239 = vpack.c.b16 %v3095, %v3087
      %v3240 = vpack.c.b16 %v3096, %v3088
      %v3241 = vpack.c.b16 %v3097, %v3089
      %v3242 = vpack.c.b16 %v3098, %v3090
      %v3243 = vpack.c.b16 %v3099, %v3091
      %v3244 = vpack.c.b16 %v3100, %v3092
      %v3245 = vpack.c.b16 %v3101, %v3093
      %v3246 = vpack.c.b16 %v3110, %v3102
      %v3247 = vpack.c.b16 %v3111, %v3103
      %v3248 = vpack.c.b16 %v3112, %v3104
      %v3249 = vpack.c.b16 %v3113, %v3105
      %v3250 = vpack.c.b16 %v3114, %v3106
      %v3251 = vpack.c.b16 %v3115, %v3107
      %v3252 = vpack.c.b16 %v3116, %v3108
      %v3253 = vpack.c.b16 %v3117, %v3109
      %v3254 = vpack.c.b16 %v3126, %v3118
      %v3255 = vpack.c.b16 %v3127, %v3119
      %v3256 = vpack.c.b16 %v3128, %v3120
      %v3257 = vpack.c.b16 %v3129, %v3121
      %v3258 = vpack.c.b16 %v3130, %v3122
      %v3259 = vpack.c.b16 %v3131, %v3123
      %v3260 = vpack.c.b16 %v3132, %v3124
      %v3261 = vpack.c.b16 %v3133, %v3125
      %3390 = vmatprep.subr.bf16.mxu0 %v3135
      %3391 = vmatpush1.bf16.msra.mxu0 %v3134
      %3392 = vmatprep.subr.bf16.mxu0 %v3143
      %3393 = vmatpush1.bf16.msra.mxu0 %v3142
      %3394 = vmatprep.subr.bf16.mxu0 %v3151
      %3395 = vmatpush1.bf16.msra.mxu0 %v3150
      %3396 = vmatprep.subr.bf16.mxu0 %v3159
      %3397 = vmatpush1.bf16.msra.mxu0 %v3158
      %3398 = vmatprep.subr.bf16.mxu0 %v3167
      %3399 = vmatpush1.bf16.msra.mxu0 %v3166
      %3400 = vmatprep.subr.bf16.mxu0 %v3175
      %3401 = vmatpush1.bf16.msra.mxu0 %v3174
      %3402 = vmatprep.subr.bf16.mxu0 %v3183
      %3403 = vmatpush1.bf16.msra.mxu0 %v3182
      %3404 = vmatprep.subr.bf16.mxu0 %v3191
      %3405 = vmatpush1.bf16.msra.mxu0 %v3190
      %3406 = vmatprep.subr.bf16.mxu0 %v3199
      %3407 = vmatpush1.bf16.msra.mxu0 %v3198
      %3408 = vmatprep.subr.bf16.mxu0 %v3207
      %3409 = vmatpush1.bf16.msra.mxu0 %v3206
      %3410 = vmatprep.subr.bf16.mxu0 %v3215
      %3411 = vmatpush1.bf16.msra.mxu0 %v3214
      %3412 = vmatprep.subr.bf16.mxu0 %v3223
      %3413 = vmatpush1.bf16.msra.mxu0 %v3222
      %3414 = vmatprep.subr.bf16.mxu0 %v3231
      %3415 = vmatpush1.bf16.msra.mxu0 %v3230
      %3416 = vmatprep.subr.bf16.mxu0 %v3239
      %3417 = vmatpush1.bf16.msra.mxu0 %v3238
      %3418 = vmatprep.subr.bf16.mxu0 %v3247
      %3419 = vmatpush1.bf16.msra.mxu0 %v3246
      %3420 = vmatprep.subr.bf16.mxu0 %v3255
      %3421 = vmatpush1.bf16.msra.mxu0 %v3254
      %3422 = vmatprep.mubr.bf16.mxu0 %v2619
      %3423 = vmatmul.mubr.bf16.gmra.mrb[0].mxu0 %v2618
      %v3424 = vpop.f32.mrb[0].mxu0
      %v3425 = vadd.f32 0.0, %v3424
      %v3426 = vpop.f32.mrb[0].mxu0
      %v3427 = vadd.f32 0.0, %v3426
      %v3428 = vpop.f32.mrb[0].mxu0
      %v3429 = vadd.f32 0.0, %v3428
      %v3430 = vpop.f32.mrb[0].mxu0
      %v3431 = vadd.f32 0.0, %v3430
      %3432 = vmatprep.mubr.bf16.mxu0 %v2621
      %3433 = vmatmul.mubr.bf16.gmra.mrb[0].mxu0 %v2620
      %v3434 = vpop.f32.mrb[0].mxu0
      %v3435 = vadd.f32 0.0, %v3434
      %v3436 = vpop.f32.mrb[0].mxu0
      %v3437 = vadd.f32 0.0, %v3436
      %v3438 = vpop.f32.mrb[0].mxu0
      %v3439 = vadd.f32 0.0, %v3438
      %v3440 = vpop.f32.mrb[0].mxu0
      %v3441 = vadd.f32 0.0, %v3440
      %3442 = vdwg.mxu0
      %3443 = vmatprep.subr.bf16.mxu0 %v3137
      %3444 = vmatpush1.bf16.msra.mxu0 %v3136
      %3445 = vmatprep.subr.bf16.mxu0 %v3145
      %3446 = vmatpush1.bf16.msra.mxu0 %v3144
      %3447 = vmatprep.subr.bf16.mxu0 %v3153
      %3448 = vmatpush1.bf16.msra.mxu0 %v3152
      %3449 = vmatprep.subr.bf16.mxu0 %v3161
      %3450 = vmatpush1.bf16.msra.mxu0 %v3160
      %3451 = vmatprep.subr.bf16.mxu0 %v3169
      %3452 = vmatpush1.bf16.msra.mxu0 %v3168
      %3453 = vmatprep.subr.bf16.mxu0 %v3177
      %3454 = vmatpush1.bf16.msra.mxu0 %v3176
      %3455 = vmatprep.subr.bf16.mxu0 %v3185
      %3456 = vmatpush1.bf16.msra.mxu0 %v3184
      %3457 = vmatprep.subr.bf16.mxu0 %v3193
      %3458 = vmatpush1.bf16.msra.mxu0 %v3192
      %3459 = vmatprep.subr.bf16.mxu0 %v3201
      %3460 = vmatpush1.bf16.msra.mxu0 %v3200
      %3461 = vmatprep.subr.bf16.mxu0 %v3209
      %3462 = vmatpush1.bf16.msra.mxu0 %v3208
      %3463 = vmatprep.subr.bf16.mxu0 %v3217
      %3464 = vmatpush1.bf16.msra.mxu0 %v3216
      %3465 = vmatprep.subr.bf16.mxu0 %v3225
      %3466 = vmatpush1.bf16.msra.mxu0 %v3224
      %3467 = vmatprep.subr.bf16.mxu0 %v3233
      %3468 = vmatpush1.bf16.msra.mxu0 %v3232
      %3469 = vmatprep.subr.bf16.mxu0 %v3241
      %3470 = vmatpush1.bf16.msra.mxu0 %v3240
      %3471 = vmatprep.subr.bf16.mxu0 %v3249
      %3472 = vmatpush1.bf16.msra.mxu0 %v3248
      %3473 = vmatprep.subr.bf16.mxu0 %v3257
      %3474 = vmatpush1.bf16.msra.mxu0 %v3256
      %3475 = vmatprep.mubr.bf16.mxu0 %v2619
      %3476 = vmatmul.mubr.bf16.gmra.mrb[0].mxu0 %v2618
      %v3477 = vpop.f32.mrb[0].mxu0
      %v3478 = vadd.f32 0.0, %v3477
      %v3479 = vpop.f32.mrb[0].mxu0
      %v3480 = vadd.f32 0.0, %v3479
      %v3481 = vpop.f32.mrb[0].mxu0
      %v3482 = vadd.f32 0.0, %v3481
      %v3483 = vpop.f32.mrb[0].mxu0
      %v3484 = vadd.f32 0.0, %v3483
      %3485 = vmatprep.mubr.bf16.mxu0 %v2621
      %3486 = vmatmul.mubr.bf16.gmra.mrb[0].mxu0 %v2620
      %v3487 = vpop.f32.mrb[0].mxu0
      %v3488 = vadd.f32 0.0, %v3487
      %v3489 = vpop.f32.mrb[0].mxu0
      %v3490 = vadd.f32 0.0, %v3489
      %v3491 = vpop.f32.mrb[0].mxu0
      %v3492 = vadd.f32 0.0, %v3491
      %v3493 = vpop.f32.mrb[0].mxu0
      %v3494 = vadd.f32 0.0, %v3493
      %3495 = vdwg.mxu0
      %3496 = vmatprep.subr.bf16.mxu0 %v3139
      %3497 = vmatpush1.bf16.msra.mxu0 %v3138
      %3498 = vmatprep.subr.bf16.mxu0 %v3147
      %3499 = vmatpush1.bf16.msra.mxu0 %v3146
      %3500 = vmatprep.subr.bf16.mxu0 %v3155
      %3501 = vmatpush1.bf16.msra.mxu0 %v3154
      %3502 = vmatprep.subr.bf16.mxu0 %v3163
      %3503 = vmatpush1.bf16.msra.mxu0 %v3162
      %3504 = vmatprep.subr.bf16.mxu0 %v3171
      %3505 = vmatpush1.bf16.msra.mxu0 %v3170
      %3506 = vmatprep.subr.bf16.mxu0 %v3179
      %3507 = vmatpush1.bf16.msra.mxu0 %v3178
      %3508 = vmatprep.subr.bf16.mxu0 %v3187
      %3509 = vmatpush1.bf16.msra.mxu0 %v3186
      %3510 = vmatprep.subr.bf16.mxu0 %v3195
      %3511 = vmatpush1.bf16.msra.mxu0 %v3194
      %3512 = vmatprep.subr.bf16.mxu0 %v3203
      %3513 = vmatpush1.bf16.msra.mxu0 %v3202
      %3514 = vmatprep.subr.bf16.mxu0 %v3211
      %3515 = vmatpush1.bf16.msra.mxu0 %v3210
      %3516 = vmatprep.subr.bf16.mxu0 %v3219
      %3517 = vmatpush1.bf16.msra.mxu0 %v3218
      %3518 = vmatprep.subr.bf16.mxu0 %v3227
      %3519 = vmatpush1.bf16.msra.mxu0 %v3226
      %3520 = vmatprep.subr.bf16.mxu0 %v3235
      %3521 = vmatpush1.bf16.msra.mxu0 %v3234
      %3522 = vmatprep.subr.bf16.mxu0 %v3243
      %3523 = vmatpush1.bf16.msra.mxu0 %v3242
      %3524 = vmatprep.subr.bf16.mxu0 %v3251
      %3525 = vmatpush1.bf16.msra.mxu0 %v3250
      %3526 = vmatprep.subr.bf16.mxu0 %v3259
      %3527 = vmatpush1.bf16.msra.mxu0 %v3258
      %3528 = vmatprep.mubr.bf16.mxu0 %v2619
      %3529 = vmatmul.mubr.bf16.gmra.mrb[0].mxu0 %v2618
      %v3530 = vpop.f32.mrb[0].mxu0
      %v3531 = vadd.f32 0.0, %v3530
      %v3532 = vpop.f32.mrb[0].mxu0
      %v3533 = vadd.f32 0.0, %v3532
      %v3534 = vpop.f32.mrb[0].mxu0
      %v3535 = vadd.f32 0.0, %v3534
      %v3536 = vpop.f32.mrb[0].mxu0
      %v3537 = vadd.f32 0.0, %v3536
      %3538 = vmatprep.mubr.bf16.mxu0 %v2621
      %3539 = vmatmul.mubr.bf16.gmra.mrb[0].mxu0 %v2620
      %v3540 = vpop.f32.mrb[0].mxu0
      %v3541 = vadd.f32 0.0, %v3540
      %v3542 = vpop.f32.mrb[0].mxu0
      %v3543 = vadd.f32 0.0, %v3542
      %v3544 = vpop.f32.mrb[0].mxu0
      %v3545 = vadd.f32 0.0, %v3544
      %v3546 = vpop.f32.mrb[0].mxu0
      %v3547 = vadd.f32 0.0, %v3546
      %3548 = vdwg.mxu0
      %3549 = vmatprep.subr.bf16.mxu0 %v3141
      %3550 = vmatpush1.bf16.msra.mxu0 %v3140
      %3551 = vmatprep.subr.bf16.mxu0 %v3149
      %3552 = vmatpush1.bf16.msra.mxu0 %v3148
      %3553 = vmatprep.subr.bf16.mxu0 %v3157
      %3554 = vmatpush1.bf16.msra.mxu0 %v3156
      %3555 = vmatprep.subr.bf16.mxu0 %v3165
      %3556 = vmatpush1.bf16.msra.mxu0 %v3164
      %3557 = vmatprep.subr.bf16.mxu0 %v3173
      %3558 = vmatpush1.bf16.msra.mxu0 %v3172
      %3559 = vmatprep.subr.bf16.mxu0 %v3181
      %3560 = vmatpush1.bf16.msra.mxu0 %v3180
      %3561 = vmatprep.subr.bf16.mxu0 %v3189
      %3562 = vmatpush1.bf16.msra.mxu0 %v3188
      %3563 = vmatprep.subr.bf16.mxu0 %v3197
      %3564 = vmatpush1.bf16.msra.mxu0 %v3196
      %3565 = vmatprep.subr.bf16.mxu0 %v3205
      %3566 = vmatpush1.bf16.msra.mxu0 %v3204
      %3567 = vmatprep.subr.bf16.mxu0 %v3213
      %3568 = vmatpush1.bf16.msra.mxu0 %v3212
      %3569 = vmatprep.subr.bf16.mxu0 %v3221
      %3570 = vmatpush1.bf16.msra.mxu0 %v3220
      %3571 = vmatprep.subr.bf16.mxu0 %v3229
      %3572 = vmatpush1.bf16.msra.mxu0 %v3228
      %3573 = vmatprep.subr.bf16.mxu0 %v3237
      %3574 = vmatpush1.bf16.msra.mxu0 %v3236
      %3575 = vmatprep.subr.bf16.mxu0 %v3245
      %3576 = vmatpush1.bf16.msra.mxu0 %v3244
      %3577 = vmatprep.subr.bf16.mxu0 %v3253
      %3578 = vmatpush1.bf16.msra.mxu0 %v3252
      %3579 = vmatprep.subr.bf16.mxu0 %v3261
      %3580 = vmatpush1.bf16.msra.mxu0 %v3260
      %3581 = vmatprep.mubr.bf16.mxu0 %v2619
      %3582 = vmatmul.mubr.bf16.gmra.mrb[0].mxu0 %v2618
      %v3583 = vpop.f32.mrb[0].mxu0
      %v3584 = vadd.f32 0.0, %v3583
      %v3585 = vpop.f32.mrb[0].mxu0
      %v3586 = vadd.f32 0.0, %v3585
      %v3587 = vpop.f32.mrb[0].mxu0
      %v3588 = vadd.f32 0.0, %v3587
      %v3589 = vpop.f32.mrb[0].mxu0
      %v3590 = vadd.f32 0.0, %v3589
      %3591 = vmatprep.mubr.bf16.mxu0 %v2621
      %3592 = vmatmul.mubr.bf16.gmra.mrb[0].mxu0 %v2620
      %v3593 = vpop.f32.mrb[0].mxu0
      %v3594 = vadd.f32 0.0, %v3593
      %v3595 = vpop.f32.mrb[0].mxu0
      %v3596 = vadd.f32 0.0, %v3595
      %v3597 = vpop.f32.mrb[0].mxu0
      %v3598 = vadd.f32 0.0, %v3597
      %v3599 = vpop.f32.mrb[0].mxu0
      %v3600 = vadd.f32 0.0, %v3599
      %3601 = vdwg.mxu0
      %v3602 = vxor.u32 %v3425, 2147483648
      %v3603 = vxor.u32 %v3427, 2147483648
      %v3604 = vxor.u32 %v3478, 2147483648
      %v3605 = vxor.u32 %v3480, 2147483648
      %v3606 = vxor.u32 %v3429, 2147483648
      %v3607 = vxor.u32 %v3431, 2147483648
      %v3608 = vxor.u32 %v3482, 2147483648
      %v3609 = vxor.u32 %v3484, 2147483648
      %v3610 = vxor.u32 %v3435, 2147483648
      %v3611 = vxor.u32 %v3437, 2147483648
      %v3612 = vxor.u32 %v3488, 2147483648
      %v3613 = vxor.u32 %v3490, 2147483648
      %v3614 = vxor.u32 %v3439, 2147483648
      %v3615 = vxor.u32 %v3441, 2147483648
      %v3616 = vxor.u32 %v3492, 2147483648
      %v3617 = vxor.u32 %v3494, 2147483648
      %v3618 = vmul.f32 %v3602, 1.442695
      %v3619 = vpow.pop %v3618
      %v3620 = vmul.f32 %v3603, 1.442695
      %v3621 = vpow.pop %v3620
      %v3622 = vmul.f32 %v3604, 1.442695
      %v3623 = vpow.pop %v3622
      %v3624 = vmul.f32 %v3605, 1.442695
      %v3625 = vpow.pop %v3624
      %v3626 = vmul.f32 %v3606, 1.442695
      %v3627 = vpow.pop %v3626
      %v3628 = vmul.f32 %v3607, 1.442695
      %v3629 = vpow.pop %v3628
      %v3630 = vmul.f32 %v3608, 1.442695
      %v3631 = vpow.pop %v3630
      %v3632 = vmul.f32 %v3609, 1.442695
      %v3633 = vpow.pop %v3632
      %v3634 = vmul.f32 %v3610, 1.442695
      %v3635 = vpow.pop %v3634
      %v3636 = vmul.f32 %v3611, 1.442695
      %v3637 = vpow.pop %v3636
      %v3638 = vmul.f32 %v3612, 1.442695
      %v3639 = vpow.pop %v3638
      %v3640 = vmul.f32 %v3613, 1.442695
      %v3641 = vpow.pop %v3640
      %v3642 = vmul.f32 %v3614, 1.442695
      %v3643 = vpow.pop %v3642
      %v3644 = vmul.f32 %v3615, 1.442695
      %v3645 = vpow.pop %v3644
      %v3646 = vmul.f32 %v3616, 1.442695
      %v3647 = vpow.pop %v3646
      %v3648 = vmul.f32 %v3617, 1.442695
      %v3649 = vpow.pop %v3648
      %v3650 = vadd.f32 %v3619, 1.0
      %v3651 = vadd.f32 %v3621, 1.0
      %v3652 = vadd.f32 %v3623, 1.0
      %v3653 = vadd.f32 %v3625, 1.0
      %v3654 = vadd.f32 %v3627, 1.0
      %v3655 = vadd.f32 %v3629, 1.0
      %v3656 = vadd.f32 %v3631, 1.0
      %v3657 = vadd.f32 %v3633, 1.0
      %v3658 = vadd.f32 %v3635, 1.0
      %v3659 = vadd.f32 %v3637, 1.0
      %v3660 = vadd.f32 %v3639, 1.0
      %v3661 = vadd.f32 %v3641, 1.0
      %v3662 = vadd.f32 %v3643, 1.0
      %v3663 = vadd.f32 %v3645, 1.0
      %v3664 = vadd.f32 %v3647, 1.0
      %v3665 = vadd.f32 %v3649, 1.0
      %v3666 = vrcp.pop %v3650
      %v3667 = vmul.f32 1.0, %v3666
      %v3668 = vrcp.pop %v3651
      %v3669 = vmul.f32 1.0, %v3668
      %v3670 = vrcp.pop %v3652
      %v3671 = vmul.f32 1.0, %v3670
      %v3672 = vrcp.pop %v3653
      %v3673 = vmul.f32 1.0, %v3672
      %v3674 = vrcp.pop %v3654
      %v3675 = vmul.f32 1.0, %v3674
      %v3676 = vrcp.pop %v3655
      %v3677 = vmul.f32 1.0, %v3676
      %v3678 = vrcp.pop %v3656
      %v3679 = vmul.f32 1.0, %v3678
      %v3680 = vrcp.pop %v3657
      %v3681 = vmul.f32 1.0, %v3680
      %v3682 = vrcp.pop %v3658
      %v3683 = vmul.f32 1.0, %v3682
      %v3684 = vrcp.pop %v3659
      %v3685 = vmul.f32 1.0, %v3684
      %v3686 = vrcp.pop %v3660
      %v3687 = vmul.f32 1.0, %v3686
      %v3688 = vrcp.pop %v3661
      %v3689 = vmul.f32 1.0, %v3688
      %v3690 = vrcp.pop %v3662
      %v3691 = vmul.f32 1.0, %v3690
      %v3692 = vrcp.pop %v3663
      %v3693 = vmul.f32 1.0, %v3692
      %v3694 = vrcp.pop %v3664
      %v3695 = vmul.f32 1.0, %v3694
      %v3696 = vrcp.pop %v3665
      %v3697 = vmul.f32 1.0, %v3696
      %v3698 = vmul.f32 %v3425, %v3667
      %v3699 = vmul.f32 %v3427, %v3669
      %v3700 = vmul.f32 %v3478, %v3671
      %v3701 = vmul.f32 %v3480, %v3673
      %v3702 = vmul.f32 %v3429, %v3675
      %v3703 = vmul.f32 %v3431, %v3677
      %v3704 = vmul.f32 %v3482, %v3679
      %v3705 = vmul.f32 %v3484, %v3681
      %v3706 = vmul.f32 %v3435, %v3683
      %v3707 = vmul.f32 %v3437, %v3685
      %v3708 = vmul.f32 %v3488, %v3687
      %v3709 = vmul.f32 %v3490, %v3689
      %v3710 = vmul.f32 %v3439, %v3691
      %v3711 = vmul.f32 %v3441, %v3693
      %v3712 = vmul.f32 %v3492, %v3695
      %v3713 = vmul.f32 %v3494, %v3697
      %v3714 = vmul.f32 %v3698, %v3531
      %v3715 = vmul.f32 %v3699, %v3533
      %v3716 = vmul.f32 %v3700, %v3584
      %v3717 = vmul.f32 %v3701, %v3586
      %v3718 = vmul.f32 %v3702, %v3535
      %v3719 = vmul.f32 %v3703, %v3537
      %v3720 = vmul.f32 %v3704, %v3588
      %v3721 = vmul.f32 %v3705, %v3590
      %v3722 = vmul.f32 %v3706, %v3541
      %v3723 = vmul.f32 %v3707, %v3543
      %v3724 = vmul.f32 %v3708, %v3594
      %v3725 = vmul.f32 %v3709, %v3596
      %v3726 = vmul.f32 %v3710, %v3545
      %v3727 = vmul.f32 %v3711, %v3547
      %v3728 = vmul.f32 %v3712, %v3598
      %v3729 = vmul.f32 %v3713, %v3600
      %v3730 = vpack.c.bf16 %v3718, %v3714
      %v3731 = vpack.c.bf16 %v3719, %v3715
      %v3732 = vpack.c.bf16 %v3720, %v3716
      %v3733 = vpack.c.bf16 %v3721, %v3717
      %v3734 = vpack.c.bf16 %v3726, %v3722
      %v3735 = vpack.c.bf16 %v3727, %v3723
      %v3736 = vpack.c.bf16 %v3728, %v3724
      %v3737 = vpack.c.bf16 %v3729, %v3725
      %v3738 = vld [vmem:[%s483] sm:$0xff]
      %v3739 = vld [vmem:[%s483 + $0x8] sm:$0xff]
      %v3740 = vld [vmem:[%s483 + $0x10] sm:$0xff]
      %v3741 = vld [vmem:[%s483 + $0x18] sm:$0xff]
      %v3742 = vld [vmem:[%s483 + $0x20] sm:$0xff]
      %v3743 = vld [vmem:[%s483 + $0x28] sm:$0xff]
      %v3744 = vld [vmem:[%s483 + $0x30] sm:$0xff]
      %v3745 = vld [vmem:[%s483 + $0x38] sm:$0xff]
      %v3746 = vld [vmem:[%s483 + $0x40] sm:$0xff]
      %v3747 = vld [vmem:[%s483 + $0x48] sm:$0xff]
      %v3748 = vld [vmem:[%s483 + $0x50] sm:$0xff]
      %v3749 = vld [vmem:[%s483 + $0x58] sm:$0xff]
      %v3750 = vld [vmem:[%s483 + $0x60] sm:$0xff]
      %v3751 = vld [vmem:[%s483 + $0x68] sm:$0xff]
      %v3752 = vld [vmem:[%s483 + $0x70] sm:$0xff]
      %v3753 = vld [vmem:[%s483 + $0x78] sm:$0xff]
      %v3754 = vld [vmem:[%s483 + $0x80] sm:$0xff]
      %v3755 = vld [vmem:[%s483 + $0x88] sm:$0xff]
      %v3756 = vld [vmem:[%s483 + $0x90] sm:$0xff]
      %v3757 = vld [vmem:[%s483 + $0x98] sm:$0xff]
      %v3758 = vld [vmem:[%s483 + $0xa0] sm:$0xff]
      %v3759 = vld [vmem:[%s483 + $0xa8] sm:$0xff]
      %v3760 = vld [vmem:[%s483 + $0xb0] sm:$0xff]
      %v3761 = vld [vmem:[%s483 + $0xb8] sm:$0xff]
      %v3762 = vld [vmem:[%s483 + $0xc0] sm:$0xff]
      %v3763 = vld [vmem:[%s483 + $0xc8] sm:$0xff]
      %v3764 = vld [vmem:[%s483 + $0xd0] sm:$0xff]
      %v3765 = vld [vmem:[%s483 + $0xd8] sm:$0xff]
      %v3766 = vld [vmem:[%s483 + $0xe0] sm:$0xff]
      %v3767 = vld [vmem:[%s483 + $0xe8] sm:$0xff]
      %v3768 = vld [vmem:[%s483 + $0xf0] sm:$0xff]
      %v3769 = vld [vmem:[%s483 + $0xf8] sm:$0xff]
      %v3770 = vld [vmem:[%s483 + $0x100] sm:$0xff]
      %v3771 = vld [vmem:[%s483 + $0x108] sm:$0xff]
      %v3772 = vld [vmem:[%s483 + $0x110] sm:$0xff]
      %v3773 = vld [vmem:[%s483 + $0x118] sm:$0xff]
      %v3774 = vld [vmem:[%s483 + $0x120] sm:$0xff]
      %v3775 = vld [vmem:[%s483 + $0x128] sm:$0xff]
      %v3776 = vld [vmem:[%s483 + $0x130] sm:$0xff]
      %v3777 = vld [vmem:[%s483 + $0x138] sm:$0xff]
      %v3778 = vld [vmem:[%s483 + $0x140] sm:$0xff]
      %v3779 = vld [vmem:[%s483 + $0x148] sm:$0xff]
      %v3780 = vld [vmem:[%s483 + $0x150] sm:$0xff]
      %v3781 = vld [vmem:[%s483 + $0x158] sm:$0xff]
      %v3782 = vld [vmem:[%s483 + $0x160] sm:$0xff]
      %v3783 = vld [vmem:[%s483 + $0x168] sm:$0xff]
      %v3784 = vld [vmem:[%s483 + $0x170] sm:$0xff]
      %v3785 = vld [vmem:[%s483 + $0x178] sm:$0xff]
      %v3786 = vld [vmem:[%s483 + $0x180] sm:$0xff]
      %v3787 = vld [vmem:[%s483 + $0x188] sm:$0xff]
      %v3788 = vld [vmem:[%s483 + $0x190] sm:$0xff]
      %v3789 = vld [vmem:[%s483 + $0x198] sm:$0xff]
      %v3790 = vld [vmem:[%s483 + $0x1a0] sm:$0xff]
      %v3791 = vld [vmem:[%s483 + $0x1a8] sm:$0xff]
      %v3792 = vld [vmem:[%s483 + $0x1b0] sm:$0xff]
      %v3793 = vld [vmem:[%s483 + $0x1b8] sm:$0xff]
      %v3794 = vld [vmem:[%s483 + $0x1c0] sm:$0xff]
      %v3795 = vld [vmem:[%s483 + $0x1c8] sm:$0xff]
      %v3796 = vld [vmem:[%s483 + $0x1d0] sm:$0xff]
      %v3797 = vld [vmem:[%s483 + $0x1d8] sm:$0xff]
      %v3798 = vld [vmem:[%s483 + $0x1e0] sm:$0xff]
      %v3799 = vld [vmem:[%s483 + $0x1e8] sm:$0xff]
      %v3800 = vld [vmem:[%s483 + $0x1f0] sm:$0xff]
      %v3801 = vld [vmem:[%s483 + $0x1f8] sm:$0xff]
      %v3866 = vunpack.c.l.b16 %v3738
      %v3867 = vunpack.c.h.b16 %v3738
      %v3868 = vunpack.c.l.b16 %v3739
      %v3869 = vunpack.c.h.b16 %v3739
      %v3870 = vunpack.c.l.b16 %v3740
      %v3871 = vunpack.c.h.b16 %v3740
      %v3872 = vunpack.c.l.b16 %v3741
      %v3873 = vunpack.c.h.b16 %v3741
      %v3874 = vunpack.c.l.b16 %v3742
      %v3875 = vunpack.c.h.b16 %v3742
      %v3876 = vunpack.c.l.b16 %v3743
      %v3877 = vunpack.c.h.b16 %v3743
      %v3878 = vunpack.c.l.b16 %v3744
      %v3879 = vunpack.c.h.b16 %v3744
      %v3880 = vunpack.c.l.b16 %v3745
      %v3881 = vunpack.c.h.b16 %v3745
      %v3882 = vunpack.c.l.b16 %v3746
      %v3883 = vunpack.c.h.b16 %v3746
      %v3884 = vunpack.c.l.b16 %v3747
      %v3885 = vunpack.c.h.b16 %v3747
      %v3886 = vunpack.c.l.b16 %v3748
      %v3887 = vunpack.c.h.b16 %v3748
      %v3888 = vunpack.c.l.b16 %v3749
      %v3889 = vunpack.c.h.b16 %v3749
      %v3890 = vunpack.c.l.b16 %v3750
      %v3891 = vunpack.c.h.b16 %v3750
      %v3892 = vunpack.c.l.b16 %v3751
      %v3893 = vunpack.c.h.b16 %v3751
      %v3894 = vunpack.c.l.b16 %v3752
      %v3895 = vunpack.c.h.b16 %v3752
      %v3896 = vunpack.c.l.b16 %v3753
      %v3897 = vunpack.c.h.b16 %v3753
      %v3898 = vunpack.c.l.b16 %v3754
      %v3899 = vunpack.c.h.b16 %v3754
      %v3900 = vunpack.c.l.b16 %v3755
      %v3901 = vunpack.c.h.b16 %v3755
      %v3902 = vunpack.c.l.b16 %v3756
      %v3903 = vunpack.c.h.b16 %v3756
      %v3904 = vunpack.c.l.b16 %v3757
      %v3905 = vunpack.c.h.b16 %v3757
      %v3906 = vunpack.c.l.b16 %v3758
      %v3907 = vunpack.c.h.b16 %v3758
      %v3908 = vunpack.c.l.b16 %v3759
      %v3909 = vunpack.c.h.b16 %v3759
      %v3910 = vunpack.c.l.b16 %v3760
      %v3911 = vunpack.c.h.b16 %v3760
      %v3912 = vunpack.c.l.b16 %v3761
      %v3913 = vunpack.c.h.b16 %v3761
      %v3914 = vunpack.c.l.b16 %v3762
      %v3915 = vunpack.c.h.b16 %v3762
      %v3916 = vunpack.c.l.b16 %v3763
      %v3917 = vunpack.c.h.b16 %v3763
      %v3918 = vunpack.c.l.b16 %v3764
      %v3919 = vunpack.c.h.b16 %v3764
      %v3920 = vunpack.c.l.b16 %v3765
      %v3921 = vunpack.c.h.b16 %v3765
      %v3922 = vunpack.c.l.b16 %v3766
      %v3923 = vunpack.c.h.b16 %v3766
      %v3924 = vunpack.c.l.b16 %v3767
      %v3925 = vunpack.c.h.b16 %v3767
      %v3926 = vunpack.c.l.b16 %v3768
      %v3927 = vunpack.c.h.b16 %v3768
      %v3928 = vunpack.c.l.b16 %v3769
      %v3929 = vunpack.c.h.b16 %v3769
      %v3930 = vunpack.c.l.b16 %v3770
      %v3931 = vunpack.c.h.b16 %v3770
      %v3932 = vunpack.c.l.b16 %v3771
      %v3933 = vunpack.c.h.b16 %v3771
      %v3934 = vunpack.c.l.b16 %v3772
      %v3935 = vunpack.c.h.b16 %v3772
      %v3936 = vunpack.c.l.b16 %v3773
      %v3937 = vunpack.c.h.b16 %v3773
      %v3938 = vunpack.c.l.b16 %v3774
      %v3939 = vunpack.c.h.b16 %v3774
      %v3940 = vunpack.c.l.b16 %v3775
      %v3941 = vunpack.c.h.b16 %v3775
      %v3942 = vunpack.c.l.b16 %v3776
      %v3943 = vunpack.c.h.b16 %v3776
      %v3944 = vunpack.c.l.b16 %v3777
      %v3945 = vunpack.c.h.b16 %v3777
      %v3946 = vunpack.c.l.b16 %v3778
      %v3947 = vunpack.c.h.b16 %v3778
      %v3948 = vunpack.c.l.b16 %v3779
      %v3949 = vunpack.c.h.b16 %v3779
      %v3950 = vunpack.c.l.b16 %v3780
      %v3951 = vunpack.c.h.b16 %v3780
      %v3952 = vunpack.c.l.b16 %v3781
      %v3953 = vunpack.c.h.b16 %v3781
      %v3954 = vunpack.c.l.b16 %v3782
      %v3955 = vunpack.c.h.b16 %v3782
      %v3956 = vunpack.c.l.b16 %v3783
      %v3957 = vunpack.c.h.b16 %v3783
      %v3958 = vunpack.c.l.b16 %v3784
      %v3959 = vunpack.c.h.b16 %v3784
      %v3960 = vunpack.c.l.b16 %v3785
      %v3961 = vunpack.c.h.b16 %v3785
      %v3962 = vunpack.c.l.b16 %v3786
      %v3963 = vunpack.c.h.b16 %v3786
      %v3964 = vunpack.c.l.b16 %v3787
      %v3965 = vunpack.c.h.b16 %v3787
      %v3966 = vunpack.c.l.b16 %v3788
      %v3967 = vunpack.c.h.b16 %v3788
      %v3968 = vunpack.c.l.b16 %v3789
      %v3969 = vunpack.c.h.b16 %v3789
      %v3970 = vunpack.c.l.b16 %v3790
      %v3971 = vunpack.c.h.b16 %v3790
      %v3972 = vunpack.c.l.b16 %v3791
      %v3973 = vunpack.c.h.b16 %v3791
      %v3974 = vunpack.c.l.b16 %v3792
      %v3975 = vunpack.c.h.b16 %v3792
      %v3976 = vunpack.c.l.b16 %v3793
      %v3977 = vunpack.c.h.b16 %v3793
      %v3978 = vunpack.c.l.b16 %v3794
      %v3979 = vunpack.c.h.b16 %v3794
      %v3980 = vunpack.c.l.b16 %v3795
      %v3981 = vunpack.c.h.b16 %v3795
      %v3982 = vunpack.c.l.b16 %v3796
      %v3983 = vunpack.c.h.b16 %v3796
      %v3984 = vunpack.c.l.b16 %v3797
      %v3985 = vunpack.c.h.b16 %v3797
      %v3986 = vunpack.c.l.b16 %v3798
      %v3987 = vunpack.c.h.b16 %v3798
      %v3988 = vunpack.c.l.b16 %v3799
      %v3989 = vunpack.c.h.b16 %v3799
      %v3990 = vunpack.c.l.b16 %v3800
      %v3991 = vunpack.c.h.b16 %v3800
      %v3992 = vunpack.c.l.b16 %v3801
      %v3993 = vunpack.c.h.b16 %v3801
      %v3994 = vpack.c.b16 %v3868, %v3866
      %v3995 = vpack.c.b16 %v3869, %v3867
      %v3996 = vpack.c.b16 %v3872, %v3870
      %v3997 = vpack.c.b16 %v3873, %v3871
      %v3998 = vpack.c.b16 %v3876, %v3874
      %v3999 = vpack.c.b16 %v3877, %v3875
      %v4000 = vpack.c.b16 %v3880, %v3878
      %v4001 = vpack.c.b16 %v3881, %v3879
      %v4002 = vpack.c.b16 %v3884, %v3882
      %v4003 = vpack.c.b16 %v3885, %v3883
      %v4004 = vpack.c.b16 %v3888, %v3886
      %v4005 = vpack.c.b16 %v3889, %v3887
      %v4006 = vpack.c.b16 %v3892, %v3890
      %v4007 = vpack.c.b16 %v3893, %v3891
      %v4008 = vpack.c.b16 %v3896, %v3894
      %v4009 = vpack.c.b16 %v3897, %v3895
      %v4010 = vpack.c.b16 %v3900, %v3898
      %v4011 = vpack.c.b16 %v3901, %v3899
      %v4012 = vpack.c.b16 %v3904, %v3902
      %v4013 = vpack.c.b16 %v3905, %v3903
      %v4014 = vpack.c.b16 %v3908, %v3906
      %v4015 = vpack.c.b16 %v3909, %v3907
      %v4016 = vpack.c.b16 %v3912, %v3910
      %v4017 = vpack.c.b16 %v3913, %v3911
      %v4018 = vpack.c.b16 %v3916, %v3914
      %v4019 = vpack.c.b16 %v3917, %v3915
      %v4020 = vpack.c.b16 %v3920, %v3918
      %v4021 = vpack.c.b16 %v3921, %v3919
      %v4022 = vpack.c.b16 %v3924, %v3922
      %v4023 = vpack.c.b16 %v3925, %v3923
      %v4024 = vpack.c.b16 %v3928, %v3926
      %v4025 = vpack.c.b16 %v3929, %v3927
      %v4026 = vpack.c.b16 %v3932, %v3930
      %v4027 = vpack.c.b16 %v3933, %v3931
      %v4028 = vpack.c.b16 %v3936, %v3934
      %v4029 = vpack.c.b16 %v3937, %v3935
      %v4030 = vpack.c.b16 %v3940, %v3938
      %v4031 = vpack.c.b16 %v3941, %v3939
      %v4032 = vpack.c.b16 %v3944, %v3942
      %v4033 = vpack.c.b16 %v3945, %v3943
      %v4034 = vpack.c.b16 %v3948, %v3946
      %v4035 = vpack.c.b16 %v3949, %v3947
      %v4036 = vpack.c.b16 %v3952, %v3950
      %v4037 = vpack.c.b16 %v3953, %v3951
      %v4038 = vpack.c.b16 %v3956, %v3954
      %v4039 = vpack.c.b16 %v3957, %v3955
      %v4040 = vpack.c.b16 %v3960, %v3958
      %v4041 = vpack.c.b16 %v3961, %v3959
      %v4042 = vpack.c.b16 %v3964, %v3962
      %v4043 = vpack.c.b16 %v3965, %v3963
      %v4044 = vpack.c.b16 %v3968, %v3966
      %v4045 = vpack.c.b16 %v3969, %v3967
      %v4046 = vpack.c.b16 %v3972, %v3970
      %v4047 = vpack.c.b16 %v3973, %v3971
      %v4048 = vpack.c.b16 %v3976, %v3974
      %v4049 = vpack.c.b16 %v3977, %v3975
      %v4050 = vpack.c.b16 %v3980, %v3978
      %v4051 = vpack.c.b16 %v3981, %v3979
      %v4052 = vpack.c.b16 %v3984, %v3982
      %v4053 = vpack.c.b16 %v3985, %v3983
      %v4054 = vpack.c.b16 %v3988, %v3986
      %v4055 = vpack.c.b16 %v3989, %v3987
      %v4056 = vpack.c.b16 %v3992, %v3990
      %v4057 = vpack.c.b16 %v3993, %v3991
      %4122 = vmatprep.subr.bf16.mxu0 %v3995
      %4123 = vmatpush1.bf16.msra.mxu0 %v3994
      %4124 = vmatprep.subr.bf16.mxu0 %v3997
      %4125 = vmatpush1.bf16.msra.mxu0 %v3996
      %4126 = vmatprep.subr.bf16.mxu0 %v3999
      %4127 = vmatpush1.bf16.msra.mxu0 %v3998
      %4128 = vmatprep.subr.bf16.mxu0 %v4001
      %4129 = vmatpush1.bf16.msra.mxu0 %v4000
      %4130 = vmatprep.subr.bf16.mxu0 %v4003
      %4131 = vmatpush1.bf16.msra.mxu0 %v4002
      %4132 = vmatprep.subr.bf16.mxu0 %v4005
      %4133 = vmatpush1.bf16.msra.mxu0 %v4004
      %4134 = vmatprep.subr.bf16.mxu0 %v4007
      %4135 = vmatpush1.bf16.msra.mxu0 %v4006
      %4136 = vmatprep.subr.bf16.mxu0 %v4009
      %4137 = vmatpush1.bf16.msra.mxu0 %v4008
      %4138 = vmatprep.subr.bf16.mxu0 %v4011
      %4139 = vmatpush1.bf16.msra.mxu0 %v4010
      %4140 = vmatprep.subr.bf16.mxu0 %v4013
      %4141 = vmatpush1.bf16.msra.mxu0 %v4012
      %4142 = vmatprep.subr.bf16.mxu0 %v4015
      %4143 = vmatpush1.bf16.msra.mxu0 %v4014
      %4144 = vmatprep.subr.bf16.mxu0 %v4017
      %4145 = vmatpush1.bf16.msra.mxu0 %v4016
      %4146 = vmatprep.subr.bf16.mxu0 %v4019
      %4147 = vmatpush1.bf16.msra.mxu0 %v4018
      %4148 = vmatprep.subr.bf16.mxu0 %v4021
      %4149 = vmatpush1.bf16.msra.mxu0 %v4020
      %4150 = vmatprep.subr.bf16.mxu0 %v4023
      %4151 = vmatpush1.bf16.msra.mxu0 %v4022
      %4152 = vmatprep.subr.bf16.mxu0 %v4025
      %4153 = vmatpush1.bf16.msra.mxu0 %v4024
      %4154 = vmatprep.mubr.bf16.mxu0 %v3731
      %4155 = vmatmul.mubr.bf16.gmra.mrb[0].mxu0 %v3730
      %v4156 = vpop.f32.mrb[0].mxu0
      %v4157 = vadd.f32 0.0, %v4156
      %v4158 = vpop.f32.mrb[0].mxu0
      %v4159 = vadd.f32 0.0, %v4158
      %v4160 = vpop.f32.mrb[0].mxu0
      %v4161 = vadd.f32 0.0, %v4160
      %v4162 = vpop.f32.mrb[0].mxu0
      %v4163 = vadd.f32 0.0, %v4162
      %4164 = vmatprep.mubr.bf16.mxu0 %v3735
      %4165 = vmatmul.mubr.bf16.gmra.mrb[0].mxu0 %v3734
      %v4166 = vpop.f32.mrb[0].mxu0
      %v4167 = vadd.f32 0.0, %v4166
      %v4168 = vpop.f32.mrb[0].mxu0
      %v4169 = vadd.f32 0.0, %v4168
      %v4170 = vpop.f32.mrb[0].mxu0
      %v4171 = vadd.f32 0.0, %v4170
      %v4172 = vpop.f32.mrb[0].mxu0
      %v4173 = vadd.f32 0.0, %v4172
      %4174 = vdwg.mxu0
      %4175 = vmatprep.subr.bf16.mxu0 %v4027
      %4176 = vmatpush1.bf16.msra.mxu0 %v4026
      %4177 = vmatprep.subr.bf16.mxu0 %v4029
      %4178 = vmatpush1.bf16.msra.mxu0 %v4028
      %4179 = vmatprep.subr.bf16.mxu0 %v4031
      %4180 = vmatpush1.bf16.msra.mxu0 %v4030
      %4181 = vmatprep.subr.bf16.mxu0 %v4033
      %4182 = vmatpush1.bf16.msra.mxu0 %v4032
      %4183 = vmatprep.subr.bf16.mxu0 %v4035
      %4184 = vmatpush1.bf16.msra.mxu0 %v4034
      %4185 = vmatprep.subr.bf16.mxu0 %v4037
      %4186 = vmatpush1.bf16.msra.mxu0 %v4036
      %4187 = vmatprep.subr.bf16.mxu0 %v4039
      %4188 = vmatpush1.bf16.msra.mxu0 %v4038
      %4189 = vmatprep.subr.bf16.mxu0 %v4041
      %4190 = vmatpush1.bf16.msra.mxu0 %v4040
      %4191 = vmatprep.subr.bf16.mxu0 %v4043
      %4192 = vmatpush1.bf16.msra.mxu0 %v4042
      %4193 = vmatprep.subr.bf16.mxu0 %v4045
      %4194 = vmatpush1.bf16.msra.mxu0 %v4044
      %4195 = vmatprep.subr.bf16.mxu0 %v4047
      %4196 = vmatpush1.bf16.msra.mxu0 %v4046
      %4197 = vmatprep.subr.bf16.mxu0 %v4049
      %4198 = vmatpush1.bf16.msra.mxu0 %v4048
      %4199 = vmatprep.subr.bf16.mxu0 %v4051
      %4200 = vmatpush1.bf16.msra.mxu0 %v4050
      %4201 = vmatprep.subr.bf16.mxu0 %v4053
      %4202 = vmatpush1.bf16.msra.mxu0 %v4052
      %4203 = vmatprep.subr.bf16.mxu0 %v4055
      %4204 = vmatpush1.bf16.msra.mxu0 %v4054
      %4205 = vmatprep.subr.bf16.mxu0 %v4057
      %4206 = vmatpush1.bf16.msra.mxu0 %v4056
      %4207 = vmatprep.mubr.bf16.mxu0 %v3733
      %4208 = vmatmul.mubr.bf16.gmra.mrb[0].mxu0 %v3732
      %v4209 = vpop.f32.mrb[0].mxu0
      %v4210 = vadd.f32 %v4157, %v4209
      %v4211 = vpop.f32.mrb[0].mxu0
      %v4212 = vadd.f32 %v4159, %v4211
      %v4213 = vpop.f32.mrb[0].mxu0
      %v4214 = vadd.f32 %v4161, %v4213
      %v4215 = vpop.f32.mrb[0].mxu0
      %v4216 = vadd.f32 %v4163, %v4215
      %4217 = vmatprep.mubr.bf16.mxu0 %v3737
      %4218 = vmatmul.mubr.bf16.gmra.mrb[0].mxu0 %v3736
      %v4219 = vpop.f32.mrb[0].mxu0
      %v4220 = vadd.f32 %v4167, %v4219
      %v4221 = vpop.f32.mrb[0].mxu0
      %v4222 = vadd.f32 %v4169, %v4221
      %v4223 = vpop.f32.mrb[0].mxu0
      %v4224 = vadd.f32 %v4171, %v4223
      %v4225 = vpop.f32.mrb[0].mxu0
      %v4226 = vadd.f32 %v4173, %v4225
      %4227 = vdwg.mxu0
      %v4228 = vadd.f32 %v2550, %v4210
      %v4229 = vadd.f32 %v2551, %v4212
      %v4230 = vadd.f32 %v2552, %v4214
      %v4231 = vadd.f32 %v2553, %v4216
      %v4232 = vadd.f32 %v2554, %v4220
      %v4233 = vadd.f32 %v2555, %v4222
      %v4234 = vadd.f32 %v2556, %v4224
      %v4235 = vadd.f32 %v2557, %v4226
      %4236 = vst [vmem:[%s489] sm:$0xff] %v4228
      %4237 = vst [vmem:[%s489 + $0x8] sm:$0xff] %v4229
      %4238 = vst [vmem:[%s489 + $0x10] sm:$0xff] %v4230
      %4239 = vst [vmem:[%s489 + $0x18] sm:$0xff] %v4231
      %4240 = vst [vmem:[%s489 + $0x20] sm:$0xff] %v4232
      %4241 = vst [vmem:[%s489 + $0x28] sm:$0xff] %v4233
      %4242 = vst [vmem:[%s489 + $0x30] sm:$0xff] %v4234
      %4243 = vst [vmem:[%s489 + $0x38] sm:$0xff] %v4235
      %s4244 = smul.u32 4, %s25
      %p4245 = scmp.lt.s32.totalorder %s4244, 3
      %s4246 = scalar_select %p4245, %s4244, 3
      %s4247 = smul.addr %s4246, 2
      %s4248 = smul.addr %s4247, 8
      %s4249 = scalar_lea.vmem %s10, %s4248
      // Predicated region
      $region65: #{mistral_backbone_forward.2} parent=59 // pred_check
        %p4250 = pneg %p296
      $region66: #{mistral_backbone_forward.2} parent=59 // pred_check_branch
        %4252 = sbr.rel (%p4250) target = $region68
      $region67: #{mistral_backbone_forward.2} parent=59 // pred_region
        %s4253 = smul.u32 4, %s25
      $region68: #{mistral_backbone_forward.2} parent=59 // pred_fallthru
        _
      // Predicated region
      $region69: #{mistral_backbone_forward.2} parent=59 // pred_check
        %p4254 = pneg %p296
      $region70: #{mistral_backbone_forward.2} parent=59 // pred_check_branch
        %4256 = sbr.rel (%p4254) target = $region72
      $region71: #{mistral_backbone_forward.2} parent=59 // pred_region
        %s4257 = smul.u32 4, %s25
        %p4258 = scmp.lt.s32.totalorder %s4257, 3
        %s4259 = scalar_select %p4258, %s4257, 3
        %s4260 = smul.addr %s4259, 2
        %s4261 = smul.addr %s4260, 8
        %s4262 = scalar_lea.vmem %s10, %s4261
      $region72: #{mistral_backbone_forward.2} parent=59 // pred_fallthru
        _
    $region60: #{mistral_backbone_forward.2} parent=5 // pred_fallthru
      _
    %p4263 = scmp.le.s32.totalorder 2, %s16
    // Predicated region
    $region73: #{mistral_backbone_forward.2} parent=5 // pred_check
      %p4264 = pneg %p4263
    $region74: #{mistral_backbone_forward.2} parent=5 // pred_check_branch
      %4266 = sbr.rel (%p4264) target = $region76
    $region75: #{mistral_backbone_forward.2} parent=5 // pred_region
      %s4267 = ssub.s32 %s16, 2
    $region76: #{mistral_backbone_forward.2} parent=5 // pred_fallthru
      _
  $region6: #{mistral_backbone_forward.2} parent=0 // loop_footer
    %s20 = sadd.s32 1, %s16
  $region7: #{mistral_backbone_forward.2} parent=0 // loop_footer_branch
    %15 = sbr.rel target = $region3
  $region8: #{mistral_backbone_forward.2} parent=0 // loop_exit
    _

</llo_original>
